<compile_context>
chip_gen: v7x
topology: tpu7x:2x2x1
jax: 0.10.0
libtpu: 0.0.40
codegen_flags: <defaults>
</compile_context>

<pallas_src>
import functools

import jax
import jax.numpy as jnp
from jax import lax
from jax.experimental import pallas as pl
from jax.experimental.pallas import tpu as pltpu

LANE = 128


def _round_up(x, m):
    return (x + m - 1) // m * m


# ------------------------------ fused kernel ------------------------------- #

def _basic_block_kernel(x_ref, w1_ref, w2_ref, wsc_ref, bn_ref, o_ref, s2_ref,
                        *, RB, Ho, Wo, Gp, Cp, kH1, kW1):
    """One (batch, row-block) step of the fused BasicBlock forward.

    x_ref : (Hp, Wp, Gp) bf16 padded space-to-depth input (whole image, VMEM).
    w1_ref: (kH1*kW1, Gp, Cp) bf16 folded conv1 weights.
    w2_ref: (9, Cp, Cp) bf16 conv2 weights.
    wsc_ref: (Gp, Cp) bf16 folded shortcut (1x1 proj or identity).
    bn_ref: (6, Cp) f32 rows: bn1 scale/shift, bn2 scale/shift, bnsc scale/shift.
    o_ref : (RB, Wo, Cp) f32 output rows of this block.
    s2_ref: (RB+2, Wo+2, Cp) bf16 conv2 input scratch (1-col halo).
    """
    rb = pl.program_id(1)
    r0 = pl.multiple_of(rb * RB, RB)          # first output row of this block
    R1 = RB + 2                               # out1 rows incl. 1-row halo

    # ---- conv1 (stride folded into space-to-depth) + BN1 + ReLU -------------
    # Per-tap K=Gp(=128) lane-dense matmuls, f32 accumulation.  Each LHS is a
    # plain strided VMEM slice of the pre-padded input block (no relayout).
    acc1 = jnp.zeros((R1 * Wo, Cp), jnp.float32)
    for kh in range(kH1):
        for kw in range(kW1):
            lhs = x_ref[pl.ds(r0 + kh, R1), kw:kw + Wo, :].reshape(R1 * Wo, Gp)
            acc1 = acc1 + jnp.dot(lhs, w1_ref[kh * kW1 + kw],
                                  preferred_element_type=jnp.float32)
    out1 = jnp.maximum(acc1 * bn_ref[0:1, :] + bn_ref[1:2, :], 0.0)
    out1 = out1.reshape(R1, Wo, Cp)

    # out1 rows outside the image are conv2's zero-padding ring: force them to
    # zero (BN shift + ReLU would otherwise make padding rows non-zero).
    row = lax.broadcasted_iota(jnp.int32, (R1, Wo, Cp), 0) + (r0 - 1)
    out1 = jnp.where((row >= 0) & (row < Ho), out1, 0.0)

    # ---- conv2 input scratch: out1 + 1-column zero halo ---------------------
    # Only the two thin halo columns are zeroed each step (never the interior;
    # not gated on program_id, so megacore-safe).
    s2_ref[:, 0:1, :] = jnp.zeros((R1, 1, Cp), jnp.bfloat16)
    s2_ref[:, Wo + 1:Wo + 2, :] = jnp.zeros((R1, 1, Cp), jnp.bfloat16)
    s2_ref[:, 1:Wo + 1, :] = out1.astype(jnp.bfloat16)

    # ---- conv2 (stride 1) + BN2: nine K=Cp lane-dense matmuls ---------------
    acc2 = jnp.zeros((RB * Wo, Cp), jnp.float32)
    for kh in range(3):
        for kw in range(3):
            lhs = s2_ref[kh:kh + RB, kw:kw + Wo, :].reshape(RB * Wo, Cp)
            acc2 = acc2 + jnp.dot(lhs, w2_ref[kh * 3 + kw],
                                  preferred_element_type=jnp.float32)
    out2 = acc2 * bn_ref[2:3, :] + bn_ref[3:4, :]

    # ---- shortcut (identity or 1x1 projection, both folded into wsc) + BN ---
    xc = x_ref[pl.ds(r0 + 2, RB), 1:1 + Wo, :].reshape(RB * Wo, Gp)
    sc = jnp.dot(xc, wsc_ref[...], preferred_element_type=jnp.float32)
    sc = sc * bn_ref[4:5, :] + bn_ref[5:6, :]

    # ---- add + ReLU, lane-dense (Cp multiple of 128) store ------------------
    out = jnp.maximum(out2 + sc, 0.0)
    o_ref[...] = out.reshape(RB, Wo, Cp).astype(o_ref.dtype)


# ------------------------------ public wrapper ------------------------------ #

def basic_block_forward(x_nchw, params, stride):
    """Forward pass of BasicBlock. Input/output are NCHW (PyTorch convention)."""
    s = int(stride)
    x = jnp.transpose(x_nchw, (0, 2, 3, 1)).astype(jnp.bfloat16)   # NHWC bf16
    N, H, W, Cin = x.shape
    Cout = params["w1"].shape[-1]
    assert H % s == 0 and W % s == 0
    Ho, Wo = H // s, W // s
    has_proj = (s != 1) or (Cin != Cout)

    G = s * s * Cin                      # space-to-depth channel count
    Gp = _round_up(G, LANE)              # lane-padded input channels
    Cp = _round_up(Cout, LANE)           # lane-padded output channels

    # conv1 tap grid over the space-to-depth tensor: offsets q in [-1, q_hi].
    q_hi = 1 // s                        # 1 for stride 1, 0 for stride >= 2
    kH1 = kW1 = q_hi + 2

    # Row-block size along Ho (second parallel grid axis).
    RB = 8 if Ho % 8 == 0 else Ho
    n_rb = Ho // RB
    R1 = RB + 2

    # ---- input: space-to-depth, lane padding, and zero spatial halo so the
    # kernel never clamps boundaries or zero-fills scratch planes.
    x6 = x.reshape(N, Ho, s, Wo, s, Cin)
    s2d = jnp.transpose(x6, (0, 1, 3, 2, 4, 5)).reshape(N, Ho, Wo, G)
    pad_top, pad_bot = 2, q_hi + 1
    pad_l, pad_r = 1, q_hi
    xp = jnp.pad(s2d, ((0, 0), (pad_top, pad_bot), (pad_l, pad_r), (0, Gp - G)))
    Hp, Wp = Ho + pad_top + pad_bot, Wo + pad_l + pad_r

    # ---- conv1 weights folded onto the space-to-depth layout, lane padded.
    w1 = params["w1"].astype(jnp.float32)                      # (3,3,Cin,Cout)
    w1f = jnp.zeros((kH1, kW1, s, s, Cin, Cout), jnp.float32)
    for dh in (-1, 0, 1):
        qh, ph = divmod(dh, s)
        for dw in (-1, 0, 1):
            qw, pw = divmod(dw, s)
            w1f = w1f.at[qh + 1, qw + 1, ph, pw].set(w1[dh + 1, dw + 1])
    w1f = w1f.reshape(kH1, kW1, G, Cout)
    w1f = jnp.pad(w1f, ((0, 0), (0, 0), (0, Gp - G), (0, Cp - Cout)))
    w1f = w1f.reshape(kH1 * kW1, Gp, Cp).astype(jnp.bfloat16)

    # ---- conv2 weights: (9, Cp, Cp), lane padded.
    w2 = params["w2"].astype(jnp.float32)                      # (3,3,Cout,Cout)
    w2f = jnp.pad(w2, ((0, 0), (0, 0), (0, Cp - Cout), (0, Cp - Cout)))
    w2f = w2f.reshape(9, Cp, Cp).astype(jnp.bfloat16)

    # ---- shortcut folded into one (Gp, Cp) matrix on the phase-(0,0) channels.
    if has_proj:
        wsc_small = params["w_sc"].astype(jnp.float32)          # (Cin, Cout)
        bnsc_scale, bnsc_shift = params["bnsc_scale"], params["bnsc_shift"]
    else:
        wsc_small = jnp.eye(Cin, Cout, dtype=jnp.float32)
        bnsc_scale = jnp.ones((1, Cout), jnp.float32)
        bnsc_shift = jnp.zeros((1, Cout), jnp.float32)
    wsc = jnp.zeros((Gp, Cp), jnp.float32).at[:Cin, :Cout].set(wsc_small)
    wsc = wsc.astype(jnp.bfloat16)

    # ---- folded BN rows, zero padded to Cp lanes.
    def _pad_row(r):
        return jnp.pad(r.reshape(1, Cout).astype(jnp.float32),
                       ((0, 0), (0, Cp - Cout)))
    bn = jnp.concatenate([
        _pad_row(params["bn1_scale"]), _pad_row(params["bn1_shift"]),
        _pad_row(params["bn2_scale"]), _pad_row(params["bn2_shift"]),
        _pad_row(bnsc_scale), _pad_row(bnsc_shift)], axis=0)      # (6, Cp)

    kernel = functools.partial(_basic_block_kernel, RB=RB, Ho=Ho, Wo=Wo,
                               Gp=Gp, Cp=Cp, kH1=kH1, kW1=kW1)

    y = pl.pallas_call(
        kernel,
        out_shape=jax.ShapeDtypeStruct((N, Ho, Wo, Cp), jnp.float32),
        grid_spec=pltpu.PrefetchScalarGridSpec(
            num_scalar_prefetch=0,
            grid=(N, n_rb),
            in_specs=[
                # Whole padded image per batch item; block index is constant in
                # the row-block axis, so it is DMA'd once per n and stays in VMEM.
                pl.BlockSpec((None, Hp, Wp, Gp), lambda n, r: (n, 0, 0, 0)),
                pl.BlockSpec((kH1 * kW1, Gp, Cp), lambda n, r: (0, 0, 0)),
                pl.BlockSpec((9, Cp, Cp), lambda n, r: (0, 0, 0)),
                pl.BlockSpec((Gp, Cp), lambda n, r: (0, 0)),
                pl.BlockSpec((6, Cp), lambda n, r: (0, 0)),
            ],
            out_specs=pl.BlockSpec((None, RB, Wo, Cp),
                                   lambda n, r: (n, r, 0, 0)),
            scratch_shapes=[
                pltpu.VMEM((R1, Wo + 2, Cp), jnp.bfloat16),   # conv2 input
            ]),
        compiler_params=pltpu.CompilerParams(
            dimension_semantics=("parallel", "parallel"),
            vmem_limit_bytes=32 * 1024 * 1024),
    )(xp, w1f, w2f, wsc, bn)

    y = y[..., :Cout]                        # drop lane padding
    return jnp.transpose(y, (0, 3, 1, 2))    # -> NCHW (PyTorch interface)


# --------------------------- reference (plain JAX) -------------------------- #

def _ref_conv(x_nhwc, w, stride):
    return lax.conv_general_dilated(
        x_nhwc, w, window_strides=(stride, stride), padding=((1, 1), (1, 1)),
        dimension_numbers=("NHWC", "HWIO", "NHWC"),
        precision=lax.Precision.HIGHEST)


def basic_block_ref(x_nchw, params, stride):
    x = jnp.transpose(x_nchw, (0, 2, 3, 1)).astype(jnp.float32)
    cin = x.shape[-1]
    cout = params["w1"].shape[-1]
    o = _ref_conv(x, params["w1"], stride)
    o = jnp.maximum(o * params["bn1_scale"] + params["bn1_shift"], 0.0)
    o = _ref_conv(o, params["w2"], 1)
    o = o * params["bn2_scale"] + params["bn2_shift"]
    if stride != 1 or cin != cout:
        sc = lax.conv_general_dilated(
            x, params["w_sc"][None, None], window_strides=(stride, stride),
            padding="VALID", dimension_numbers=("NHWC", "HWIO", "NHWC"),
            precision=lax.Precision.HIGHEST)
        sc = sc * params["bnsc_scale"] + params["bnsc_shift"]
    else:
        sc = x
    o = jnp.maximum(o + sc, 0.0)
    return jnp.transpose(o, (0, 3, 1, 2))


# ----------------------------------- setup ---------------------------------- #

def _fold_bn(gamma, beta, mean, var, eps=1e-5):
    scale = gamma / jnp.sqrt(var + eps)
    shift = beta - mean * scale
    return scale[None, :].astype(jnp.float32), shift[None, :].astype(jnp.float32)


def make_params(key, cin, cout):
    k1, k2, k3 = jax.random.split(key, 3)
    w1 = 0.1 * jax.random.normal(k1, (3, 3, cin, cout), dtype=jnp.float32)
    w2 = 0.1 * jax.random.normal(k2, (3, 3, cout, cout), dtype=jnp.float32)
    w_sc = 0.1 * jax.random.normal(k3, (cin, cout), dtype=jnp.float32)

    def bn(c, base):
        gamma = 1.0 + 0.05 * jnp.arange(c, dtype=jnp.float32)
        beta = 0.1 * (jnp.arange(c, dtype=jnp.float32) - base)
        mean = 0.05 * jnp.arange(c, dtype=jnp.float32)
        var = 1.0 + 0.03 * jnp.arange(c, dtype=jnp.float32)
        return _fold_bn(gamma, beta, mean, var)

    bn1_scale, bn1_shift = bn(cout, 1.0)
    bn2_scale, bn2_shift = bn(cout, 2.0)
    bnsc_scale, bnsc_shift = bn(cout, 3.0)
    return dict(w1=w1, w2=w2, w_sc=w_sc,
                bn1_scale=bn1_scale, bn1_shift=bn1_shift,
                bn2_scale=bn2_scale, bn2_shift=bn2_shift,
                bnsc_scale=bnsc_scale, bnsc_shift=bnsc_shift)


if __name__ == "__main__":
    N, H, W = 2, 16, 16
    key = jax.random.PRNGKey(0)

    # (in_planes, planes, stride): projection-shortcut case and identity case.
    configs = [(4, 8, 2), (8, 8, 1)]
    for idx, (cin, cout, stride) in enumerate(configs):
        kx, kp = jax.random.split(jax.random.fold_in(key, idx))
        x = jax.random.normal(kx, (N, cin, H, W), dtype=jnp.float32)  # NCHW
        params = make_params(kp, cin, cout)

        out = jax.block_until_ready(basic_block_forward(x, params, stride))
        ref = jax.block_until_ready(basic_block_ref(x, params, stride))

        assert out.shape == (N, cout, H // stride, W // stride), out.shape
        # bf16 MXU operands / bf16 input with f32 accumulation -> small mismatch.
        if not jnp.allclose(out, ref, rtol=2e-2, atol=2e-2):
            err = float(jnp.max(jnp.abs(out - ref)))
            raise RuntimeError(
                f"Pallas BasicBlock mismatch vs JAX reference (max abs err {err})")

    print("KERNEL_OK")
</pallas_src>

<mosaic_0001>
module attributes {stable_mosaic.version = 11 : i64} {
  func.func @_basic_block_kernel(%arg0: i32, %arg1: i32, %arg2: memref<1x11x9x128xbf16, #tpu.memory_space<vmem>>, %arg3: memref<4x128x128xbf16, #tpu.memory_space<vmem>>, %arg4: memref<9x128x128xbf16, #tpu.memory_space<vmem>>, %arg5: memref<128x128xbf16, #tpu.memory_space<vmem>>, %arg6: memref<6x128xf32, #tpu.memory_space<vmem>>, %arg7: memref<1x8x8x128xf32, #tpu.memory_space<vmem>>, %arg8: memref<10x10x128xbf16, #tpu.memory_space<vmem>>) attributes {dimension_semantics = [#tpu.dimension_semantics<parallel>, #tpu.dimension_semantics<parallel>], iteration_bounds = array<i64: 2, 1>, scalar_prefetch = 0 : i64, scratch_operands = 1 : i64, tpu.core_type = #tpu.core_type<tc>, window_params = [{transform_indices = @transform_0, window_bounds = array<i64: 1, 11, 9, 128>}, {pipeline_mode = #tpu.pipeline_mode<synchronous>, transform_indices = @transform_1, window_bounds = array<i64: 4, 128, 128>}, {pipeline_mode = #tpu.pipeline_mode<synchronous>, transform_indices = @transform_2, window_bounds = array<i64: 9, 128, 128>}, {pipeline_mode = #tpu.pipeline_mode<synchronous>, transform_indices = @transform_3, window_bounds = array<i64: 128, 128>}, {pipeline_mode = #tpu.pipeline_mode<synchronous>, transform_indices = @transform_4, window_bounds = array<i64: 6, 128>}, {transform_indices = @transform_5, window_bounds = array<i64: 1, 8, 8, 128>}]} {
    %c8_i32 = arith.constant 8 : i32
    %0 = arith.muli %arg1, %c8_i32 : i32
    %1 = tpu.assume_multiple %0, 8 : i32
    %cst = arith.constant 0.000000e+00 : f32
    %2 = vector.broadcast %cst : f32 to vector<80x128xf32>
    %c0_i32 = arith.constant 0 : i32
    %3 = arith.addi %1, %c0_i32 : i32
    %c0 = arith.constant 0 : index
    %4 = arith.index_cast %3 : i32 to index
    %c0_0 = arith.constant 0 : index
    %c0_1 = arith.constant 0 : index
    %5 = vector.load %arg2[%c0, %4, %c0_0, %c0_1] : memref<1x11x9x128xbf16, #tpu.memory_space<vmem>>, vector<1x10x8x128xbf16>
    %6 = vector.shape_cast %5 : vector<1x10x8x128xbf16> to vector<10x8x128xbf16>
    %7 = vector.shape_cast %6 : vector<10x8x128xbf16> to vector<80x128xbf16>
    %c0_2 = arith.constant 0 : index
    %c0_3 = arith.constant 0 : index
    %c0_4 = arith.constant 0 : index
    %8 = vector.load %arg3[%c0_2, %c0_3, %c0_4] : memref<4x128x128xbf16, #tpu.memory_space<vmem>>, vector<1x128x128xbf16>
    %9 = vector.shape_cast %8 : vector<1x128x128xbf16> to vector<128x128xbf16>
    %cst_5 = arith.constant dense<0.000000e+00> : vector<80x128xf32>
    %10 = tpu.matmul %7, %9, %cst_5 {dimension_numbers = #tpu.dot_dimension_numbers<[1], [0], [0], [1], [0, 0, 1, 1], [], []>} : vector<80x128xbf16>, vector<128x128xbf16>, vector<80x128xf32> -> vector<80x128xf32>
    %11 = arith.addf %2, %10 : vector<80x128xf32>
    %c0_i32_6 = arith.constant 0 : i32
    %12 = arith.addi %1, %c0_i32_6 : i32
    %c0_7 = arith.constant 0 : index
    %13 = arith.index_cast %12 : i32 to index
    %c1 = arith.constant 1 : index
    %c0_8 = arith.constant 0 : index
    %14 = vector.load %arg2[%c0_7, %13, %c1, %c0_8] : memref<1x11x9x128xbf16, #tpu.memory_space<vmem>>, vector<1x10x8x128xbf16>
    %15 = vector.shape_cast %14 : vector<1x10x8x128xbf16> to vector<10x8x128xbf16>
    %16 = vector.shape_cast %15 : vector<10x8x128xbf16> to vector<80x128xbf16>
    %c1_9 = arith.constant 1 : index
    %c0_10 = arith.constant 0 : index
    %c0_11 = arith.constant 0 : index
    %17 = vector.load %arg3[%c1_9, %c0_10, %c0_11] : memref<4x128x128xbf16, #tpu.memory_space<vmem>>, vector<1x128x128xbf16>
    %18 = vector.shape_cast %17 : vector<1x128x128xbf16> to vector<128x128xbf16>
    %cst_12 = arith.constant dense<0.000000e+00> : vector<80x128xf32>
    %19 = tpu.matmul %16, %18, %cst_12 {dimension_numbers = #tpu.dot_dimension_numbers<[1], [0], [0], [1], [0, 0, 1, 1], [], []>} : vector<80x128xbf16>, vector<128x128xbf16>, vector<80x128xf32> -> vector<80x128xf32>
    %20 = arith.addf %11, %19 : vector<80x128xf32>
    %c1_i32 = arith.constant 1 : i32
    %21 = arith.addi %1, %c1_i32 : i32
    %c0_13 = arith.constant 0 : index
    %22 = arith.index_cast %21 : i32 to index
    %c0_14 = arith.constant 0 : index
    %c0_15 = arith.constant 0 : index
    %23 = vector.load %arg2[%c0_13, %22, %c0_14, %c0_15] : memref<1x11x9x128xbf16, #tpu.memory_space<vmem>>, vector<1x10x8x128xbf16>
    %24 = vector.shape_cast %23 : vector<1x10x8x128xbf16> to vector<10x8x128xbf16>
    %25 = vector.shape_cast %24 : vector<10x8x128xbf16> to vector<80x128xbf16>
    %c2 = arith.constant 2 : index
    %c0_16 = arith.constant 0 : index
    %c0_17 = arith.constant 0 : index
    %26 = vector.load %arg3[%c2, %c0_16, %c0_17] : memref<4x128x128xbf16, #tpu.memory_space<vmem>>, vector<1x128x128xbf16>
    %27 = vector.shape_cast %26 : vector<1x128x128xbf16> to vector<128x128xbf16>
    %cst_18 = arith.constant dense<0.000000e+00> : vector<80x128xf32>
    %28 = tpu.matmul %25, %27, %cst_18 {dimension_numbers = #tpu.dot_dimension_numbers<[1], [0], [0], [1], [0, 0, 1, 1], [], []>} : vector<80x128xbf16>, vector<128x128xbf16>, vector<80x128xf32> -> vector<80x128xf32>
    %29 = arith.addf %20, %28 : vector<80x128xf32>
    %c1_i32_19 = arith.constant 1 : i32
    %30 = arith.addi %1, %c1_i32_19 : i32
    %c0_20 = arith.constant 0 : index
    %31 = arith.index_cast %30 : i32 to index
    %c1_21 = arith.constant 1 : index
    %c0_22 = arith.constant 0 : index
    %32 = vector.load %arg2[%c0_20, %31, %c1_21, %c0_22] : memref<1x11x9x128xbf16, #tpu.memory_space<vmem>>, vector<1x10x8x128xbf16>
    %33 = vector.shape_cast %32 : vector<1x10x8x128xbf16> to vector<10x8x128xbf16>
    %34 = vector.shape_cast %33 : vector<10x8x128xbf16> to vector<80x128xbf16>
    %c3 = arith.constant 3 : index
    %c0_23 = arith.constant 0 : index
    %c0_24 = arith.constant 0 : index
    %35 = vector.load %arg3[%c3, %c0_23, %c0_24] : memref<4x128x128xbf16, #tpu.memory_space<vmem>>, vector<1x128x128xbf16>
    %36 = vector.shape_cast %35 : vector<1x128x128xbf16> to vector<128x128xbf16>
    %cst_25 = arith.constant dense<0.000000e+00> : vector<80x128xf32>
    %37 = tpu.matmul %34, %36, %cst_25 {dimension_numbers = #tpu.dot_dimension_numbers<[1], [0], [0], [1], [0, 0, 1, 1], [], []>} : vector<80x128xbf16>, vector<128x128xbf16>, vector<80x128xf32> -> vector<80x128xf32>
    %38 = arith.addf %29, %37 : vector<80x128xf32>
    %c0_26 = arith.constant 0 : index
    %c0_27 = arith.constant 0 : index
    %39 = vector.load %arg6[%c0_26, %c0_27] : memref<6x128xf32, #tpu.memory_space<vmem>>, vector<1x128xf32>
    %40 = vector.broadcast %39 : vector<1x128xf32> to vector<80x128xf32>
    %41 = arith.mulf %38, %40 : vector<80x128xf32>
    %c1_28 = arith.constant 1 : index
    %c0_29 = arith.constant 0 : index
    %42 = vector.load %arg6[%c1_28, %c0_29] : memref<6x128xf32, #tpu.memory_space<vmem>>, vector<1x128xf32>
    %43 = vector.broadcast %42 : vector<1x128xf32> to vector<80x128xf32>
    %44 = arith.addf %41, %43 : vector<80x128xf32>
    %cst_30 = arith.constant 0.000000e+00 : f32
    %45 = vector.broadcast %cst_30 : f32 to vector<80x128xf32>
    %46 = arith.maximumf %44, %45 : vector<80x128xf32>
    %47 = vector.shape_cast %46 : vector<80x128xf32> to vector<10x8x128xf32>
    %48 = tpu.iota {dimensions = array<i32: 0>} : vector<10x8x128xi32>
    %c1_i32_31 = arith.constant 1 : i32
    %49 = arith.subi %1, %c1_i32_31 : i32
    %50 = vector.broadcast %49 : i32 to vector<10x8x128xi32>
    %51 = arith.addi %48, %50 : vector<10x8x128xi32>
    %c0_i32_32 = arith.constant 0 : i32
    %52 = vector.broadcast %c0_i32_32 : i32 to vector<10x8x128xi32>
    %53 = arith.cmpi sge, %51, %52 : vector<10x8x128xi32>
    %c8_i32_33 = arith.constant 8 : i32
    %54 = vector.broadcast %c8_i32_33 : i32 to vector<10x8x128xi32>
    %55 = arith.cmpi slt, %51, %54 : vector<10x8x128xi32>
    %56 = arith.andi %53, %55 : vector<10x8x128xi1>
    %cst_34 = arith.constant 0.000000e+00 : f32
    %57 = vector.broadcast %cst_34 : f32 to vector<10x8x128xf32>
    %58 = arith.select %56, %47, %57 : vector<10x8x128xi1>, vector<10x8x128xf32>
    %cst_35 = arith.constant 0.000000e+00 : bf16
    %59 = vector.broadcast %cst_35 : bf16 to vector<10x1x128xbf16>
    %c0_36 = arith.constant 0 : index
    %c0_37 = arith.constant 0 : index
    %c0_38 = arith.constant 0 : index
    %60 = vector.load %arg8[%c0_36, %c0_37, %c0_38] : memref<10x10x128xbf16, #tpu.memory_space<vmem>>, vector<10x1x128xbf16>
    tpu.vector_store %arg8[%c0_36, %c0_37, %c0_38], %59 {strides = array<i32>} : memref<10x10x128xbf16, #tpu.memory_space<vmem>>, vector<10x1x128xbf16>,
    %cst_39 = arith.constant 0.000000e+00 : bf16
    %61 = vector.broadcast %cst_39 : bf16 to vector<10x1x128xbf16>
    %c0_40 = arith.constant 0 : index
    %c9 = arith.constant 9 : index
    %c0_41 = arith.constant 0 : index
    %62 = vector.load %arg8[%c0_40, %c9, %c0_41] : memref<10x10x128xbf16, #tpu.memory_space<vmem>>, vector<10x1x128xbf16>
    tpu.vector_store %arg8[%c0_40, %c9, %c0_41], %61 {strides = array<i32>} : memref<10x10x128xbf16, #tpu.memory_space<vmem>>, vector<10x1x128xbf16>,
    %63 = arith.truncf %58 : vector<10x8x128xf32> to vector<10x8x128xbf16>
    %c0_42 = arith.constant 0 : index
    %c1_43 = arith.constant 1 : index
    %c0_44 = arith.constant 0 : index
    %64 = vector.load %arg8[%c0_42, %c1_43, %c0_44] : memref<10x10x128xbf16, #tpu.memory_space<vmem>>, vector<10x8x128xbf16>
    tpu.vector_store %arg8[%c0_42, %c1_43, %c0_44], %63 {strides = array<i32>} : memref<10x10x128xbf16, #tpu.memory_space<vmem>>, vector<10x8x128xbf16>,
    %cst_45 = arith.constant 0.000000e+00 : f32
    %65 = vector.broadcast %cst_45 : f32 to vector<64x128xf32>
    %c0_46 = arith.constant 0 : index
    %c0_47 = arith.constant 0 : index
    %c0_48 = arith.constant 0 : index
    %66 = vector.load %arg8[%c0_46, %c0_47, %c0_48] : memref<10x10x128xbf16, #tpu.memory_space<vmem>>, vector<8x8x128xbf16>
    %67 = vector.shape_cast %66 : vector<8x8x128xbf16> to vector<64x128xbf16>
    %c0_49 = arith.constant 0 : index
    %c0_50 = arith.constant 0 : index
    %c0_51 = arith.constant 0 : index
    %68 = vector.load %arg4[%c0_49, %c0_50, %c0_51] : memref<9x128x128xbf16, #tpu.memory_space<vmem>>, vector<1x128x128xbf16>
    %69 = vector.shape_cast %68 : vector<1x128x128xbf16> to vector<128x128xbf16>
    %cst_52 = arith.constant dense<0.000000e+00> : vector<64x128xf32>
    %70 = tpu.matmul %67, %69, %cst_52 {dimension_numbers = #tpu.dot_dimension_numbers<[1], [0], [0], [1], [0, 0, 1, 1], [], []>} : vector<64x128xbf16>, vector<128x128xbf16>, vector<64x128xf32> -> vector<64x128xf32>
    %71 = arith.addf %65, %70 : vector<64x128xf32>
    %c0_53 = arith.constant 0 : index
    %c1_54 = arith.constant 1 : index
    %c0_55 = arith.constant 0 : index
    %72 = vector.load %arg8[%c0_53, %c1_54, %c0_55] : memref<10x10x128xbf16, #tpu.memory_space<vmem>>, vector<8x8x128xbf16>
    %73 = vector.shape_cast %72 : vector<8x8x128xbf16> to vector<64x128xbf16>
    %c1_56 = arith.constant 1 : index
    %c0_57 = arith.constant 0 : index
    %c0_58 = arith.constant 0 : index
    %74 = vector.load %arg4[%c1_56, %c0_57, %c0_58] : memref<9x128x128xbf16, #tpu.memory_space<vmem>>, vector<1x128x128xbf16>
    %75 = vector.shape_cast %74 : vector<1x128x128xbf16> to vector<128x128xbf16>
    %cst_59 = arith.constant dense<0.000000e+00> : vector<64x128xf32>
    %76 = tpu.matmul %73, %75, %cst_59 {dimension_numbers = #tpu.dot_dimension_numbers<[1], [0], [0], [1], [0, 0, 1, 1], [], []>} : vector<64x128xbf16>, vector<128x128xbf16>, vector<64x128xf32> -> vector<64x128xf32>
    %77 = arith.addf %71, %76 : vector<64x128xf32>
    %c0_60 = arith.constant 0 : index
    %c2_61 = arith.constant 2 : index
    %c0_62 = arith.constant 0 : index
    %78 = vector.load %arg8[%c0_60, %c2_61, %c0_62] : memref<10x10x128xbf16, #tpu.memory_space<vmem>>, vector<8x8x128xbf16>
    %79 = vector.shape_cast %78 : vector<8x8x128xbf16> to vector<64x128xbf16>
    %c2_63 = arith.constant 2 : index
    %c0_64 = arith.constant 0 : index
    %c0_65 = arith.constant 0 : index
    %80 = vector.load %arg4[%c2_63, %c0_64, %c0_65] : memref<9x128x128xbf16, #tpu.memory_space<vmem>>, vector<1x128x128xbf16>
    %81 = vector.shape_cast %80 : vector<1x128x128xbf16> to vector<128x128xbf16>
    %cst_66 = arith.constant dense<0.000000e+00> : vector<64x128xf32>
    %82 = tpu.matmul %79, %81, %cst_66 {dimension_numbers = #tpu.dot_dimension_numbers<[1], [0], [0], [1], [0, 0, 1, 1], [], []>} : vector<64x128xbf16>, vector<128x128xbf16>, vector<64x128xf32> -> vector<64x128xf32>
    %83 = arith.addf %77, %82 : vector<64x128xf32>
    %c1_67 = arith.constant 1 : index
    %c0_68 = arith.constant 0 : index
    %c0_69 = arith.constant 0 : index
    %84 = vector.load %arg8[%c1_67, %c0_68, %c0_69] : memref<10x10x128xbf16, #tpu.memory_space<vmem>>, vector<8x8x128xbf16>
    %85 = vector.shape_cast %84 : vector<8x8x128xbf16> to vector<64x128xbf16>
    %c3_70 = arith.constant 3 : index
    %c0_71 = arith.constant 0 : index
    %c0_72 = arith.constant 0 : index
    %86 = vector.load %arg4[%c3_70, %c0_71, %c0_72] : memref<9x128x128xbf16, #tpu.memory_space<vmem>>, vector<1x128x128xbf16>
    %87 = vector.shape_cast %86 : vector<1x128x128xbf16> to vector<128x128xbf16>
    %cst_73 = arith.constant dense<0.000000e+00> : vector<64x128xf32>
    %88 = tpu.matmul %85, %87, %cst_73 {dimension_numbers = #tpu.dot_dimension_numbers<[1], [0], [0], [1], [0, 0, 1, 1], [], []>} : vector<64x128xbf16>, vector<128x128xbf16>, vector<64x128xf32> -> vector<64x128xf32>
    %89 = arith.addf %83, %88 : vector<64x128xf32>
    %c1_74 = arith.constant 1 : index
    %c1_75 = arith.constant 1 : index
    %c0_76 = arith.constant 0 : index
    %90 = vector.load %arg8[%c1_74, %c1_75, %c0_76] : memref<10x10x128xbf16, #tpu.memory_space<vmem>>, vector<8x8x128xbf16>
    %91 = vector.shape_cast %90 : vector<8x8x128xbf16> to vector<64x128xbf16>
    %c4 = arith.constant 4 : index
    %c0_77 = arith.constant 0 : index
    %c0_78 = arith.constant 0 : index
    %92 = vector.load %arg4[%c4, %c0_77, %c0_78] : memref<9x128x128xbf16, #tpu.memory_space<vmem>>, vector<1x128x128xbf16>
    %93 = vector.shape_cast %92 : vector<1x128x128xbf16> to vector<128x128xbf16>
    %cst_79 = arith.constant dense<0.000000e+00> : vector<64x128xf32>
    %94 = tpu.matmul %91, %93, %cst_79 {dimension_numbers = #tpu.dot_dimension_numbers<[1], [0], [0], [1], [0, 0, 1, 1], [], []>} : vector<64x128xbf16>, vector<128x128xbf16>, vector<64x128xf32> -> vector<64x128xf32>
    %95 = arith.addf %89, %94 : vector<64x128xf32>
    %c1_80 = arith.constant 1 : index
    %c2_81 = arith.constant 2 : index
    %c0_82 = arith.constant 0 : index
    %96 = vector.load %arg8[%c1_80, %c2_81, %c0_82] : memref<10x10x128xbf16, #tpu.memory_space<vmem>>, vector<8x8x128xbf16>
    %97 = vector.shape_cast %96 : vector<8x8x128xbf16> to vector<64x128xbf16>
    %c5 = arith.constant 5 : index
    %c0_83 = arith.constant 0 : index
    %c0_84 = arith.constant 0 : index
    %98 = vector.load %arg4[%c5, %c0_83, %c0_84] : memref<9x128x128xbf16, #tpu.memory_space<vmem>>, vector<1x128x128xbf16>
    %99 = vector.shape_cast %98 : vector<1x128x128xbf16> to vector<128x128xbf16>
    %cst_85 = arith.constant dense<0.000000e+00> : vector<64x128xf32>
    %100 = tpu.matmul %97, %99, %cst_85 {dimension_numbers = #tpu.dot_dimension_numbers<[1], [0], [0], [1], [0, 0, 1, 1], [], []>} : vector<64x128xbf16>, vector<128x128xbf16>, vector<64x128xf32> -> vector<64x128xf32>
    %101 = arith.addf %95, %100 : vector<64x128xf32>
    %c2_86 = arith.constant 2 : index
    %c0_87 = arith.constant 0 : index
    %c0_88 = arith.constant 0 : index
    %102 = vector.load %arg8[%c2_86, %c0_87, %c0_88] : memref<10x10x128xbf16, #tpu.memory_space<vmem>>, vector<8x8x128xbf16>
    %103 = vector.shape_cast %102 : vector<8x8x128xbf16> to vector<64x128xbf16>
    %c6 = arith.constant 6 : index
    %c0_89 = arith.constant 0 : index
    %c0_90 = arith.constant 0 : index
    %104 = vector.load %arg4[%c6, %c0_89, %c0_90] : memref<9x128x128xbf16, #tpu.memory_space<vmem>>, vector<1x128x128xbf16>
    %105 = vector.shape_cast %104 : vector<1x128x128xbf16> to vector<128x128xbf16>
    %cst_91 = arith.constant dense<0.000000e+00> : vector<64x128xf32>
    %106 = tpu.matmul %103, %105, %cst_91 {dimension_numbers = #tpu.dot_dimension_numbers<[1], [0], [0], [1], [0, 0, 1, 1], [], []>} : vector<64x128xbf16>, vector<128x128xbf16>, vector<64x128xf32> -> vector<64x128xf32>
    %107 = arith.addf %101, %106 : vector<64x128xf32>
    %c2_92 = arith.constant 2 : index
    %c1_93 = arith.constant 1 : index
    %c0_94 = arith.constant 0 : index
    %108 = vector.load %arg8[%c2_92, %c1_93, %c0_94] : memref<10x10x128xbf16, #tpu.memory_space<vmem>>, vector<8x8x128xbf16>
    %109 = vector.shape_cast %108 : vector<8x8x128xbf16> to vector<64x128xbf16>
    %c7 = arith.constant 7 : index
    %c0_95 = arith.constant 0 : index
    %c0_96 = arith.constant 0 : index
    %110 = vector.load %arg4[%c7, %c0_95, %c0_96] : memref<9x128x128xbf16, #tpu.memory_space<vmem>>, vector<1x128x128xbf16>
    %111 = vector.shape_cast %110 : vector<1x128x128xbf16> to vector<128x128xbf16>
    %cst_97 = arith.constant dense<0.000000e+00> : vector<64x128xf32>
    %112 = tpu.matmul %109, %111, %cst_97 {dimension_numbers = #tpu.dot_dimension_numbers<[1], [0], [0], [1], [0, 0, 1, 1], [], []>} : vector<64x128xbf16>, vector<128x128xbf16>, vector<64x128xf32> -> vector<64x128xf32>
    %113 = arith.addf %107, %112 : vector<64x128xf32>
    %c2_98 = arith.constant 2 : index
    %c2_99 = arith.constant 2 : index
    %c0_100 = arith.constant 0 : index
    %114 = vector.load %arg8[%c2_98, %c2_99, %c0_100] : memref<10x10x128xbf16, #tpu.memory_space<vmem>>, vector<8x8x128xbf16>
    %115 = vector.shape_cast %114 : vector<8x8x128xbf16> to vector<64x128xbf16>
    %c8 = arith.constant 8 : index
    %c0_101 = arith.constant 0 : index
    %c0_102 = arith.constant 0 : index
    %116 = vector.load %arg4[%c8, %c0_101, %c0_102] : memref<9x128x128xbf16, #tpu.memory_space<vmem>>, vector<1x128x128xbf16>
    %117 = vector.shape_cast %116 : vector<1x128x128xbf16> to vector<128x128xbf16>
    %cst_103 = arith.constant dense<0.000000e+00> : vector<64x128xf32>
    %118 = tpu.matmul %115, %117, %cst_103 {dimension_numbers = #tpu.dot_dimension_numbers<[1], [0], [0], [1], [0, 0, 1, 1], [], []>} : vector<64x128xbf16>, vector<128x128xbf16>, vector<64x128xf32> -> vector<64x128xf32>
    %119 = arith.addf %113, %118 : vector<64x128xf32>
    %c2_104 = arith.constant 2 : index
    %c0_105 = arith.constant 0 : index
    %120 = vector.load %arg6[%c2_104, %c0_105] : memref<6x128xf32, #tpu.memory_space<vmem>>, vector<1x128xf32>
    %121 = vector.broadcast %120 : vector<1x128xf32> to vector<64x128xf32>
    %122 = arith.mulf %119, %121 : vector<64x128xf32>
    %c3_106 = arith.constant 3 : index
    %c0_107 = arith.constant 0 : index
    %123 = vector.load %arg6[%c3_106, %c0_107] : memref<6x128xf32, #tpu.memory_space<vmem>>, vector<1x128xf32>
    %124 = vector.broadcast %123 : vector<1x128xf32> to vector<64x128xf32>
    %125 = arith.addf %122, %124 : vector<64x128xf32>
    %c2_i32 = arith.constant 2 : i32
    %126 = arith.addi %1, %c2_i32 : i32
    %c0_108 = arith.constant 0 : index
    %127 = arith.index_cast %126 : i32 to index
    %c1_109 = arith.constant 1 : index
    %c0_110 = arith.constant 0 : index
    %128 = vector.load %arg2[%c0_108, %127, %c1_109, %c0_110] : memref<1x11x9x128xbf16, #tpu.memory_space<vmem>>, vector<1x8x8x128xbf16>
    %129 = vector.shape_cast %128 : vector<1x8x8x128xbf16> to vector<8x8x128xbf16>
    %130 = vector.shape_cast %129 : vector<8x8x128xbf16> to vector<64x128xbf16>
    %c0_111 = arith.constant 0 : index
    %c0_112 = arith.constant 0 : index
    %131 = vector.load %arg5[%c0_111, %c0_112] : memref<128x128xbf16, #tpu.memory_space<vmem>>, vector<128x128xbf16>
    %cst_113 = arith.constant dense<0.000000e+00> : vector<64x128xf32>
    %132 = tpu.matmul %130, %131, %cst_113 {dimension_numbers = #tpu.dot_dimension_numbers<[1], [0], [0], [1], [0, 0, 1, 1], [], []>} : vector<64x128xbf16>, vector<128x128xbf16>, vector<64x128xf32> -> vector<64x128xf32>
    %c4_114 = arith.constant 4 : index
    %c0_115 = arith.constant 0 : index
    %133 = vector.load %arg6[%c4_114, %c0_115] : memref<6x128xf32, #tpu.memory_space<vmem>>, vector<1x128xf32>
    %134 = vector.broadcast %133 : vector<1x128xf32> to vector<64x128xf32>
    %135 = arith.mulf %132, %134 : vector<64x128xf32>
    %c5_116 = arith.constant 5 : index
    %c0_117 = arith.constant 0 : index
    %136 = vector.load %arg6[%c5_116, %c0_117] : memref<6x128xf32, #tpu.memory_space<vmem>>, vector<1x128xf32>
    %137 = vector.broadcast %136 : vector<1x128xf32> to vector<64x128xf32>
    %138 = arith.addf %135, %137 : vector<64x128xf32>
    %139 = arith.addf %125, %138 : vector<64x128xf32>
    %cst_118 = arith.constant 0.000000e+00 : f32
    %140 = vector.broadcast %cst_118 : f32 to vector<64x128xf32>
    %141 = arith.maximumf %139, %140 : vector<64x128xf32>
    %142 = vector.shape_cast %141 : vector<64x128xf32> to vector<8x8x128xf32>
    %c0_119 = arith.constant 0 : index
    %c0_120 = arith.constant 0 : index
    %c0_121 = arith.constant 0 : index
    %c0_122 = arith.constant 0 : index
    %143 = vector.load %arg7[%c0_119, %c0_120, %c0_121, %c0_122] : memref<1x8x8x128xf32, #tpu.memory_space<vmem>>, vector<1x8x8x128xf32>
    %144 = vector.shape_cast %143 : vector<1x8x8x128xf32> to vector<8x8x128xf32>
    %145 = vector.shape_cast %142 : vector<8x8x128xf32> to vector<1x8x8x128xf32>
    tpu.vector_store %arg7[%c0_119, %c0_120, %c0_121, %c0_122], %145 {strides = array<i32>} : memref<1x8x8x128xf32, #tpu.memory_space<vmem>>, vector<1x8x8x128xf32>,
    return
  }
  func.func @transform_0(%arg0: i32, %arg1: i32) -> (i32, i32, i32, i32) {
    %c0_i32 = arith.constant 0 : i32
    %c0_i32_0 = arith.constant 0 : i32
    %c0_i32_1 = arith.constant 0 : i32
    %c0_i32_2 = arith.constant 0 : i32
    return %arg0, %c0_i32, %c0_i32_0, %c0_i32_1 : i32, i32, i32, i32
  }
  func.func @transform_1(%arg0: i32, %arg1: i32) -> (i32, i32, i32) {
    %c0_i32 = arith.constant 0 : i32
    %c0_i32_0 = arith.constant 0 : i32
    %c0_i32_1 = arith.constant 0 : i32
    %c0_i32_2 = arith.constant 0 : i32
    return %c0_i32, %c0_i32_0, %c0_i32_1 : i32, i32, i32
  }
  func.func @transform_2(%arg0: i32, %arg1: i32) -> (i32, i32, i32) {
    %c0_i32 = arith.constant 0 : i32
    %c0_i32_0 = arith.constant 0 : i32
    %c0_i32_1 = arith.constant 0 : i32
    %c0_i32_2 = arith.constant 0 : i32
    return %c0_i32, %c0_i32_0, %c0_i32_1 : i32, i32, i32
  }
  func.func @transform_3(%arg0: i32, %arg1: i32) -> (i32, i32) {
    %c0_i32 = arith.constant 0 : i32
    %c0_i32_0 = arith.constant 0 : i32
    %c0_i32_1 = arith.constant 0 : i32
    return %c0_i32, %c0_i32_0 : i32, i32
  }
  func.func @transform_4(%arg0: i32, %arg1: i32) -> (i32, i32) {
    %c0_i32 = arith.constant 0 : i32
    %c0_i32_0 = arith.constant 0 : i32
    %c0_i32_1 = arith.constant 0 : i32
    return %c0_i32, %c0_i32_0 : i32, i32
  }
  func.func @transform_5(%arg0: i32, %arg1: i32) -> (i32, i32, i32, i32) {
    %c0_i32 = arith.constant 0 : i32
    %c0_i32_0 = arith.constant 0 : i32
    %c0_i32_1 = arith.constant 0 : i32
    return %arg0, %arg1, %c0_i32, %c0_i32_0 : i32, i32, i32, i32
  }
}

</mosaic_0001>

<llo_original>
// kernel: tpu_custom_call.1
$region0: #{tpu_custom_call.1}
  #allocation0 [shape = 'u32[]', space=smem, size = 0x4, offset = 0x4, fixed_abs, tag = 'smem constant byte address 0x4 - core index']
  #allocation1 [shape = 'u32[144,128]{1,0:T(1,128)}', space=vmem, size = 0x12000, scoped, tag = 'internal scratch']
  #allocation2 [shape = 'bf16[10,10,128]{2,1,0:T(8,128)(2,1)}', space=vmem, size = 0xa000, scoped, tag = 'scratch operand']
  %s0 = inlined_call_operand.vmem [shape: bf16[2,11,9,128], index: 0, kind: input, shape index: {}]
  %s1 = inlined_call_operand.vmem [shape: bf16[4,128,128], index: 1, kind: input, shape index: {}]
  %s2 = inlined_call_operand.hbm [shape: bf16[9,128,128], index: 2, kind: input, shape index: {}]
  %s3 = inlined_call_operand.hbm [shape: bf16[128,128], index: 3, kind: input, shape index: {}]
  %s4 = inlined_call_operand.vmem [shape: f32[6,128], index: 4, kind: input, shape index: {}]
  %s5 = inlined_call_operand.hbm [shape: f32[2,8,8,128], index: 5, kind: output, shape index: {}]
  %s6 = sld [smem:[#allocation0]]
  $region61: #{tpu_custom_call.1} parent=0
    _
  %s8 = ssub.s32 1, %s6
  %s9 = scalar_select 0, %s8, %s6
  $region1: #{tpu_custom_call.1} parent=0
    #allocation3 [shape = 'u8[294912]{0}', space=vmem, size = 0x48000, scoped, tag = 'input window, operand 2, single buffered']
    #allocation4 [shape = 's32[2]{0}', space=sflag, size = 0x8, scoped, tag = 'scoped memory for tpu_custom_call.1']
    #allocation5 [shape = 's32[2]{0}', space=sflag, size = 0x8, scoped, tag = 'scoped memory for tpu_custom_call.1']
    #allocation6 [shape = 'u8[32768]{0}', space=vmem, size = 0x8000, scoped, tag = 'input window, operand 3, single buffered']
    #allocation7 [shape = 's32[1]{0}', space=sflag, size = 0x4, scoped, tag = 'scoped memory for tpu_custom_call.1']
    #allocation8 [shape = 'u8[65536]{0}', space=vmem, size = 0x10000, scoped, tag = 'output window, operand 0']
    %10 = vsyncpa [#allocation4], 0
    %11 = vsyncpa [#allocation7], 0
    %12 = vsyncpa [#allocation5], 0
    %s13 = scalar_lea.sflag [#allocation5], 1
    %14 = vsyncpa %s13, 0
    loop: start=0, step=1, limit=4
    $region2: #{tpu_custom_call.1} parent=1 // loop_pre_header
      _
    $region3: #{tpu_custom_call.1} parent=1 // loop_header
      %s16 = sphi 0, %s20
      %p17 = scmp.ge.s32.totalorder %s16, 4
      %s23 = sphi 0, %s35
      %s24 = sphi 0, %s31
      %s25 = sphi 0, %s23
      %s26 = sphi 0, %s24
      %s27 = sphi 0, %s25
      %s28 = sphi 0, %s26
      %s38 = sphi 0, %s40
      %s41 = sphi 0, %s38
      %s42 = sphi 0, %s41
      %s58 = sphi 0, %s42
      %s62 = sphi 0, %s62
      %s64 = sphi 0, %s62
      %s65 = sphi 0, %s64
      %s79 = sphi 0, %s65
      %s83 = sphi 0, %s83
      %s85 = sphi 0, %s83
      %s86 = sphi 0, %s85
      %s100 = sphi 0, %s86
      %s104 = sphi 0, %s104
      %s106 = sphi 0, %s104
      %s107 = sphi 0, %s106
      %s121 = sphi 0, %s107
      %s125 = sphi 0, %s125
      %s127 = sphi 0, %s125
      %s128 = sphi 0, %s127
      %s142 = sphi 0, %s128
      %s150 = sphi 0, %s152
      %s153 = sphi 0, %s150
      %s154 = sphi 0, %s153
      %s170 = sphi 0, %s154
    $region4: #{tpu_custom_call.1} parent=1 // loop_header_branch
      %19 = sbr.rel (%p17) target = $region8
    $region5: #{tpu_custom_call.1} parent=1 // loop_body
      %s21 = ssub.s32 %s16, 1
      %s22 = ssub.s32 %s16, 2
      %s29 = sadd.s32 1, %s24
      %p30 = scmp.ge.s32.totalorder %s29, 1
      %s31 = scalar_select %p30, 0, %s29
      %s32 = sadd.s32 1, %s23
      %s33 = scalar_select %p30, %s32, %s23
      %p34 = scmp.ge.s32.totalorder %s33, 2
      %s35 = scalar_select %p34, 0, %s33
      %s36 = ssub.s32 %s23, %s35
      %p37 = scmp.eq.s32.totalorder %s36, 0
      %s39 = sadd.s32 %s38, 1
      %s40 = scalar_select %p37, %s38, %s39
      %p43 = pneg %p37
      %p44 = scmp.eq.s32.totalorder %s16, 1
      %p45 = por %p43, %p44
      %p46 = scmp.ne.s32.totalorder %s38, %s41
      %p47 = scmp.eq.s32.totalorder %s16, 0
      %p48 = por %p46, %p47
      %p49 = scmp.ne.s32.totalorder %s38, %s41
      %p50 = scmp.eq.s32.totalorder %s21, 1
      %p51 = por %p49, %p50
      %p52 = scmp.ne.s32.totalorder %s41, %s42
      %p53 = scmp.eq.s32.totalorder %s21, 0
      %p54 = por %p52, %p53
      %p55 = scmp.ne.s32.totalorder %s41, %s42
      %p56 = scmp.eq.s32.totalorder %s22, 1
      %p57 = por %p55, %p56
      %p59 = scmp.ne.s32.totalorder %s42, %s58
      %p60 = scmp.eq.s32.totalorder %s22, 0
      %p61 = por %p59, %p60
      %s63 = sadd.s32 %s62, 1
      %p66 = scmp.eq.s32.totalorder %s16, 1
      %p67 = scmp.ne.s32.totalorder %s62, %s64
      %p68 = scmp.eq.s32.totalorder %s16, 0
      %p69 = por %p67, %p68
      %p70 = scmp.ne.s32.totalorder %s62, %s64
      %p71 = scmp.eq.s32.totalorder %s21, 1
      %p72 = por %p70, %p71
      %p73 = scmp.ne.s32.totalorder %s64, %s65
      %p74 = scmp.eq.s32.totalorder %s21, 0
      %p75 = por %p73, %p74
      %p76 = scmp.ne.s32.totalorder %s64, %s65
      %p77 = scmp.eq.s32.totalorder %s22, 1
      %p78 = por %p76, %p77
      %p80 = scmp.ne.s32.totalorder %s65, %s79
      %p81 = scmp.eq.s32.totalorder %s22, 0
      %p82 = por %p80, %p81
      %s84 = sadd.s32 %s83, 1
      %p87 = scmp.eq.s32.totalorder %s16, 1
      %p88 = scmp.ne.s32.totalorder %s83, %s85
      %p89 = scmp.eq.s32.totalorder %s16, 0
      %p90 = por %p88, %p89
      %p91 = scmp.ne.s32.totalorder %s83, %s85
      %p92 = scmp.eq.s32.totalorder %s21, 1
      %p93 = por %p91, %p92
      %p94 = scmp.ne.s32.totalorder %s85, %s86
      %p95 = scmp.eq.s32.totalorder %s21, 0
      %p96 = por %p94, %p95
      %p97 = scmp.ne.s32.totalorder %s85, %s86
      %p98 = scmp.eq.s32.totalorder %s22, 1
      %p99 = por %p97, %p98
      %p101 = scmp.ne.s32.totalorder %s86, %s100
      %p102 = scmp.eq.s32.totalorder %s22, 0
      %p103 = por %p101, %p102
      %s105 = sadd.s32 %s104, 1
      %p108 = scmp.eq.s32.totalorder %s16, 1
      %p109 = scmp.ne.s32.totalorder %s104, %s106
      %p110 = scmp.eq.s32.totalorder %s16, 0
      %p111 = por %p109, %p110
      %p112 = scmp.ne.s32.totalorder %s104, %s106
      %p113 = scmp.eq.s32.totalorder %s21, 1
      %p114 = por %p112, %p113
      %p115 = scmp.ne.s32.totalorder %s106, %s107
      %p116 = scmp.eq.s32.totalorder %s21, 0
      %p117 = por %p115, %p116
      %p118 = scmp.ne.s32.totalorder %s106, %s107
      %p119 = scmp.eq.s32.totalorder %s22, 1
      %p120 = por %p118, %p119
      %p122 = scmp.ne.s32.totalorder %s107, %s121
      %p123 = scmp.eq.s32.totalorder %s22, 0
      %p124 = por %p122, %p123
      %s126 = sadd.s32 %s125, 1
      %p129 = scmp.eq.s32.totalorder %s16, 1
      %p130 = scmp.ne.s32.totalorder %s125, %s127
      %p131 = scmp.eq.s32.totalorder %s16, 0
      %p132 = por %p130, %p131
      %p133 = scmp.ne.s32.totalorder %s125, %s127
      %p134 = scmp.eq.s32.totalorder %s21, 1
      %p135 = por %p133, %p134
      %p136 = scmp.ne.s32.totalorder %s127, %s128
      %p137 = scmp.eq.s32.totalorder %s21, 0
      %p138 = por %p136, %p137
      %p139 = scmp.ne.s32.totalorder %s127, %s128
      %p140 = scmp.eq.s32.totalorder %s22, 1
      %p141 = por %p139, %p140
      %p143 = scmp.ne.s32.totalorder %s128, %s142
      %p144 = scmp.eq.s32.totalorder %s22, 0
      %p145 = por %p143, %p144
      %s146 = ssub.s32 %s23, %s35
      %s147 = ssub.s32 %s24, %s31
      %s148 = sor.u32 %s146, %s147
      %p149 = scmp.eq.s32.totalorder %s148, 0
      %s151 = sadd.s32 %s150, 1
      %s152 = scalar_select %p149, %s150, %s151
      %p155 = pneg %p149
      %p156 = scmp.eq.s32.totalorder %s16, 1
      %p157 = por %p155, %p156
      %p158 = scmp.ne.s32.totalorder %s150, %s153
      %p159 = scmp.eq.s32.totalorder %s16, 0
      %p160 = por %p158, %p159
      %p161 = scmp.ne.s32.totalorder %s150, %s153
      %p162 = scmp.eq.s32.totalorder %s21, 1
      %p163 = por %p161, %p162
      %p164 = scmp.ne.s32.totalorder %s153, %s154
      %p165 = scmp.eq.s32.totalorder %s21, 0
      %p166 = por %p164, %p165
      %p167 = scmp.ne.s32.totalorder %s153, %s154
      %p168 = scmp.eq.s32.totalorder %s22, 1
      %p169 = por %p167, %p168
      %p171 = scmp.ne.s32.totalorder %s154, %s170
      %p172 = scmp.eq.s32.totalorder %s22, 0
      %p173 = por %p171, %p172
      %p174 = scmp.le.s32.totalorder 1, %s16
      %p175 = scmp.lt.s32.totalorder %s16, 3
      %p176 = pnand %p174, %p175
      %p177 = pneg %p176
      // Predicated region
      $region9: #{tpu_custom_call.1} parent=5 // pred_check
        _
      $region10: #{tpu_custom_call.1} parent=5 // pred_check_branch
        %179 = sbr.rel (%p176) target = $region12
      $region11: #{tpu_custom_call.1} parent=5 // pred_region
        %s180 = ssub.s32 %s16, 1
        // Predicated region
        $region13: #{tpu_custom_call.1} parent=11 // pred_check
          %p181 = pneg %p75
        $region14: #{tpu_custom_call.1} parent=11 // pred_check_branch
          %183 = sbr.rel (%p181) target = $region16
        $region15: #{tpu_custom_call.1} parent=11 // pred_region
          _
        $region16: #{tpu_custom_call.1} parent=11 // pred_fallthru
          _
        // Predicated region
        $region17: #{tpu_custom_call.1} parent=11 // pred_check
          %p184 = pneg %p96
        $region18: #{tpu_custom_call.1} parent=11 // pred_check_branch
          %186 = sbr.rel (%p184) target = $region20
        $region19: #{tpu_custom_call.1} parent=11 // pred_region
          %s188 = ssub.s32 9216, 9216
          %189 = vsyncadd [#allocation4], %s188
          %s190 = sshll.u32 [#allocation3], 4
          %s191 = int_to_ptr.vmem [resolvable:$true] %s190
          %196 = dma.hbm_to_vmem [thread:$0]  %s2, 9216, %s191, [#allocation4], 64, 64, 4
        $region20: #{tpu_custom_call.1} parent=11 // pred_fallthru
          _
        // Predicated region
        $region21: #{tpu_custom_call.1} parent=11 // pred_check
          %p197 = pneg %p117
        $region22: #{tpu_custom_call.1} parent=11 // pred_check_branch
          %199 = sbr.rel (%p197) target = $region24
        $region23: #{tpu_custom_call.1} parent=11 // pred_region
          %s201 = ssub.s32 1024, 1024
          %202 = vsyncadd [#allocation7], %s201
          %s203 = sshll.u32 [#allocation6], 4
          %s204 = int_to_ptr.vmem [resolvable:$true] %s203
          %209 = dma.hbm_to_vmem [thread:$0]  %s3, 1024, %s204, [#allocation7], 64, 64, 4
        $region24: #{tpu_custom_call.1} parent=11 // pred_fallthru
          _
        // Predicated region
        $region25: #{tpu_custom_call.1} parent=11 // pred_check
          %p210 = pneg %p138
        $region26: #{tpu_custom_call.1} parent=11 // pred_check_branch
          %212 = sbr.rel (%p210) target = $region28
        $region27: #{tpu_custom_call.1} parent=11 // pred_region
          _
        $region28: #{tpu_custom_call.1} parent=11 // pred_fallthru
          _
      $region12: #{tpu_custom_call.1} parent=5 // pred_fallthru
        _
      %p213 = scmp.lt.s32.totalorder %s16, 2
      // Predicated region
      $region29: #{tpu_custom_call.1} parent=5 // pred_check
        %p214 = pneg %p213
      $region30: #{tpu_custom_call.1} parent=5 // pred_check_branch
        %216 = sbr.rel (%p214) target = $region32
      $region31: #{tpu_custom_call.1} parent=5 // pred_region
        // Predicated region
        $region33: #{tpu_custom_call.1} parent=31 // pred_check
          %p217 = pneg %p48
        $region34: #{tpu_custom_call.1} parent=31 // pred_check_branch
          %219 = sbr.rel (%p217) target = $region36
        $region35: #{tpu_custom_call.1} parent=31 // pred_region
          %p220 = scmp.lt.s32.totalorder %s23, 1
          %s221 = scalar_select %p220, %s23, 1
          %s222 = smul.addr %s221, 22
          %s223 = smul.addr %s222, 4
          %s224 = scalar_lea.vmem %s0, %s223
        $region36: #{tpu_custom_call.1} parent=31 // pred_fallthru
          _
      $region32: #{tpu_custom_call.1} parent=5 // pred_fallthru
        _
      %p225 = scmp.le.s32.totalorder 1, %s16
      %p226 = scmp.lt.s32.totalorder %s16, 3
      %p227 = pnand %p225, %p226
      %p228 = pneg %p227
      // Predicated region
      $region37: #{tpu_custom_call.1} parent=5 // pred_check
        _
      $region38: #{tpu_custom_call.1} parent=5 // pred_check_branch
        %230 = sbr.rel (%p227) target = $region40
      $region39: #{tpu_custom_call.1} parent=5 // pred_region
        %s231 = ssub.s32 %s16, 1
        // Predicated region
        $region41: #{tpu_custom_call.1} parent=39 // pred_check
          %p232 = pneg %p96
        $region42: #{tpu_custom_call.1} parent=39 // pred_check_branch
          %234 = sbr.rel (%p232) target = $region44
        $region43: #{tpu_custom_call.1} parent=39 // pred_region
          %235 = dma.done [#allocation4], 9216
        $region44: #{tpu_custom_call.1} parent=39 // pred_fallthru
          _
        // Predicated region
        $region45: #{tpu_custom_call.1} parent=39 // pred_check
          %p236 = pneg %p117
        $region46: #{tpu_custom_call.1} parent=39 // pred_check_branch
          %238 = sbr.rel (%p236) target = $region48
        $region47: #{tpu_custom_call.1} parent=39 // pred_region
          %239 = dma.done [#allocation7], 1024
        $region48: #{tpu_custom_call.1} parent=39 // pred_fallthru
          _
        %p240 = scmp.lt.s32.totalorder %s25, 1
        %s241 = scalar_select %p240, %s25, 1
        %s242 = smul.addr %s241, 22
        %s243 = smul.addr %s242, 4
        %s244 = scalar_lea.vmem %s0, %s243
        %p245 = pneg %p54
        %p246 = pneg %p51
        %p247 = pneg %p75
        %p248 = pneg %p72
        %p249 = pneg %p96
        %p250 = pneg %p93
        %p251 = pneg %p117
        %p252 = pneg %p114
        %p253 = pneg %p138
        %p254 = pneg %p135
        %p255 = pneg %p166
        %p256 = pneg %p163
        %s257 = sand.u32 %s153, 1
        %s258 = scalar_lea.sflag [#allocation5], %s257
        %s259 = sand.u32 %s153, 1
        %s260 = smul.addr %s259, 64
        %s261 = scalar_lea.vmem [#allocation8], %s260
        %p262 = scmp.lt.s32.totalorder %s25, 1
        %s263 = scalar_select %p262, %s25, 1
        %s264 = smul.addr %s263, 22
        %s265 = smul.addr %s264, 4
        %s266 = scalar_lea.vmem %s0, %s265
        %s267 = smul.u32 8, %s26
        %s269 = smul.u32 %s26, 8
        %s270 = smul.u32 %s269, 2
        %s271 = smul.addr %s270, 4
        %s272 = scalar_lea.vmem %s266, %s271
        %v273 = vld [vmem:[%s272] sm:$0xf]
        %v274 = vld [vmem:[%s272 + $0x8] sm:$0xf]
        %v275 = vld [vmem:[%s272 + $0x10] sm:$0xf]
        %v276 = vld [vmem:[%s272 + $0x18] sm:$0xf]
        %v277 = vld [vmem:[%s272 + $0x20] sm:$0xf]
        %v278 = vld [vmem:[%s272 + $0x28] sm:$0xf]
        %v279 = vld [vmem:[%s272 + $0x30] sm:$0xf]
        %v280 = vld [vmem:[%s272 + $0x38] sm:$0xf]
        %v281 = vld [vmem:[%s272 + $0x40] sm:$0xf]
        %v282 = vld [vmem:[%s272 + $0x48] sm:$0xf]
        %v283 = vld [vmem:[%s1] sm:$0xf]
        %v284 = vld [vmem:[%s1 + $0x4] sm:$0xf]
        %v285 = vld [vmem:[%s1 + $0x8] sm:$0xf]
        %v286 = vld [vmem:[%s1 + $0xc] sm:$0xf]
        %v287 = vld [vmem:[%s1 + $0x10] sm:$0xf]
        %v288 = vld [vmem:[%s1 + $0x14] sm:$0xf]
        %v289 = vld [vmem:[%s1 + $0x18] sm:$0xf]
        %v290 = vld [vmem:[%s1 + $0x1c] sm:$0xf]
        %v291 = vld [vmem:[%s1 + $0x20] sm:$0xf]
        %v292 = vld [vmem:[%s1 + $0x24] sm:$0xf]
        %v293 = vld [vmem:[%s1 + $0x28] sm:$0xf]
        %v294 = vld [vmem:[%s1 + $0x2c] sm:$0xf]
        %v295 = vld [vmem:[%s1 + $0x30] sm:$0xf]
        %v296 = vld [vmem:[%s1 + $0x34] sm:$0xf]
        %v297 = vld [vmem:[%s1 + $0x38] sm:$0xf]
        %v298 = vld [vmem:[%s1 + $0x3c] sm:$0xf]
        %v299 = vld [vmem:[%s272 + $0x4] sm:$0x1]
        %v300 = vld [vmem:[%s272 + $0xc] sm:$0x1]
        %v301 = vld [vmem:[%s272 + $0x14] sm:$0x1]
        %v302 = vld [vmem:[%s272 + $0x1c] sm:$0x1]
        %v303 = vld [vmem:[%s272 + $0x24] sm:$0x1]
        %v304 = vld [vmem:[%s272 + $0x2c] sm:$0x1]
        %v305 = vld [vmem:[%s272 + $0x34] sm:$0x1]
        %v306 = vld [vmem:[%s272 + $0x3c] sm:$0x1]
        %v307 = vld [vmem:[%s272 + $0x44] sm:$0x1]
        %v308 = vld [vmem:[%s272 + $0x4c] sm:$0x1]
        %vm309 = vsmask.f32 3328
        %vm310 = vsmask.f32 7440
        %vm311 = vmor %vm309, %vm310
        %v313 = vshrl.u32 %v273, 16
        %v315 = vrot.slane %v313, 4
        %v316 = vshll.u32 %v273, 16
        %v318 = vrot.slane %v316, 5
        %v319 = vor.u32 %v315, %v318
        %v320 = vrot.slane %v319, 4
        %v322 = vshll.u32 %v299, 16
        %v324 = vrot.slane %v322, 5
        %v325 = vsel %vm311, %v320, %v324
        %v327 = vshrl.u32 %v274, 16
        %v329 = vrot.slane %v327, 4
        %v330 = vshll.u32 %v274, 16
        %v332 = vrot.slane %v330, 5
        %v333 = vor.u32 %v329, %v332
        %v334 = vrot.slane %v333, 4
        %v336 = vshll.u32 %v300, 16
        %v338 = vrot.slane %v336, 5
        %v339 = vsel %vm311, %v334, %v338
        %v341 = vshrl.u32 %v275, 16
        %v343 = vrot.slane %v341, 4
        %v344 = vshll.u32 %v275, 16
        %v346 = vrot.slane %v344, 5
        %v347 = vor.u32 %v343, %v346
        %v348 = vrot.slane %v347, 4
        %v350 = vshll.u32 %v301, 16
        %v352 = vrot.slane %v350, 5
        %v353 = vsel %vm311, %v348, %v352
        %v355 = vshrl.u32 %v276, 16
        %v357 = vrot.slane %v355, 4
        %v358 = vshll.u32 %v276, 16
        %v360 = vrot.slane %v358, 5
        %v361 = vor.u32 %v357, %v360
        %v362 = vrot.slane %v361, 4
        %v364 = vshll.u32 %v302, 16
        %v366 = vrot.slane %v364, 5
        %v367 = vsel %vm311, %v362, %v366
        %v369 = vshrl.u32 %v277, 16
        %v371 = vrot.slane %v369, 4
        %v372 = vshll.u32 %v277, 16
        %v374 = vrot.slane %v372, 5
        %v375 = vor.u32 %v371, %v374
        %v376 = vrot.slane %v375, 4
        %v378 = vshll.u32 %v303, 16
        %v380 = vrot.slane %v378, 5
        %v381 = vsel %vm311, %v376, %v380
        %v383 = vshrl.u32 %v278, 16
        %v385 = vrot.slane %v383, 4
        %v386 = vshll.u32 %v278, 16
        %v388 = vrot.slane %v386, 5
        %v389 = vor.u32 %v385, %v388
        %v390 = vrot.slane %v389, 4
        %v392 = vshll.u32 %v304, 16
        %v394 = vrot.slane %v392, 5
        %v395 = vsel %vm311, %v390, %v394
        %v397 = vshrl.u32 %v279, 16
        %v399 = vrot.slane %v397, 4
        %v400 = vshll.u32 %v279, 16
        %v402 = vrot.slane %v400, 5
        %v403 = vor.u32 %v399, %v402
        %v404 = vrot.slane %v403, 4
        %v406 = vshll.u32 %v305, 16
        %v408 = vrot.slane %v406, 5
        %v409 = vsel %vm311, %v404, %v408
        %v411 = vshrl.u32 %v280, 16
        %v413 = vrot.slane %v411, 4
        %v414 = vshll.u32 %v280, 16
        %v416 = vrot.slane %v414, 5
        %v417 = vor.u32 %v413, %v416
        %v418 = vrot.slane %v417, 4
        %v420 = vshll.u32 %v306, 16
        %v422 = vrot.slane %v420, 5
        %v423 = vsel %vm311, %v418, %v422
        %v425 = vshrl.u32 %v281, 16
        %v427 = vrot.slane %v425, 4
        %v428 = vshll.u32 %v281, 16
        %v430 = vrot.slane %v428, 5
        %v431 = vor.u32 %v427, %v430
        %v432 = vrot.slane %v431, 4
        %v434 = vshll.u32 %v307, 16
        %v436 = vrot.slane %v434, 5
        %v437 = vsel %vm311, %v432, %v436
        %v439 = vshrl.u32 %v282, 16
        %v441 = vrot.slane %v439, 4
        %v442 = vshll.u32 %v282, 16
        %v444 = vrot.slane %v442, 5
        %v445 = vor.u32 %v441, %v444
        %v446 = vrot.slane %v445, 4
        %v448 = vshll.u32 %v308, 16
        %v450 = vrot.slane %v448, 5
        %v451 = vsel %vm311, %v446, %v450
        %s452 = scalar_lea.vmem %s1, 64
        %v453 = vld [vmem:[%s452] sm:$0xf]
        %v454 = vld [vmem:[%s452 + $0x4] sm:$0xf]
        %v455 = vld [vmem:[%s452 + $0x8] sm:$0xf]
        %v456 = vld [vmem:[%s452 + $0xc] sm:$0xf]
        %v457 = vld [vmem:[%s452 + $0x10] sm:$0xf]
        %v458 = vld [vmem:[%s452 + $0x14] sm:$0xf]
        %v459 = vld [vmem:[%s452 + $0x18] sm:$0xf]
        %v460 = vld [vmem:[%s452 + $0x1c] sm:$0xf]
        %v461 = vld [vmem:[%s452 + $0x20] sm:$0xf]
        %v462 = vld [vmem:[%s452 + $0x24] sm:$0xf]
        %v463 = vld [vmem:[%s452 + $0x28] sm:$0xf]
        %v464 = vld [vmem:[%s452 + $0x2c] sm:$0xf]
        %v465 = vld [vmem:[%s452 + $0x30] sm:$0xf]
        %v466 = vld [vmem:[%s452 + $0x34] sm:$0xf]
        %v467 = vld [vmem:[%s452 + $0x38] sm:$0xf]
        %v468 = vld [vmem:[%s452 + $0x3c] sm:$0xf]
        %v469 = vunpack.c.l.b16 %v325
        %v470 = vunpack.c.l.b16 %v339
        %v471 = vunpack.c.l.b16 %v353
        %v472 = vunpack.c.l.b16 %v367
        %v473 = vunpack.c.l.b16 %v381
        %v474 = vunpack.c.l.b16 %v395
        %v475 = vunpack.c.l.b16 %v409
        %v476 = vunpack.c.l.b16 %v423
        %v477 = vunpack.c.l.b16 %v437
        %v478 = vunpack.c.l.b16 %v451
        %v479 = vpack.c.b16 %v470, %v469
        %v480 = vpack.c.b16 %v472, %v471
        %v481 = vpack.c.b16 %v474, %v473
        %v482 = vpack.c.b16 %v476, %v475
        %v483 = vpack.c.b16 %v478, %v477
        %v505 = vunpack.c.l.b16 %v453
        %v506 = vunpack.c.l.b16 %v454
        %v507 = vunpack.c.l.b16 %v455
        %v508 = vunpack.c.l.b16 %v456
        %v509 = vunpack.c.l.b16 %v457
        %v510 = vunpack.c.l.b16 %v458
        %v511 = vunpack.c.l.b16 %v459
        %v512 = vunpack.c.l.b16 %v460
        %v513 = vunpack.c.l.b16 %v461
        %v514 = vunpack.c.l.b16 %v462
        %v515 = vunpack.c.l.b16 %v463
        %v516 = vunpack.c.l.b16 %v464
        %v517 = vunpack.c.l.b16 %v465
        %v518 = vunpack.c.l.b16 %v466
        %v519 = vunpack.c.l.b16 %v467
        %v520 = vunpack.c.l.b16 %v468
        %v521 = vpack.c.b16 %v506, %v505
        %v522 = vpack.c.b16 %v508, %v507
        %v523 = vpack.c.b16 %v510, %v509
        %v524 = vpack.c.b16 %v512, %v511
        %v525 = vpack.c.b16 %v514, %v513
        %v526 = vpack.c.b16 %v516, %v515
        %v527 = vpack.c.b16 %v518, %v517
        %v528 = vpack.c.b16 %v520, %v519
        %537 = vmatprep.subr.bf16.mxu0 0
        %538 = vmatpush1.bf16.msra.mxu0 %v521
        %539 = vmatprep.subr.bf16.mxu0 0
        %540 = vmatpush1.bf16.msra.mxu0 %v522
        %541 = vmatprep.subr.bf16.mxu0 0
        %542 = vmatpush1.bf16.msra.mxu0 %v523
        %543 = vmatprep.subr.bf16.mxu0 0
        %544 = vmatpush1.bf16.msra.mxu0 %v524
        %545 = vmatprep.subr.bf16.mxu0 0
        %546 = vmatpush1.bf16.msra.mxu0 %v525
        %547 = vmatprep.subr.bf16.mxu0 0
        %548 = vmatpush1.bf16.msra.mxu0 %v526
        %549 = vmatprep.subr.bf16.mxu0 0
        %550 = vmatpush1.bf16.msra.mxu0 %v527
        %551 = vmatprep.subr.bf16.mxu0 0
        %552 = vmatpush1.bf16.msra.mxu0 %v528
        %553 = vmatprep.subr.bf16.mxu0 0
        %554 = vmatpush1.bf16.msra.mxu0 0
        %555 = vmatprep.subr.bf16.mxu0 0
        %556 = vmatpush1.bf16.msra.mxu0 0
        %557 = vmatprep.subr.bf16.mxu0 0
        %558 = vmatpush1.bf16.msra.mxu0 0
        %559 = vmatprep.subr.bf16.mxu0 0
        %560 = vmatpush1.bf16.msra.mxu0 0
        %561 = vmatprep.subr.bf16.mxu0 0
        %562 = vmatpush1.bf16.msra.mxu0 0
        %563 = vmatprep.subr.bf16.mxu0 0
        %564 = vmatpush1.bf16.msra.mxu0 0
        %565 = vmatprep.subr.bf16.mxu0 0
        %566 = vmatpush1.bf16.msra.mxu0 0
        %567 = vmatprep.subr.bf16.mxu0 0
        %568 = vmatpush1.bf16.msra.mxu0 0
        %569 = vmatprep.mubr.bf16.mxu0 0
        %570 = vmatmul.mubr.bf16.gmra.mrb[0].mxu0 %v479
        %v571 = vpop.f32.mrb[0].mxu0
        %v572 = vadd.f32 0.0, %v571
        %v573 = vpop.f32.mrb[0].mxu0
        %v574 = vpop.f32.mrb[0].mxu0
        %v575 = vadd.f32 0.0, %v574
        %v576 = vpop.f32.mrb[0].mxu0
        %577 = vmatprep.mubr.bf16.mxu0 0
        %578 = vmatmul.mubr.bf16.gmra.mrb[0].mxu0 %v480
        %v579 = vpop.f32.mrb[0].mxu0
        %v580 = vadd.f32 0.0, %v579
        %v581 = vpop.f32.mrb[0].mxu0
        %v582 = vpop.f32.mrb[0].mxu0
        %v583 = vadd.f32 0.0, %v582
        %v584 = vpop.f32.mrb[0].mxu0
        %585 = vmatprep.mubr.bf16.mxu0 0
        %586 = vmatmul.mubr.bf16.gmra.mrb[0].mxu0 %v481
        %v587 = vpop.f32.mrb[0].mxu0
        %v588 = vadd.f32 0.0, %v587
        %v589 = vpop.f32.mrb[0].mxu0
        %v590 = vpop.f32.mrb[0].mxu0
        %v591 = vadd.f32 0.0, %v590
        %v592 = vpop.f32.mrb[0].mxu0
        %593 = vmatprep.mubr.bf16.mxu0 0
        %594 = vmatmul.mubr.bf16.gmra.mrb[0].mxu0 %v482
        %v595 = vpop.f32.mrb[0].mxu0
        %v596 = vadd.f32 0.0, %v595
        %v597 = vpop.f32.mrb[0].mxu0
        %v598 = vpop.f32.mrb[0].mxu0
        %v599 = vadd.f32 0.0, %v598
        %v600 = vpop.f32.mrb[0].mxu0
        %601 = vmatprep.mubr.bf16.mxu0 0
        %602 = vmatmul.mubr.bf16.gmra.mrb[0].mxu0 %v483
        %v603 = vpop.f32.mrb[0].mxu0
        %v604 = vadd.f32 0.0, %v603
        %v605 = vpop.f32.mrb[0].mxu0
        %v606 = vpop.f32.mrb[0].mxu0
        %v607 = vadd.f32 0.0, %v606
        %v608 = vpop.f32.mrb[0].mxu0
        %609 = vdwg.mxu0
        %v620 = vunpack.c.l.b16 %v273
        %v621 = vunpack.c.l.b16 %v274
        %v622 = vunpack.c.l.b16 %v275
        %v623 = vunpack.c.l.b16 %v276
        %v624 = vunpack.c.l.b16 %v277
        %v625 = vunpack.c.l.b16 %v278
        %v626 = vunpack.c.l.b16 %v279
        %v627 = vunpack.c.l.b16 %v280
        %v628 = vunpack.c.l.b16 %v281
        %v629 = vunpack.c.l.b16 %v282
        %v630 = vpack.c.b16 %v621, %v620
        %v631 = vpack.c.b16 %v623, %v622
        %v632 = vpack.c.b16 %v625, %v624
        %v633 = vpack.c.b16 %v627, %v626
        %v634 = vpack.c.b16 %v629, %v628
        %v656 = vunpack.c.l.b16 %v283
        %v657 = vunpack.c.l.b16 %v284
        %v658 = vunpack.c.l.b16 %v285
        %v659 = vunpack.c.l.b16 %v286
        %v660 = vunpack.c.l.b16 %v287
        %v661 = vunpack.c.l.b16 %v288
        %v662 = vunpack.c.l.b16 %v289
        %v663 = vunpack.c.l.b16 %v290
        %v664 = vunpack.c.l.b16 %v291
        %v665 = vunpack.c.l.b16 %v292
        %v666 = vunpack.c.l.b16 %v293
        %v667 = vunpack.c.l.b16 %v294
        %v668 = vunpack.c.l.b16 %v295
        %v669 = vunpack.c.l.b16 %v296
        %v670 = vunpack.c.l.b16 %v297
        %v671 = vunpack.c.l.b16 %v298
        %v672 = vpack.c.b16 %v657, %v656
        %v673 = vpack.c.b16 %v659, %v658
        %v674 = vpack.c.b16 %v661, %v660
        %v675 = vpack.c.b16 %v663, %v662
        %v676 = vpack.c.b16 %v665, %v664
        %v677 = vpack.c.b16 %v667, %v666
        %v678 = vpack.c.b16 %v669, %v668
        %v679 = vpack.c.b16 %v671, %v670
        %688 = vmatprep.subr.bf16.mxu0 0
        %689 = vmatpush1.bf16.msra.mxu0 %v672
        %690 = vmatprep.subr.bf16.mxu0 0
        %691 = vmatpush1.bf16.msra.mxu0 %v673
        %692 = vmatprep.subr.bf16.mxu0 0
        %693 = vmatpush1.bf16.msra.mxu0 %v674
        %694 = vmatprep.subr.bf16.mxu0 0
        %695 = vmatpush1.bf16.msra.mxu0 %v675
        %696 = vmatprep.subr.bf16.mxu0 0
        %697 = vmatpush1.bf16.msra.mxu0 %v676
        %698 = vmatprep.subr.bf16.mxu0 0
        %699 = vmatpush1.bf16.msra.mxu0 %v677
        %700 = vmatprep.subr.bf16.mxu0 0
        %701 = vmatpush1.bf16.msra.mxu0 %v678
        %702 = vmatprep.subr.bf16.mxu0 0
        %703 = vmatpush1.bf16.msra.mxu0 %v679
        %704 = vmatprep.subr.bf16.mxu0 0
        %705 = vmatpush1.bf16.msra.mxu0 0
        %706 = vmatprep.subr.bf16.mxu0 0
        %707 = vmatpush1.bf16.msra.mxu0 0
        %708 = vmatprep.subr.bf16.mxu0 0
        %709 = vmatpush1.bf16.msra.mxu0 0
        %710 = vmatprep.subr.bf16.mxu0 0
        %711 = vmatpush1.bf16.msra.mxu0 0
        %712 = vmatprep.subr.bf16.mxu0 0
        %713 = vmatpush1.bf16.msra.mxu0 0
        %714 = vmatprep.subr.bf16.mxu0 0
        %715 = vmatpush1.bf16.msra.mxu0 0
        %716 = vmatprep.subr.bf16.mxu0 0
        %717 = vmatpush1.bf16.msra.mxu0 0
        %718 = vmatprep.subr.bf16.mxu0 0
        %719 = vmatpush1.bf16.msra.mxu0 0
        %720 = vmatprep.mubr.bf16.mxu0 0
        %721 = vmatmul.mubr.bf16.gmra.mrb[0].mxu0 %v630
        %v722 = vpop.f32.mrb[0].mxu0
        %v723 = vadd.f32 %v572, %v722
        %v724 = vpop.f32.mrb[0].mxu0
        %v725 = vpop.f32.mrb[0].mxu0
        %v726 = vadd.f32 %v575, %v725
        %v727 = vpop.f32.mrb[0].mxu0
        %728 = vmatprep.mubr.bf16.mxu0 0
        %729 = vmatmul.mubr.bf16.gmra.mrb[0].mxu0 %v631
        %v730 = vpop.f32.mrb[0].mxu0
        %v731 = vadd.f32 %v580, %v730
        %v732 = vpop.f32.mrb[0].mxu0
        %v733 = vpop.f32.mrb[0].mxu0
        %v734 = vadd.f32 %v583, %v733
        %v735 = vpop.f32.mrb[0].mxu0
        %736 = vmatprep.mubr.bf16.mxu0 0
        %737 = vmatmul.mubr.bf16.gmra.mrb[0].mxu0 %v632
        %v738 = vpop.f32.mrb[0].mxu0
        %v739 = vadd.f32 %v588, %v738
        %v740 = vpop.f32.mrb[0].mxu0
        %v741 = vpop.f32.mrb[0].mxu0
        %v742 = vadd.f32 %v591, %v741
        %v743 = vpop.f32.mrb[0].mxu0
        %744 = vmatprep.mubr.bf16.mxu0 0
        %745 = vmatmul.mubr.bf16.gmra.mrb[0].mxu0 %v633
        %v746 = vpop.f32.mrb[0].mxu0
        %v747 = vadd.f32 %v596, %v746
        %v748 = vpop.f32.mrb[0].mxu0
        %v749 = vpop.f32.mrb[0].mxu0
        %v750 = vadd.f32 %v599, %v749
        %v751 = vpop.f32.mrb[0].mxu0
        %752 = vmatprep.mubr.bf16.mxu0 0
        %753 = vmatmul.mubr.bf16.gmra.mrb[0].mxu0 %v634
        %v754 = vpop.f32.mrb[0].mxu0
        %v755 = vadd.f32 %v604, %v754
        %v756 = vpop.f32.mrb[0].mxu0
        %v757 = vpop.f32.mrb[0].mxu0
        %v758 = vadd.f32 %v607, %v757
        %v759 = vpop.f32.mrb[0].mxu0
        %760 = vdwg.mxu0
        %s761 = sadd.s32 %s269, 1
        %s762 = smul.u32 %s761, 2
        %s763 = smul.addr %s762, 4
        %s764 = scalar_lea.vmem %s266, %s763
        %v765 = vld [vmem:[%s764] sm:$0xf]
        %v766 = vld [vmem:[%s764 + $0x8] sm:$0xf]
        %v767 = vld [vmem:[%s764 + $0x10] sm:$0xf]
        %v768 = vld [vmem:[%s764 + $0x18] sm:$0xf]
        %v769 = vld [vmem:[%s764 + $0x20] sm:$0xf]
        %v770 = vld [vmem:[%s764 + $0x28] sm:$0xf]
        %v771 = vld [vmem:[%s764 + $0x30] sm:$0xf]
        %v772 = vld [vmem:[%s764 + $0x38] sm:$0xf]
        %v773 = vld [vmem:[%s764 + $0x40] sm:$0xf]
        %v774 = vld [vmem:[%s764 + $0x48] sm:$0xf]
        %s775 = scalar_lea.vmem %s1, 128
        %v776 = vld [vmem:[%s775] sm:$0xf]
        %v777 = vld [vmem:[%s775 + $0x4] sm:$0xf]
        %v778 = vld [vmem:[%s775 + $0x8] sm:$0xf]
        %v779 = vld [vmem:[%s775 + $0xc] sm:$0xf]
        %v780 = vld [vmem:[%s775 + $0x10] sm:$0xf]
        %v781 = vld [vmem:[%s775 + $0x14] sm:$0xf]
        %v782 = vld [vmem:[%s775 + $0x18] sm:$0xf]
        %v783 = vld [vmem:[%s775 + $0x1c] sm:$0xf]
        %v784 = vld [vmem:[%s775 + $0x20] sm:$0xf]
        %v785 = vld [vmem:[%s775 + $0x24] sm:$0xf]
        %v786 = vld [vmem:[%s775 + $0x28] sm:$0xf]
        %v787 = vld [vmem:[%s775 + $0x2c] sm:$0xf]
        %v788 = vld [vmem:[%s775 + $0x30] sm:$0xf]
        %v789 = vld [vmem:[%s775 + $0x34] sm:$0xf]
        %v790 = vld [vmem:[%s775 + $0x38] sm:$0xf]
        %v791 = vld [vmem:[%s775 + $0x3c] sm:$0xf]
        %v802 = vunpack.c.l.b16 %v765
        %v803 = vunpack.c.l.b16 %v766
        %v804 = vunpack.c.l.b16 %v767
        %v805 = vunpack.c.l.b16 %v768
        %v806 = vunpack.c.l.b16 %v769
        %v807 = vunpack.c.l.b16 %v770
        %v808 = vunpack.c.l.b16 %v771
        %v809 = vunpack.c.l.b16 %v772
        %v810 = vunpack.c.l.b16 %v773
        %v811 = vunpack.c.l.b16 %v774
        %v812 = vpack.c.b16 %v803, %v802
        %v813 = vpack.c.b16 %v805, %v804
        %v814 = vpack.c.b16 %v807, %v806
        %v815 = vpack.c.b16 %v809, %v808
        %v816 = vpack.c.b16 %v811, %v810
        %v838 = vunpack.c.l.b16 %v776
        %v839 = vunpack.c.l.b16 %v777
        %v840 = vunpack.c.l.b16 %v778
        %v841 = vunpack.c.l.b16 %v779
        %v842 = vunpack.c.l.b16 %v780
        %v843 = vunpack.c.l.b16 %v781
        %v844 = vunpack.c.l.b16 %v782
        %v845 = vunpack.c.l.b16 %v783
        %v846 = vunpack.c.l.b16 %v784
        %v847 = vunpack.c.l.b16 %v785
        %v848 = vunpack.c.l.b16 %v786
        %v849 = vunpack.c.l.b16 %v787
        %v850 = vunpack.c.l.b16 %v788
        %v851 = vunpack.c.l.b16 %v789
        %v852 = vunpack.c.l.b16 %v790
        %v853 = vunpack.c.l.b16 %v791
        %v854 = vpack.c.b16 %v839, %v838
        %v855 = vpack.c.b16 %v841, %v840
        %v856 = vpack.c.b16 %v843, %v842
        %v857 = vpack.c.b16 %v845, %v844
        %v858 = vpack.c.b16 %v847, %v846
        %v859 = vpack.c.b16 %v849, %v848
        %v860 = vpack.c.b16 %v851, %v850
        %v861 = vpack.c.b16 %v853, %v852
        %870 = vmatprep.subr.bf16.mxu0 0
        %871 = vmatpush1.bf16.msra.mxu0 %v854
        %872 = vmatprep.subr.bf16.mxu0 0
        %873 = vmatpush1.bf16.msra.mxu0 %v855
        %874 = vmatprep.subr.bf16.mxu0 0
        %875 = vmatpush1.bf16.msra.mxu0 %v856
        %876 = vmatprep.subr.bf16.mxu0 0
        %877 = vmatpush1.bf16.msra.mxu0 %v857
        %878 = vmatprep.subr.bf16.mxu0 0
        %879 = vmatpush1.bf16.msra.mxu0 %v858
        %880 = vmatprep.subr.bf16.mxu0 0
        %881 = vmatpush1.bf16.msra.mxu0 %v859
        %882 = vmatprep.subr.bf16.mxu0 0
        %883 = vmatpush1.bf16.msra.mxu0 %v860
        %884 = vmatprep.subr.bf16.mxu0 0
        %885 = vmatpush1.bf16.msra.mxu0 %v861
        %886 = vmatprep.subr.bf16.mxu0 0
        %887 = vmatpush1.bf16.msra.mxu0 0
        %888 = vmatprep.subr.bf16.mxu0 0
        %889 = vmatpush1.bf16.msra.mxu0 0
        %890 = vmatprep.subr.bf16.mxu0 0
        %891 = vmatpush1.bf16.msra.mxu0 0
        %892 = vmatprep.subr.bf16.mxu0 0
        %893 = vmatpush1.bf16.msra.mxu0 0
        %894 = vmatprep.subr.bf16.mxu0 0
        %895 = vmatpush1.bf16.msra.mxu0 0
        %896 = vmatprep.subr.bf16.mxu0 0
        %897 = vmatpush1.bf16.msra.mxu0 0
        %898 = vmatprep.subr.bf16.mxu0 0
        %899 = vmatpush1.bf16.msra.mxu0 0
        %900 = vmatprep.subr.bf16.mxu0 0
        %901 = vmatpush1.bf16.msra.mxu0 0
        %902 = vmatprep.mubr.bf16.mxu0 0
        %903 = vmatmul.mubr.bf16.gmra.mrb[0].mxu0 %v812
        %v904 = vpop.f32.mrb[0].mxu0
        %v905 = vadd.f32 0.0, %v904
        %v906 = vpop.f32.mrb[0].mxu0
        %v907 = vpop.f32.mrb[0].mxu0
        %v908 = vadd.f32 0.0, %v907
        %v909 = vpop.f32.mrb[0].mxu0
        %910 = vmatprep.mubr.bf16.mxu0 0
        %911 = vmatmul.mubr.bf16.gmra.mrb[0].mxu0 %v813
        %v912 = vpop.f32.mrb[0].mxu0
        %v913 = vadd.f32 0.0, %v912
        %v914 = vpop.f32.mrb[0].mxu0
        %v915 = vpop.f32.mrb[0].mxu0
        %v916 = vadd.f32 0.0, %v915
        %v917 = vpop.f32.mrb[0].mxu0
        %918 = vmatprep.mubr.bf16.mxu0 0
        %919 = vmatmul.mubr.bf16.gmra.mrb[0].mxu0 %v814
        %v920 = vpop.f32.mrb[0].mxu0
        %v921 = vadd.f32 0.0, %v920
        %v922 = vpop.f32.mrb[0].mxu0
        %v923 = vpop.f32.mrb[0].mxu0
        %v924 = vadd.f32 0.0, %v923
        %v925 = vpop.f32.mrb[0].mxu0
        %926 = vmatprep.mubr.bf16.mxu0 0
        %927 = vmatmul.mubr.bf16.gmra.mrb[0].mxu0 %v815
        %v928 = vpop.f32.mrb[0].mxu0
        %v929 = vadd.f32 0.0, %v928
        %v930 = vpop.f32.mrb[0].mxu0
        %v931 = vpop.f32.mrb[0].mxu0
        %v932 = vadd.f32 0.0, %v931
        %v933 = vpop.f32.mrb[0].mxu0
        %934 = vmatprep.mubr.bf16.mxu0 0
        %935 = vmatmul.mubr.bf16.gmra.mrb[0].mxu0 %v816
        %v936 = vpop.f32.mrb[0].mxu0
        %v937 = vadd.f32 0.0, %v936
        %v938 = vpop.f32.mrb[0].mxu0
        %v939 = vpop.f32.mrb[0].mxu0
        %v940 = vadd.f32 0.0, %v939
        %v941 = vpop.f32.mrb[0].mxu0
        %942 = vdwg.mxu0
        %v943 = vadd.f32 %v723, %v905
        %v944 = vadd.f32 %v726, %v908
        %v945 = vadd.f32 %v731, %v913
        %v946 = vadd.f32 %v734, %v916
        %v947 = vadd.f32 %v739, %v921
        %v948 = vadd.f32 %v742, %v924
        %v949 = vadd.f32 %v747, %v929
        %v950 = vadd.f32 %v750, %v932
        %v951 = vadd.f32 %v755, %v937
        %v952 = vadd.f32 %v758, %v940
        %v953 = vld [vmem:[%s764] sm:$0xf]
        %v954 = vld [vmem:[%s764 + $0x4] sm:$0x1]
        %v955 = vld [vmem:[%s764 + $0x8] sm:$0xf]
        %v956 = vld [vmem:[%s764 + $0xc] sm:$0x1]
        %v957 = vld [vmem:[%s764 + $0x10] sm:$0xf]
        %v958 = vld [vmem:[%s764 + $0x14] sm:$0x1]
        %v959 = vld [vmem:[%s764 + $0x18] sm:$0xf]
        %v960 = vld [vmem:[%s764 + $0x1c] sm:$0x1]
        %v961 = vld [vmem:[%s764 + $0x20] sm:$0xf]
        %v962 = vld [vmem:[%s764 + $0x24] sm:$0x1]
        %v963 = vld [vmem:[%s764 + $0x28] sm:$0xf]
        %v964 = vld [vmem:[%s764 + $0x2c] sm:$0x1]
        %v965 = vld [vmem:[%s764 + $0x30] sm:$0xf]
        %v966 = vld [vmem:[%s764 + $0x34] sm:$0x1]
        %v967 = vld [vmem:[%s764 + $0x38] sm:$0xf]
        %v968 = vld [vmem:[%s764 + $0x3c] sm:$0x1]
        %v969 = vld [vmem:[%s764 + $0x40] sm:$0xf]
        %v970 = vld [vmem:[%s764 + $0x44] sm:$0x1]
        %v971 = vld [vmem:[%s764 + $0x48] sm:$0xf]
        %v972 = vld [vmem:[%s764 + $0x4c] sm:$0x1]
        %v974 = vshrl.u32 %v953, 16
        %v976 = vrot.slane %v974, 4
        %v977 = vshll.u32 %v953, 16
        %v979 = vrot.slane %v977, 5
        %v980 = vor.u32 %v976, %v979
        %v981 = vrot.slane %v980, 4
        %v983 = vshll.u32 %v954, 16
        %v985 = vrot.slane %v983, 5
        %v986 = vsel %vm311, %v981, %v985
        %v988 = vshrl.u32 %v955, 16
        %v990 = vrot.slane %v988, 4
        %v991 = vshll.u32 %v955, 16
        %v993 = vrot.slane %v991, 5
        %v994 = vor.u32 %v990, %v993
        %v995 = vrot.slane %v994, 4
        %v997 = vshll.u32 %v956, 16
        %v999 = vrot.slane %v997, 5
        %v1000 = vsel %vm311, %v995, %v999
        %v1002 = vshrl.u32 %v957, 16
        %v1004 = vrot.slane %v1002, 4
        %v1005 = vshll.u32 %v957, 16
        %v1007 = vrot.slane %v1005, 5
        %v1008 = vor.u32 %v1004, %v1007
        %v1009 = vrot.slane %v1008, 4
        %v1011 = vshll.u32 %v958, 16
        %v1013 = vrot.slane %v1011, 5
        %v1014 = vsel %vm311, %v1009, %v1013
        %v1016 = vshrl.u32 %v959, 16
        %v1018 = vrot.slane %v1016, 4
        %v1019 = vshll.u32 %v959, 16
        %v1021 = vrot.slane %v1019, 5
        %v1022 = vor.u32 %v1018, %v1021
        %v1023 = vrot.slane %v1022, 4
        %v1025 = vshll.u32 %v960, 16
        %v1027 = vrot.slane %v1025, 5
        %v1028 = vsel %vm311, %v1023, %v1027
        %v1030 = vshrl.u32 %v961, 16
        %v1032 = vrot.slane %v1030, 4
        %v1033 = vshll.u32 %v961, 16
        %v1035 = vrot.slane %v1033, 5
        %v1036 = vor.u32 %v1032, %v1035
        %v1037 = vrot.slane %v1036, 4
        %v1039 = vshll.u32 %v962, 16
        %v1041 = vrot.slane %v1039, 5
        %v1042 = vsel %vm311, %v1037, %v1041
        %v1044 = vshrl.u32 %v963, 16
        %v1046 = vrot.slane %v1044, 4
        %v1047 = vshll.u32 %v963, 16
        %v1049 = vrot.slane %v1047, 5
        %v1050 = vor.u32 %v1046, %v1049
        %v1051 = vrot.slane %v1050, 4
        %v1053 = vshll.u32 %v964, 16
        %v1055 = vrot.slane %v1053, 5
        %v1056 = vsel %vm311, %v1051, %v1055
        %v1058 = vshrl.u32 %v965, 16
        %v1060 = vrot.slane %v1058, 4
        %v1061 = vshll.u32 %v965, 16
        %v1063 = vrot.slane %v1061, 5
        %v1064 = vor.u32 %v1060, %v1063
        %v1065 = vrot.slane %v1064, 4
        %v1067 = vshll.u32 %v966, 16
        %v1069 = vrot.slane %v1067, 5
        %v1070 = vsel %vm311, %v1065, %v1069
        %v1072 = vshrl.u32 %v967, 16
        %v1074 = vrot.slane %v1072, 4
        %v1075 = vshll.u32 %v967, 16
        %v1077 = vrot.slane %v1075, 5
        %v1078 = vor.u32 %v1074, %v1077
        %v1079 = vrot.slane %v1078, 4
        %v1081 = vshll.u32 %v968, 16
        %v1083 = vrot.slane %v1081, 5
        %v1084 = vsel %vm311, %v1079, %v1083
        %v1086 = vshrl.u32 %v969, 16
        %v1088 = vrot.slane %v1086, 4
        %v1089 = vshll.u32 %v969, 16
        %v1091 = vrot.slane %v1089, 5
        %v1092 = vor.u32 %v1088, %v1091
        %v1093 = vrot.slane %v1092, 4
        %v1095 = vshll.u32 %v970, 16
        %v1097 = vrot.slane %v1095, 5
        %v1098 = vsel %vm311, %v1093, %v1097
        %v1100 = vshrl.u32 %v971, 16
        %v1102 = vrot.slane %v1100, 4
        %v1103 = vshll.u32 %v971, 16
        %v1105 = vrot.slane %v1103, 5
        %v1106 = vor.u32 %v1102, %v1105
        %v1107 = vrot.slane %v1106, 4
        %v1109 = vshll.u32 %v972, 16
        %v1111 = vrot.slane %v1109, 5
        %v1112 = vsel %vm311, %v1107, %v1111
        %s1113 = scalar_lea.vmem %s1, 192
        %v1114 = vld [vmem:[%s1113] sm:$0xf]
        %v1115 = vld [vmem:[%s1113 + $0x4] sm:$0xf]
        %v1116 = vld [vmem:[%s1113 + $0x8] sm:$0xf]
        %v1117 = vld [vmem:[%s1113 + $0xc] sm:$0xf]
        %v1118 = vld [vmem:[%s1113 + $0x10] sm:$0xf]
        %v1119 = vld [vmem:[%s1113 + $0x14] sm:$0xf]
        %v1120 = vld [vmem:[%s1113 + $0x18] sm:$0xf]
        %v1121 = vld [vmem:[%s1113 + $0x1c] sm:$0xf]
        %v1122 = vld [vmem:[%s1113 + $0x20] sm:$0xf]
        %v1123 = vld [vmem:[%s1113 + $0x24] sm:$0xf]
        %v1124 = vld [vmem:[%s1113 + $0x28] sm:$0xf]
        %v1125 = vld [vmem:[%s1113 + $0x2c] sm:$0xf]
        %v1126 = vld [vmem:[%s1113 + $0x30] sm:$0xf]
        %v1127 = vld [vmem:[%s1113 + $0x34] sm:$0xf]
        %v1128 = vld [vmem:[%s1113 + $0x38] sm:$0xf]
        %v1129 = vld [vmem:[%s1113 + $0x3c] sm:$0xf]
        %v1130 = vunpack.c.l.b16 %v986
        %v1131 = vunpack.c.l.b16 %v1000
        %v1132 = vunpack.c.l.b16 %v1014
        %v1133 = vunpack.c.l.b16 %v1028
        %v1134 = vunpack.c.l.b16 %v1042
        %v1135 = vunpack.c.l.b16 %v1056
        %v1136 = vunpack.c.l.b16 %v1070
        %v1137 = vunpack.c.l.b16 %v1084
        %v1138 = vunpack.c.l.b16 %v1098
        %v1139 = vunpack.c.l.b16 %v1112
        %v1140 = vpack.c.b16 %v1131, %v1130
        %v1141 = vpack.c.b16 %v1133, %v1132
        %v1142 = vpack.c.b16 %v1135, %v1134
        %v1143 = vpack.c.b16 %v1137, %v1136
        %v1144 = vpack.c.b16 %v1139, %v1138
        %v1166 = vunpack.c.l.b16 %v1114
        %v1167 = vunpack.c.l.b16 %v1115
        %v1168 = vunpack.c.l.b16 %v1116
        %v1169 = vunpack.c.l.b16 %v1117
        %v1170 = vunpack.c.l.b16 %v1118
        %v1171 = vunpack.c.l.b16 %v1119
        %v1172 = vunpack.c.l.b16 %v1120
        %v1173 = vunpack.c.l.b16 %v1121
        %v1174 = vunpack.c.l.b16 %v1122
        %v1175 = vunpack.c.l.b16 %v1123
        %v1176 = vunpack.c.l.b16 %v1124
        %v1177 = vunpack.c.l.b16 %v1125
        %v1178 = vunpack.c.l.b16 %v1126
        %v1179 = vunpack.c.l.b16 %v1127
        %v1180 = vunpack.c.l.b16 %v1128
        %v1181 = vunpack.c.l.b16 %v1129
        %v1182 = vpack.c.b16 %v1167, %v1166
        %v1183 = vpack.c.b16 %v1169, %v1168
        %v1184 = vpack.c.b16 %v1171, %v1170
        %v1185 = vpack.c.b16 %v1173, %v1172
        %v1186 = vpack.c.b16 %v1175, %v1174
        %v1187 = vpack.c.b16 %v1177, %v1176
        %v1188 = vpack.c.b16 %v1179, %v1178
        %v1189 = vpack.c.b16 %v1181, %v1180
        %1198 = vmatprep.subr.bf16.mxu0 0
        %1199 = vmatpush1.bf16.msra.mxu0 %v1182
        %1200 = vmatprep.subr.bf16.mxu0 0
        %1201 = vmatpush1.bf16.msra.mxu0 %v1183
        %1202 = vmatprep.subr.bf16.mxu0 0
        %1203 = vmatpush1.bf16.msra.mxu0 %v1184
        %1204 = vmatprep.subr.bf16.mxu0 0
        %1205 = vmatpush1.bf16.msra.mxu0 %v1185
        %1206 = vmatprep.subr.bf16.mxu0 0
        %1207 = vmatpush1.bf16.msra.mxu0 %v1186
        %1208 = vmatprep.subr.bf16.mxu0 0
        %1209 = vmatpush1.bf16.msra.mxu0 %v1187
        %1210 = vmatprep.subr.bf16.mxu0 0
        %1211 = vmatpush1.bf16.msra.mxu0 %v1188
        %1212 = vmatprep.subr.bf16.mxu0 0
        %1213 = vmatpush1.bf16.msra.mxu0 %v1189
        %1214 = vmatprep.subr.bf16.mxu0 0
        %1215 = vmatpush1.bf16.msra.mxu0 0
        %1216 = vmatprep.subr.bf16.mxu0 0
        %1217 = vmatpush1.bf16.msra.mxu0 0
        %1218 = vmatprep.subr.bf16.mxu0 0
        %1219 = vmatpush1.bf16.msra.mxu0 0
        %1220 = vmatprep.subr.bf16.mxu0 0
        %1221 = vmatpush1.bf16.msra.mxu0 0
        %1222 = vmatprep.subr.bf16.mxu0 0
        %1223 = vmatpush1.bf16.msra.mxu0 0
        %1224 = vmatprep.subr.bf16.mxu0 0
        %1225 = vmatpush1.bf16.msra.mxu0 0
        %1226 = vmatprep.subr.bf16.mxu0 0
        %1227 = vmatpush1.bf16.msra.mxu0 0
        %1228 = vmatprep.subr.bf16.mxu0 0
        %1229 = vmatpush1.bf16.msra.mxu0 0
        %1230 = vmatprep.mubr.bf16.mxu0 0
        %1231 = vmatmul.mubr.bf16.gmra.mrb[0].mxu0 %v1140
        %v1232 = vpop.f32.mrb[0].mxu0
        %v1233 = vadd.f32 0.0, %v1232
        %v1234 = vpop.f32.mrb[0].mxu0
        %v1235 = vpop.f32.mrb[0].mxu0
        %v1236 = vadd.f32 0.0, %v1235
        %v1237 = vpop.f32.mrb[0].mxu0
        %1238 = vmatprep.mubr.bf16.mxu0 0
        %1239 = vmatmul.mubr.bf16.gmra.mrb[0].mxu0 %v1141
        %v1240 = vpop.f32.mrb[0].mxu0
        %v1241 = vadd.f32 0.0, %v1240
        %v1242 = vpop.f32.mrb[0].mxu0
        %v1243 = vpop.f32.mrb[0].mxu0
        %v1244 = vadd.f32 0.0, %v1243
        %v1245 = vpop.f32.mrb[0].mxu0
        %1246 = vmatprep.mubr.bf16.mxu0 0
        %1247 = vmatmul.mubr.bf16.gmra.mrb[0].mxu0 %v1142
        %v1248 = vpop.f32.mrb[0].mxu0
        %v1249 = vadd.f32 0.0, %v1248
        %v1250 = vpop.f32.mrb[0].mxu0
        %v1251 = vpop.f32.mrb[0].mxu0
        %v1252 = vadd.f32 0.0, %v1251
        %v1253 = vpop.f32.mrb[0].mxu0
        %1254 = vmatprep.mubr.bf16.mxu0 0
        %1255 = vmatmul.mubr.bf16.gmra.mrb[0].mxu0 %v1143
        %v1256 = vpop.f32.mrb[0].mxu0
        %v1257 = vadd.f32 0.0, %v1256
        %v1258 = vpop.f32.mrb[0].mxu0
        %v1259 = vpop.f32.mrb[0].mxu0
        %v1260 = vadd.f32 0.0, %v1259
        %v1261 = vpop.f32.mrb[0].mxu0
        %1262 = vmatprep.mubr.bf16.mxu0 0
        %1263 = vmatmul.mubr.bf16.gmra.mrb[0].mxu0 %v1144
        %v1264 = vpop.f32.mrb[0].mxu0
        %v1265 = vadd.f32 0.0, %v1264
        %v1266 = vpop.f32.mrb[0].mxu0
        %v1267 = vpop.f32.mrb[0].mxu0
        %v1268 = vadd.f32 0.0, %v1267
        %v1269 = vpop.f32.mrb[0].mxu0
        %1270 = vdwg.mxu0
        %v1271 = vadd.f32 %v943, %v1233
        %v1272 = vadd.f32 %v944, %v1236
        %v1273 = vadd.f32 %v945, %v1241
        %v1274 = vadd.f32 %v946, %v1244
        %v1275 = vadd.f32 %v947, %v1249
        %v1276 = vadd.f32 %v948, %v1252
        %v1277 = vadd.f32 %v949, %v1257
        %v1278 = vadd.f32 %v950, %v1260
        %v1279 = vadd.f32 %v951, %v1265
        %v1280 = vadd.f32 %v952, %v1268
        %v1281 = vld [vmem:[%s4] sm:$0x1]
        %v1282 = vlaneseq
        %v1283 = vshrl.u32 %v1282, 7
        %v1284 = vsub.s32 0, %v1283
        %v1285 = vrot.slane %v1281, %v1284
        %v1286 = vmul.f32 %v1271, %v1285
        %v1287 = vmul.f32 %v1272, %v1285
        %v1288 = vmul.f32 %v1273, %v1285
        %v1289 = vmul.f32 %v1274, %v1285
        %v1290 = vmul.f32 %v1275, %v1285
        %v1291 = vmul.f32 %v1276, %v1285
        %v1292 = vmul.f32 %v1277, %v1285
        %v1293 = vmul.f32 %v1278, %v1285
        %v1294 = vmul.f32 %v1279, %v1285
        %v1295 = vmul.f32 %v1280, %v1285
        %v1296 = vld [vmem:[%s4 + $0x1] sm:$0x1]
        %v1297 = vlaneseq
        %v1298 = vshrl.u32 %v1297, 7
        %v1299 = vsub.s32 0, %v1298
        %v1300 = vrot.slane %v1296, %v1299
        %v1301 = vadd.f32 %v1286, %v1300
        %v1302 = vadd.f32 %v1287, %v1300
        %v1303 = vadd.f32 %v1288, %v1300
        %v1304 = vadd.f32 %v1289, %v1300
        %v1305 = vadd.f32 %v1290, %v1300
        %v1306 = vadd.f32 %v1291, %v1300
        %v1307 = vadd.f32 %v1292, %v1300
        %v1308 = vadd.f32 %v1293, %v1300
        %v1309 = vadd.f32 %v1294, %v1300
        %v1310 = vadd.f32 %v1295, %v1300
        %v1311 = vmax.f32 %v1301, 0.0
        %v1312 = vmax.f32 %v1302, 0.0
        %v1313 = vmax.f32 %v1303, 0.0
        %v1314 = vmax.f32 %v1304, 0.0
        %v1315 = vmax.f32 %v1305, 0.0
        %v1316 = vmax.f32 %v1306, 0.0
        %v1317 = vmax.f32 %v1307, 0.0
        %v1318 = vmax.f32 %v1308, 0.0
        %v1319 = vmax.f32 %v1309, 0.0
        %v1320 = vmax.f32 %v1310, 0.0
        %s1321 = ssub.s32 %s269, 1
        %v1322 = vstv %s1321
        %v1323 = vadd.s32 %v1322, 1
        %v1324 = vadd.s32 %v1322, 2
        %v1325 = vadd.s32 %v1322, 3
        %v1326 = vadd.s32 %v1322, 4
        %v1327 = vadd.s32 %v1322, 5
        %v1328 = vadd.s32 %v1322, 6
        %v1329 = vadd.s32 %v1322, 7
        %v1330 = vadd.s32 %v1322, 8
        %v1331 = vadd.s32 %v1322, 9
        %vm1332 = vcmp.ge.s32.totalorder %v1322, 0
        %vm1333 = vcmp.ge.s32.totalorder %v1323, 0
        %vm1334 = vcmp.ge.s32.totalorder %v1324, 0
        %vm1335 = vcmp.ge.s32.totalorder %v1325, 0
        %vm1336 = vcmp.ge.s32.totalorder %v1326, 0
        %vm1337 = vcmp.ge.s32.totalorder %v1327, 0
        %vm1338 = vcmp.ge.s32.totalorder %v1328, 0
        %vm1339 = vcmp.ge.s32.totalorder %v1329, 0
        %vm1340 = vcmp.ge.s32.totalorder %v1330, 0
        %vm1341 = vcmp.ge.s32.totalorder %v1331, 0
        %vm1342 = vcmp.lt.s32.totalorder %v1322, 8
        %vm1343 = vcmp.lt.s32.totalorder %v1323, 8
        %vm1344 = vcmp.lt.s32.totalorder %v1324, 8
        %vm1345 = vcmp.lt.s32.totalorder %v1325, 8
        %vm1346 = vcmp.lt.s32.totalorder %v1326, 8
        %vm1347 = vcmp.lt.s32.totalorder %v1327, 8
        %vm1348 = vcmp.lt.s32.totalorder %v1328, 8
        %vm1349 = vcmp.lt.s32.totalorder %v1329, 8
        %vm1350 = vcmp.lt.s32.totalorder %v1330, 8
        %vm1351 = vcmp.lt.s32.totalorder %v1331, 8
        %vm1352 = vmand %vm1332, %vm1342
        %vm1353 = vmand %vm1333, %vm1343
        %vm1354 = vmand %vm1334, %vm1344
        %vm1355 = vmand %vm1335, %vm1345
        %vm1356 = vmand %vm1336, %vm1346
        %vm1357 = vmand %vm1337, %vm1347
        %vm1358 = vmand %vm1338, %vm1348
        %vm1359 = vmand %vm1339, %vm1349
        %vm1360 = vmand %vm1340, %vm1350
        %vm1361 = vmand %vm1341, %vm1351
        %v1362 = vsel %vm1352, %v1311, 0.0
        %v1363 = vsel %vm1353, %v1312, 0.0
        %v1364 = vsel %vm1354, %v1313, 0.0
        %v1365 = vsel %vm1355, %v1314, 0.0
        %v1366 = vsel %vm1356, %v1315, 0.0
        %v1367 = vsel %vm1357, %v1316, 0.0
        %v1368 = vsel %vm1358, %v1317, 0.0
        %v1369 = vsel %vm1359, %v1318, 0.0
        %v1370 = vsel %vm1360, %v1319, 0.0
        %v1371 = vsel %vm1361, %v1320, 0.0
        %vm1372 = vcmask 1040384
        %vm1373 = vsmask.f32 256
        %vm1374 = vmand %vm1372, %vm1373
        %v1375 = vld [vmem:[#allocation2] sm:$0x1]
        %v1376 = vsel %vm1374, 0, %v1375
        %1377 = vst [vmem:[#allocation2] sm:$0x1] %v1376
        %v1378 = vld [vmem:[#allocation2 + $0x8] sm:$0x1]
        %v1379 = vsel %vm1374, 0, %v1378
        %1380 = vst [vmem:[#allocation2 + $0x8] sm:$0x1] %v1379
        %v1381 = vld [vmem:[#allocation2 + $0x10] sm:$0x1]
        %v1382 = vsel %vm1374, 0, %v1381
        %1383 = vst [vmem:[#allocation2 + $0x10] sm:$0x1] %v1382
        %v1384 = vld [vmem:[#allocation2 + $0x18] sm:$0x1]
        %v1385 = vsel %vm1374, 0, %v1384
        %1386 = vst [vmem:[#allocation2 + $0x18] sm:$0x1] %v1385
        %v1387 = vld [vmem:[#allocation2 + $0x20] sm:$0x1]
        %v1388 = vsel %vm1374, 0, %v1387
        %1389 = vst [vmem:[#allocation2 + $0x20] sm:$0x1] %v1388
        %v1390 = vld [vmem:[#allocation2 + $0x28] sm:$0x1]
        %v1391 = vsel %vm1374, 0, %v1390
        %1392 = vst [vmem:[#allocation2 + $0x28] sm:$0x1] %v1391
        %v1393 = vld [vmem:[#allocation2 + $0x30] sm:$0x1]
        %v1394 = vsel %vm1374, 0, %v1393
        %1395 = vst [vmem:[#allocation2 + $0x30] sm:$0x1] %v1394
        %v1396 = vld [vmem:[#allocation2 + $0x38] sm:$0x1]
        %v1397 = vsel %vm1374, 0, %v1396
        %1398 = vst [vmem:[#allocation2 + $0x38] sm:$0x1] %v1397
        %v1399 = vld [vmem:[#allocation2 + $0x40] sm:$0x1]
        %v1400 = vsel %vm1374, 0, %v1399
        %1401 = vst [vmem:[#allocation2 + $0x40] sm:$0x1] %v1400
        %v1402 = vld [vmem:[#allocation2 + $0x48] sm:$0x1]
        %v1403 = vsel %vm1374, 0, %v1402
        %1404 = vst [vmem:[#allocation2 + $0x48] sm:$0x1] %v1403
        %vm1405 = vsmask.f32 7938
        %vm1406 = vmand %vm1372, %vm1405
        %v1407 = vld [vmem:[#allocation2 + $0x4] sm:$0x1]
        %v1408 = vsel %vm1406, 0, %v1407
        %1409 = vst [vmem:[#allocation2 + $0x4] sm:$0x1] %v1408
        %v1410 = vld [vmem:[#allocation2 + $0xc] sm:$0x1]
        %v1411 = vsel %vm1406, 0, %v1410
        %1412 = vst [vmem:[#allocation2 + $0xc] sm:$0x1] %v1411
        %v1413 = vld [vmem:[#allocation2 + $0x14] sm:$0x1]
        %v1414 = vsel %vm1406, 0, %v1413
        %1415 = vst [vmem:[#allocation2 + $0x14] sm:$0x1] %v1414
        %v1416 = vld [vmem:[#allocation2 + $0x1c] sm:$0x1]
        %v1417 = vsel %vm1406, 0, %v1416
        %1418 = vst [vmem:[#allocation2 + $0x1c] sm:$0x1] %v1417
        %v1419 = vld [vmem:[#allocation2 + $0x24] sm:$0x1]
        %v1420 = vsel %vm1406, 0, %v1419
        %1421 = vst [vmem:[#allocation2 + $0x24] sm:$0x1] %v1420
        %v1422 = vld [vmem:[#allocation2 + $0x2c] sm:$0x1]
        %v1423 = vsel %vm1406, 0, %v1422
        %1424 = vst [vmem:[#allocation2 + $0x2c] sm:$0x1] %v1423
        %v1425 = vld [vmem:[#allocation2 + $0x34] sm:$0x1]
        %v1426 = vsel %vm1406, 0, %v1425
        %1427 = vst [vmem:[#allocation2 + $0x34] sm:$0x1] %v1426
        %v1428 = vld [vmem:[#allocation2 + $0x3c] sm:$0x1]
        %v1429 = vsel %vm1406, 0, %v1428
        %1430 = vst [vmem:[#allocation2 + $0x3c] sm:$0x1] %v1429
        %v1431 = vld [vmem:[#allocation2 + $0x44] sm:$0x1]
        %v1432 = vsel %vm1406, 0, %v1431
        %1433 = vst [vmem:[#allocation2 + $0x44] sm:$0x1] %v1432
        %v1434 = vld [vmem:[#allocation2 + $0x4c] sm:$0x1]
        %v1435 = vsel %vm1406, 0, %v1434
        %1436 = vst [vmem:[#allocation2 + $0x4c] sm:$0x1] %v1435
        %v1437 = vpack.c.bf16 %v1362, %v1362
        %v1438 = vpack.c.bf16 %v1363, %v1363
        %v1439 = vpack.c.bf16 %v1364, %v1364
        %v1440 = vpack.c.bf16 %v1365, %v1365
        %v1441 = vpack.c.bf16 %v1366, %v1366
        %v1442 = vpack.c.bf16 %v1367, %v1367
        %v1443 = vpack.c.bf16 %v1368, %v1368
        %v1444 = vpack.c.bf16 %v1369, %v1369
        %v1445 = vpack.c.bf16 %v1370, %v1370
        %v1446 = vpack.c.bf16 %v1371, %v1371
        %v1457 = vunpack.c.l.b16 %v1437
        %v1458 = vunpack.c.l.b16 %v1438
        %v1459 = vunpack.c.l.b16 %v1439
        %v1460 = vunpack.c.l.b16 %v1440
        %v1461 = vunpack.c.l.b16 %v1441
        %v1462 = vunpack.c.l.b16 %v1442
        %v1463 = vunpack.c.l.b16 %v1443
        %v1464 = vunpack.c.l.b16 %v1444
        %v1465 = vunpack.c.l.b16 %v1445
        %v1466 = vunpack.c.l.b16 %v1446
        %v1467 = vpack.c.b16 %v1457, %v1457
        %v1468 = vpack.c.b16 %v1458, %v1458
        %v1469 = vpack.c.b16 %v1459, %v1459
        %v1470 = vpack.c.b16 %v1460, %v1460
        %v1471 = vpack.c.b16 %v1461, %v1461
        %v1472 = vpack.c.b16 %v1462, %v1462
        %v1473 = vpack.c.b16 %v1463, %v1463
        %v1474 = vpack.c.b16 %v1464, %v1464
        %v1475 = vpack.c.b16 %v1465, %v1465
        %v1476 = vpack.c.b16 %v1466, %v1466
        %v1478 = vshrl.u32 %v1467, 16
        %v1480 = vrot.slane %v1478, 7
        %v1481 = vshll.u32 %v1467, 16
        %v1483 = vor.u32 %v1480, %v1481
        %v1484 = vrot.slane %v1480, 4
        %v1486 = vshrl.u32 %v1468, 16
        %v1488 = vrot.slane %v1486, 7
        %v1489 = vshll.u32 %v1468, 16
        %v1491 = vor.u32 %v1488, %v1489
        %v1492 = vrot.slane %v1488, 4
        %v1494 = vshrl.u32 %v1469, 16
        %v1496 = vrot.slane %v1494, 7
        %v1497 = vshll.u32 %v1469, 16
        %v1499 = vor.u32 %v1496, %v1497
        %v1500 = vrot.slane %v1496, 4
        %v1502 = vshrl.u32 %v1470, 16
        %v1504 = vrot.slane %v1502, 7
        %v1505 = vshll.u32 %v1470, 16
        %v1507 = vor.u32 %v1504, %v1505
        %v1508 = vrot.slane %v1504, 4
        %v1510 = vshrl.u32 %v1471, 16
        %v1512 = vrot.slane %v1510, 7
        %v1513 = vshll.u32 %v1471, 16
        %v1515 = vor.u32 %v1512, %v1513
        %v1516 = vrot.slane %v1512, 4
        %v1518 = vshrl.u32 %v1472, 16
        %v1520 = vrot.slane %v1518, 7
        %v1521 = vshll.u32 %v1472, 16
        %v1523 = vor.u32 %v1520, %v1521
        %v1524 = vrot.slane %v1520, 4
        %v1526 = vshrl.u32 %v1473, 16
        %v1528 = vrot.slane %v1526, 7
        %v1529 = vshll.u32 %v1473, 16
        %v1531 = vor.u32 %v1528, %v1529
        %v1532 = vrot.slane %v1528, 4
        %v1534 = vshrl.u32 %v1474, 16
        %v1536 = vrot.slane %v1534, 7
        %v1537 = vshll.u32 %v1474, 16
        %v1539 = vor.u32 %v1536, %v1537
        %v1540 = vrot.slane %v1536, 4
        %v1542 = vshrl.u32 %v1475, 16
        %v1544 = vrot.slane %v1542, 7
        %v1545 = vshll.u32 %v1475, 16
        %v1547 = vor.u32 %v1544, %v1545
        %v1548 = vrot.slane %v1544, 4
        %v1550 = vshrl.u32 %v1476, 16
        %v1552 = vrot.slane %v1550, 7
        %v1553 = vshll.u32 %v1476, 16
        %v1555 = vor.u32 %v1552, %v1553
        %v1556 = vrot.slane %v1552, 4
        %vm1577 = vcmask 1043456
        %vm1578 = vmand %vm1577, %vm1405
        %v1579 = vld [vmem:[#allocation2] sm:$0xf]
        %v1580 = vsel %vm1578, %v1483, %v1579
        %1581 = vst [vmem:[#allocation2] sm:$0xf] %v1580
        %v1582 = vld [vmem:[#allocation2 + $0x4] sm:$0x1]
        %v1583 = vsel %vm1374, %v1484, %v1582
        %1584 = vst [vmem:[#allocation2 + $0x4] sm:$0x1] %v1583
        %v1585 = vld [vmem:[#allocation2 + $0x8] sm:$0xf]
        %v1586 = vsel %vm1578, %v1491, %v1585
        %1587 = vst [vmem:[#allocation2 + $0x8] sm:$0xf] %v1586
        %v1588 = vld [vmem:[#allocation2 + $0xc] sm:$0x1]
        %v1589 = vsel %vm1374, %v1492, %v1588
        %1590 = vst [vmem:[#allocation2 + $0xc] sm:$0x1] %v1589
        %v1591 = vld [vmem:[#allocation2 + $0x10] sm:$0xf]
        %v1592 = vsel %vm1578, %v1499, %v1591
        %1593 = vst [vmem:[#allocation2 + $0x10] sm:$0xf] %v1592
        %v1594 = vld [vmem:[#allocation2 + $0x14] sm:$0x1]
        %v1595 = vsel %vm1374, %v1500, %v1594
        %1596 = vst [vmem:[#allocation2 + $0x14] sm:$0x1] %v1595
        %v1597 = vld [vmem:[#allocation2 + $0x18] sm:$0xf]
        %v1598 = vsel %vm1578, %v1507, %v1597
        %1599 = vst [vmem:[#allocation2 + $0x18] sm:$0xf] %v1598
        %v1600 = vld [vmem:[#allocation2 + $0x1c] sm:$0x1]
        %v1601 = vsel %vm1374, %v1508, %v1600
        %1602 = vst [vmem:[#allocation2 + $0x1c] sm:$0x1] %v1601
        %v1603 = vld [vmem:[#allocation2 + $0x20] sm:$0xf]
        %v1604 = vsel %vm1578, %v1515, %v1603
        %1605 = vst [vmem:[#allocation2 + $0x20] sm:$0xf] %v1604
        %v1606 = vld [vmem:[#allocation2 + $0x24] sm:$0x1]
        %v1607 = vsel %vm1374, %v1516, %v1606
        %1608 = vst [vmem:[#allocation2 + $0x24] sm:$0x1] %v1607
        %v1609 = vld [vmem:[#allocation2 + $0x28] sm:$0xf]
        %v1610 = vsel %vm1578, %v1523, %v1609
        %1611 = vst [vmem:[#allocation2 + $0x28] sm:$0xf] %v1610
        %v1612 = vld [vmem:[#allocation2 + $0x2c] sm:$0x1]
        %v1613 = vsel %vm1374, %v1524, %v1612
        %1614 = vst [vmem:[#allocation2 + $0x2c] sm:$0x1] %v1613
        %v1615 = vld [vmem:[#allocation2 + $0x30] sm:$0xf]
        %v1616 = vsel %vm1578, %v1531, %v1615
        %1617 = vst [vmem:[#allocation2 + $0x30] sm:$0xf] %v1616
        %v1618 = vld [vmem:[#allocation2 + $0x34] sm:$0x1]
        %v1619 = vsel %vm1374, %v1532, %v1618
        %1620 = vst [vmem:[#allocation2 + $0x34] sm:$0x1] %v1619
        %v1621 = vld [vmem:[#allocation2 + $0x38] sm:$0xf]
        %v1622 = vsel %vm1578, %v1539, %v1621
        %1623 = vst [vmem:[#allocation2 + $0x38] sm:$0xf] %v1622
        %v1624 = vld [vmem:[#allocation2 + $0x3c] sm:$0x1]
        %v1625 = vsel %vm1374, %v1540, %v1624
        %1626 = vst [vmem:[#allocation2 + $0x3c] sm:$0x1] %v1625
        %v1627 = vld [vmem:[#allocation2 + $0x40] sm:$0xf]
        %v1628 = vsel %vm1578, %v1547, %v1627
        %1629 = vst [vmem:[#allocation2 + $0x40] sm:$0xf] %v1628
        %v1630 = vld [vmem:[#allocation2 + $0x44] sm:$0x1]
        %v1631 = vsel %vm1374, %v1548, %v1630
        %1632 = vst [vmem:[#allocation2 + $0x44] sm:$0x1] %v1631
        %v1633 = vld [vmem:[#allocation2 + $0x48] sm:$0xf]
        %v1634 = vsel %vm1578, %v1555, %v1633
        %1635 = vst [vmem:[#allocation2 + $0x48] sm:$0xf] %v1634
        %v1636 = vld [vmem:[#allocation2 + $0x4c] sm:$0x1]
        %v1637 = vsel %vm1374, %v1556, %v1636
        %1638 = vst [vmem:[#allocation2 + $0x4c] sm:$0x1] %v1637
        %v1639 = vld [vmem:[#allocation2] sm:$0xf]
        %v1640 = vld [vmem:[#allocation2 + $0x8] sm:$0xf]
        %v1641 = vld [vmem:[#allocation2 + $0x10] sm:$0xf]
        %v1642 = vld [vmem:[#allocation2 + $0x18] sm:$0xf]
        %v1643 = vld [vmem:[#allocation2 + $0x20] sm:$0xf]
        %v1644 = vld [vmem:[#allocation2 + $0x28] sm:$0xf]
        %v1645 = vld [vmem:[#allocation2 + $0x30] sm:$0xf]
        %v1646 = vld [vmem:[#allocation2 + $0x38] sm:$0xf]
        %v1647 = vld [vmem:[#allocation3] sm:$0xf]
        %v1648 = vld [vmem:[#allocation3 + $0x4] sm:$0xf]
        %v1649 = vld [vmem:[#allocation3 + $0x8] sm:$0xf]
        %v1650 = vld [vmem:[#allocation3 + $0xc] sm:$0xf]
        %v1651 = vld [vmem:[#allocation3 + $0x10] sm:$0xf]
        %v1652 = vld [vmem:[#allocation3 + $0x14] sm:$0xf]
        %v1653 = vld [vmem:[#allocation3 + $0x18] sm:$0xf]
        %v1654 = vld [vmem:[#allocation3 + $0x1c] sm:$0xf]
        %v1655 = vld [vmem:[#allocation3 + $0x20] sm:$0xf]
        %v1656 = vld [vmem:[#allocation3 + $0x24] sm:$0xf]
        %v1657 = vld [vmem:[#allocation3 + $0x28] sm:$0xf]
        %v1658 = vld [vmem:[#allocation3 + $0x2c] sm:$0xf]
        %v1659 = vld [vmem:[#allocation3 + $0x30] sm:$0xf]
        %v1660 = vld [vmem:[#allocation3 + $0x34] sm:$0xf]
        %v1661 = vld [vmem:[#allocation3 + $0x38] sm:$0xf]
        %v1662 = vld [vmem:[#allocation3 + $0x3c] sm:$0xf]
        %v1663 = vld [vmem:[#allocation2 + $0x4] sm:$0x1]
        %v1664 = vld [vmem:[#allocation2 + $0xc] sm:$0x1]
        %v1665 = vld [vmem:[#allocation2 + $0x14] sm:$0x1]
        %v1666 = vld [vmem:[#allocation2 + $0x1c] sm:$0x1]
        %v1667 = vld [vmem:[#allocation2 + $0x24] sm:$0x1]
        %v1668 = vld [vmem:[#allocation2 + $0x2c] sm:$0x1]
        %v1669 = vld [vmem:[#allocation2 + $0x34] sm:$0x1]
        %v1670 = vld [vmem:[#allocation2 + $0x3c] sm:$0x1]
        %v1672 = vshrl.u32 %v1639, 16
        %v1674 = vrot.slane %v1672, 4
        %v1675 = vshll.u32 %v1639, 16
        %v1677 = vrot.slane %v1675, 5
        %v1678 = vor.u32 %v1674, %v1677
        %v1679 = vrot.slane %v1678, 4
        %v1681 = vshll.u32 %v1663, 16
        %v1683 = vrot.slane %v1681, 5
        %v1684 = vsel %vm311, %v1679, %v1683
        %v1686 = vshrl.u32 %v1640, 16
        %v1688 = vrot.slane %v1686, 4
        %v1689 = vshll.u32 %v1640, 16
        %v1691 = vrot.slane %v1689, 5
        %v1692 = vor.u32 %v1688, %v1691
        %v1693 = vrot.slane %v1692, 4
        %v1695 = vshll.u32 %v1664, 16
        %v1697 = vrot.slane %v1695, 5
        %v1698 = vsel %vm311, %v1693, %v1697
        %v1700 = vshrl.u32 %v1641, 16
        %v1702 = vrot.slane %v1700, 4
        %v1703 = vshll.u32 %v1641, 16
        %v1705 = vrot.slane %v1703, 5
        %v1706 = vor.u32 %v1702, %v1705
        %v1707 = vrot.slane %v1706, 4
        %v1709 = vshll.u32 %v1665, 16
        %v1711 = vrot.slane %v1709, 5
        %v1712 = vsel %vm311, %v1707, %v1711
        %v1714 = vshrl.u32 %v1642, 16
        %v1716 = vrot.slane %v1714, 4
        %v1717 = vshll.u32 %v1642, 16
        %v1719 = vrot.slane %v1717, 5
        %v1720 = vor.u32 %v1716, %v1719
        %v1721 = vrot.slane %v1720, 4
        %v1723 = vshll.u32 %v1666, 16
        %v1725 = vrot.slane %v1723, 5
        %v1726 = vsel %vm311, %v1721, %v1725
        %v1728 = vshrl.u32 %v1643, 16
        %v1730 = vrot.slane %v1728, 4
        %v1731 = vshll.u32 %v1643, 16
        %v1733 = vrot.slane %v1731, 5
        %v1734 = vor.u32 %v1730, %v1733
        %v1735 = vrot.slane %v1734, 4
        %v1737 = vshll.u32 %v1667, 16
        %v1739 = vrot.slane %v1737, 5
        %v1740 = vsel %vm311, %v1735, %v1739
        %v1742 = vshrl.u32 %v1644, 16
        %v1744 = vrot.slane %v1742, 4
        %v1745 = vshll.u32 %v1644, 16
        %v1747 = vrot.slane %v1745, 5
        %v1748 = vor.u32 %v1744, %v1747
        %v1749 = vrot.slane %v1748, 4
        %v1751 = vshll.u32 %v1668, 16
        %v1753 = vrot.slane %v1751, 5
        %v1754 = vsel %vm311, %v1749, %v1753
        %v1756 = vshrl.u32 %v1645, 16
        %v1758 = vrot.slane %v1756, 4
        %v1759 = vshll.u32 %v1645, 16
        %v1761 = vrot.slane %v1759, 5
        %v1762 = vor.u32 %v1758, %v1761
        %v1763 = vrot.slane %v1762, 4
        %v1765 = vshll.u32 %v1669, 16
        %v1767 = vrot.slane %v1765, 5
        %v1768 = vsel %vm311, %v1763, %v1767
        %v1770 = vshrl.u32 %v1646, 16
        %v1772 = vrot.slane %v1770, 4
        %v1773 = vshll.u32 %v1646, 16
        %v1775 = vrot.slane %v1773, 5
        %v1776 = vor.u32 %v1772, %v1775
        %v1777 = vrot.slane %v1776, 4
        %v1779 = vshll.u32 %v1670, 16
        %v1781 = vrot.slane %v1779, 5
        %v1782 = vsel %vm311, %v1777, %v1781
        %s1783 = scalar_lea.vmem [#allocation3], 64
        %v1784 = vld [vmem:[%s1783] sm:$0xf]
        %v1785 = vld [vmem:[%s1783 + $0x4] sm:$0xf]
        %v1786 = vld [vmem:[%s1783 + $0x8] sm:$0xf]
        %v1787 = vld [vmem:[%s1783 + $0xc] sm:$0xf]
        %v1788 = vld [vmem:[%s1783 + $0x10] sm:$0xf]
        %v1789 = vld [vmem:[%s1783 + $0x14] sm:$0xf]
        %v1790 = vld [vmem:[%s1783 + $0x18] sm:$0xf]
        %v1791 = vld [vmem:[%s1783 + $0x1c] sm:$0xf]
        %v1792 = vld [vmem:[%s1783 + $0x20] sm:$0xf]
        %v1793 = vld [vmem:[%s1783 + $0x24] sm:$0xf]
        %v1794 = vld [vmem:[%s1783 + $0x28] sm:$0xf]
        %v1795 = vld [vmem:[%s1783 + $0x2c] sm:$0xf]
        %v1796 = vld [vmem:[%s1783 + $0x30] sm:$0xf]
        %v1797 = vld [vmem:[%s1783 + $0x34] sm:$0xf]
        %v1798 = vld [vmem:[%s1783 + $0x38] sm:$0xf]
        %v1799 = vld [vmem:[%s1783 + $0x3c] sm:$0xf]
        %v1800 = vunpack.c.l.b16 %v1684
        %v1801 = vunpack.c.l.b16 %v1698
        %v1802 = vunpack.c.l.b16 %v1712
        %v1803 = vunpack.c.l.b16 %v1726
        %v1804 = vunpack.c.l.b16 %v1740
        %v1805 = vunpack.c.l.b16 %v1754
        %v1806 = vunpack.c.l.b16 %v1768
        %v1807 = vunpack.c.l.b16 %v1782
        %v1808 = vpack.c.b16 %v1801, %v1800
        %v1809 = vpack.c.b16 %v1803, %v1802
        %v1810 = vpack.c.b16 %v1805, %v1804
        %v1811 = vpack.c.b16 %v1807, %v1806
        %v1832 = vunpack.c.l.b16 %v1784
        %v1833 = vunpack.c.l.b16 %v1785
        %v1834 = vunpack.c.l.b16 %v1786
        %v1835 = vunpack.c.l.b16 %v1787
        %v1836 = vunpack.c.l.b16 %v1788
        %v1837 = vunpack.c.l.b16 %v1789
        %v1838 = vunpack.c.l.b16 %v1790
        %v1839 = vunpack.c.l.b16 %v1791
        %v1840 = vunpack.c.l.b16 %v1792
        %v1841 = vunpack.c.l.b16 %v1793
        %v1842 = vunpack.c.l.b16 %v1794
        %v1843 = vunpack.c.l.b16 %v1795
        %v1844 = vunpack.c.l.b16 %v1796
        %v1845 = vunpack.c.l.b16 %v1797
        %v1846 = vunpack.c.l.b16 %v1798
        %v1847 = vunpack.c.l.b16 %v1799
        %v1848 = vpack.c.b16 %v1833, %v1832
        %v1849 = vpack.c.b16 %v1835, %v1834
        %v1850 = vpack.c.b16 %v1837, %v1836
        %v1851 = vpack.c.b16 %v1839, %v1838
        %v1852 = vpack.c.b16 %v1841, %v1840
        %v1853 = vpack.c.b16 %v1843, %v1842
        %v1854 = vpack.c.b16 %v1845, %v1844
        %v1855 = vpack.c.b16 %v1847, %v1846
        %1864 = vmatprep.subr.bf16.mxu0 0
        %1865 = vmatpush1.bf16.msra.mxu0 %v1848
        %1866 = vmatprep.subr.bf16.mxu0 0
        %1867 = vmatpush1.bf16.msra.mxu0 %v1849
        %1868 = vmatprep.subr.bf16.mxu0 0
        %1869 = vmatpush1.bf16.msra.mxu0 %v1850
        %1870 = vmatprep.subr.bf16.mxu0 0
        %1871 = vmatpush1.bf16.msra.mxu0 %v1851
        %1872 = vmatprep.subr.bf16.mxu0 0
        %1873 = vmatpush1.bf16.msra.mxu0 %v1852
        %1874 = vmatprep.subr.bf16.mxu0 0
        %1875 = vmatpush1.bf16.msra.mxu0 %v1853
        %1876 = vmatprep.subr.bf16.mxu0 0
        %1877 = vmatpush1.bf16.msra.mxu0 %v1854
        %1878 = vmatprep.subr.bf16.mxu0 0
        %1879 = vmatpush1.bf16.msra.mxu0 %v1855
        %1880 = vmatprep.subr.bf16.mxu0 0
        %1881 = vmatpush1.bf16.msra.mxu0 0
        %1882 = vmatprep.subr.bf16.mxu0 0
        %1883 = vmatpush1.bf16.msra.mxu0 0
        %1884 = vmatprep.subr.bf16.mxu0 0
        %1885 = vmatpush1.bf16.msra.mxu0 0
        %1886 = vmatprep.subr.bf16.mxu0 0
        %1887 = vmatpush1.bf16.msra.mxu0 0
        %1888 = vmatprep.subr.bf16.mxu0 0
        %1889 = vmatpush1.bf16.msra.mxu0 0
        %1890 = vmatprep.subr.bf16.mxu0 0
        %1891 = vmatpush1.bf16.msra.mxu0 0
        %1892 = vmatprep.subr.bf16.mxu0 0
        %1893 = vmatpush1.bf16.msra.mxu0 0
        %1894 = vmatprep.subr.bf16.mxu0 0
        %1895 = vmatpush1.bf16.msra.mxu0 0
        %1896 = vmatprep.mubr.bf16.mxu0 0
        %1897 = vmatmul.mubr.bf16.gmra.mrb[0].mxu0 %v1808
        %v1898 = vpop.f32.mrb[0].mxu0
        %v1899 = vadd.f32 0.0, %v1898
        %v1900 = vpop.f32.mrb[0].mxu0
        %v1901 = vpop.f32.mrb[0].mxu0
        %v1902 = vadd.f32 0.0, %v1901
        %v1903 = vpop.f32.mrb[0].mxu0
        %1904 = vmatprep.mubr.bf16.mxu0 0
        %1905 = vmatmul.mubr.bf16.gmra.mrb[0].mxu0 %v1809
        %v1906 = vpop.f32.mrb[0].mxu0
        %v1907 = vadd.f32 0.0, %v1906
        %v1908 = vpop.f32.mrb[0].mxu0
        %v1909 = vpop.f32.mrb[0].mxu0
        %v1910 = vadd.f32 0.0, %v1909
        %v1911 = vpop.f32.mrb[0].mxu0
        %1912 = vmatprep.mubr.bf16.mxu0 0
        %1913 = vmatmul.mubr.bf16.gmra.mrb[0].mxu0 %v1810
        %v1914 = vpop.f32.mrb[0].mxu0
        %v1915 = vadd.f32 0.0, %v1914
        %v1916 = vpop.f32.mrb[0].mxu0
        %v1917 = vpop.f32.mrb[0].mxu0
        %v1918 = vadd.f32 0.0, %v1917
        %v1919 = vpop.f32.mrb[0].mxu0
        %1920 = vmatprep.mubr.bf16.mxu0 0
        %1921 = vmatmul.mubr.bf16.gmra.mrb[0].mxu0 %v1811
        %v1922 = vpop.f32.mrb[0].mxu0
        %v1923 = vadd.f32 0.0, %v1922
        %v1924 = vpop.f32.mrb[0].mxu0
        %v1925 = vpop.f32.mrb[0].mxu0
        %v1926 = vadd.f32 0.0, %v1925
        %v1927 = vpop.f32.mrb[0].mxu0
        %1928 = vdwg.mxu0
        %v1937 = vunpack.c.l.b16 %v1639
        %v1938 = vunpack.c.l.b16 %v1640
        %v1939 = vunpack.c.l.b16 %v1641
        %v1940 = vunpack.c.l.b16 %v1642
        %v1941 = vunpack.c.l.b16 %v1643
        %v1942 = vunpack.c.l.b16 %v1644
        %v1943 = vunpack.c.l.b16 %v1645
        %v1944 = vunpack.c.l.b16 %v1646
        %v1945 = vpack.c.b16 %v1938, %v1937
        %v1946 = vpack.c.b16 %v1940, %v1939
        %v1947 = vpack.c.b16 %v1942, %v1941
        %v1948 = vpack.c.b16 %v1944, %v1943
        %v1969 = vunpack.c.l.b16 %v1647
        %v1970 = vunpack.c.l.b16 %v1648
        %v1971 = vunpack.c.l.b16 %v1649
        %v1972 = vunpack.c.l.b16 %v1650
        %v1973 = vunpack.c.l.b16 %v1651
        %v1974 = vunpack.c.l.b16 %v1652
        %v1975 = vunpack.c.l.b16 %v1653
        %v1976 = vunpack.c.l.b16 %v1654
        %v1977 = vunpack.c.l.b16 %v1655
        %v1978 = vunpack.c.l.b16 %v1656
        %v1979 = vunpack.c.l.b16 %v1657
        %v1980 = vunpack.c.l.b16 %v1658
        %v1981 = vunpack.c.l.b16 %v1659
        %v1982 = vunpack.c.l.b16 %v1660
        %v1983 = vunpack.c.l.b16 %v1661
        %v1984 = vunpack.c.l.b16 %v1662
        %v1985 = vpack.c.b16 %v1970, %v1969
        %v1986 = vpack.c.b16 %v1972, %v1971
        %v1987 = vpack.c.b16 %v1974, %v1973
        %v1988 = vpack.c.b16 %v1976, %v1975
        %v1989 = vpack.c.b16 %v1978, %v1977
        %v1990 = vpack.c.b16 %v1980, %v1979
        %v1991 = vpack.c.b16 %v1982, %v1981
        %v1992 = vpack.c.b16 %v1984, %v1983
        %2001 = vmatprep.subr.bf16.mxu0 0
        %2002 = vmatpush1.bf16.msra.mxu0 %v1985
        %2003 = vmatprep.subr.bf16.mxu0 0
        %2004 = vmatpush1.bf16.msra.mxu0 %v1986
        %2005 = vmatprep.subr.bf16.mxu0 0
        %2006 = vmatpush1.bf16.msra.mxu0 %v1987
        %2007 = vmatprep.subr.bf16.mxu0 0
        %2008 = vmatpush1.bf16.msra.mxu0 %v1988
        %2009 = vmatprep.subr.bf16.mxu0 0
        %2010 = vmatpush1.bf16.msra.mxu0 %v1989
        %2011 = vmatprep.subr.bf16.mxu0 0
        %2012 = vmatpush1.bf16.msra.mxu0 %v1990
        %2013 = vmatprep.subr.bf16.mxu0 0
        %2014 = vmatpush1.bf16.msra.mxu0 %v1991
        %2015 = vmatprep.subr.bf16.mxu0 0
        %2016 = vmatpush1.bf16.msra.mxu0 %v1992
        %2017 = vmatprep.subr.bf16.mxu0 0
        %2018 = vmatpush1.bf16.msra.mxu0 0
        %2019 = vmatprep.subr.bf16.mxu0 0
        %2020 = vmatpush1.bf16.msra.mxu0 0
        %2021 = vmatprep.subr.bf16.mxu0 0
        %2022 = vmatpush1.bf16.msra.mxu0 0
        %2023 = vmatprep.subr.bf16.mxu0 0
        %2024 = vmatpush1.bf16.msra.mxu0 0
        %2025 = vmatprep.subr.bf16.mxu0 0
        %2026 = vmatpush1.bf16.msra.mxu0 0
        %2027 = vmatprep.subr.bf16.mxu0 0
        %2028 = vmatpush1.bf16.msra.mxu0 0
        %2029 = vmatprep.subr.bf16.mxu0 0
        %2030 = vmatpush1.bf16.msra.mxu0 0
        %2031 = vmatprep.subr.bf16.mxu0 0
        %2032 = vmatpush1.bf16.msra.mxu0 0
        %2033 = vmatprep.mubr.bf16.mxu0 0
        %2034 = vmatmul.mubr.bf16.gmra.mrb[0].mxu0 %v1945
        %v2035 = vpop.f32.mrb[0].mxu0
        %v2036 = vadd.f32 %v1899, %v2035
        %v2037 = vpop.f32.mrb[0].mxu0
        %v2038 = vpop.f32.mrb[0].mxu0
        %v2039 = vadd.f32 %v1902, %v2038
        %v2040 = vpop.f32.mrb[0].mxu0
        %2041 = vmatprep.mubr.bf16.mxu0 0
        %2042 = vmatmul.mubr.bf16.gmra.mrb[0].mxu0 %v1946
        %v2043 = vpop.f32.mrb[0].mxu0
        %v2044 = vadd.f32 %v1907, %v2043
        %v2045 = vpop.f32.mrb[0].mxu0
        %v2046 = vpop.f32.mrb[0].mxu0
        %v2047 = vadd.f32 %v1910, %v2046
        %v2048 = vpop.f32.mrb[0].mxu0
        %2049 = vmatprep.mubr.bf16.mxu0 0
        %2050 = vmatmul.mubr.bf16.gmra.mrb[0].mxu0 %v1947
        %v2051 = vpop.f32.mrb[0].mxu0
        %v2052 = vadd.f32 %v1915, %v2051
        %v2053 = vpop.f32.mrb[0].mxu0
        %v2054 = vpop.f32.mrb[0].mxu0
        %v2055 = vadd.f32 %v1918, %v2054
        %v2056 = vpop.f32.mrb[0].mxu0
        %2057 = vmatprep.mubr.bf16.mxu0 0
        %2058 = vmatmul.mubr.bf16.gmra.mrb[0].mxu0 %v1948
        %v2059 = vpop.f32.mrb[0].mxu0
        %v2060 = vadd.f32 %v1923, %v2059
        %v2061 = vpop.f32.mrb[0].mxu0
        %v2062 = vpop.f32.mrb[0].mxu0
        %v2063 = vadd.f32 %v1926, %v2062
        %v2064 = vpop.f32.mrb[0].mxu0
        %2065 = vdwg.mxu0
        %v2066 = vld [vmem:[#allocation2] sm:$0xe]
        %v2067 = vld [vmem:[#allocation2 + $0x8] sm:$0xe]
        %v2068 = vld [vmem:[#allocation2 + $0x10] sm:$0xe]
        %v2069 = vld [vmem:[#allocation2 + $0x18] sm:$0xe]
        %v2070 = vld [vmem:[#allocation2 + $0x20] sm:$0xe]
        %v2071 = vld [vmem:[#allocation2 + $0x28] sm:$0xe]
        %v2072 = vld [vmem:[#allocation2 + $0x30] sm:$0xe]
        %v2073 = vld [vmem:[#allocation2 + $0x38] sm:$0xe]
        %vm2090 = vcmask 1042432
        %vm2091 = vcmask 1046532
        %vm2092 = vmor %vm2090, %vm2091
        %v2093 = vrot.slane %v2066, 5
        %v2094 = vrot.slane %v2093, 4
        %v2095 = vrot.slane %v1663, 5
        %v2096 = vsel %vm2092, %v2094, %v2095
        %v2097 = vrot.slane %v2067, 5
        %v2098 = vrot.slane %v2097, 4
        %v2099 = vrot.slane %v1664, 5
        %v2100 = vsel %vm2092, %v2098, %v2099
        %v2101 = vrot.slane %v2068, 5
        %v2102 = vrot.slane %v2101, 4
        %v2103 = vrot.slane %v1665, 5
        %v2104 = vsel %vm2092, %v2102, %v2103
        %v2105 = vrot.slane %v2069, 5
        %v2106 = vrot.slane %v2105, 4
        %v2107 = vrot.slane %v1666, 5
        %v2108 = vsel %vm2092, %v2106, %v2107
        %v2109 = vrot.slane %v2070, 5
        %v2110 = vrot.slane %v2109, 4
        %v2111 = vrot.slane %v1667, 5
        %v2112 = vsel %vm2092, %v2110, %v2111
        %v2113 = vrot.slane %v2071, 5
        %v2114 = vrot.slane %v2113, 4
        %v2115 = vrot.slane %v1668, 5
        %v2116 = vsel %vm2092, %v2114, %v2115
        %v2117 = vrot.slane %v2072, 5
        %v2118 = vrot.slane %v2117, 4
        %v2119 = vrot.slane %v1669, 5
        %v2120 = vsel %vm2092, %v2118, %v2119
        %v2121 = vrot.slane %v2073, 5
        %v2122 = vrot.slane %v2121, 4
        %v2123 = vrot.slane %v1670, 5
        %v2124 = vsel %vm2092, %v2122, %v2123
        %s2125 = scalar_lea.vmem [#allocation3], 128
        %v2126 = vld [vmem:[%s2125] sm:$0xf]
        %v2127 = vld [vmem:[%s2125 + $0x4] sm:$0xf]
        %v2128 = vld [vmem:[%s2125 + $0x8] sm:$0xf]
        %v2129 = vld [vmem:[%s2125 + $0xc] sm:$0xf]
        %v2130 = vld [vmem:[%s2125 + $0x10] sm:$0xf]
        %v2131 = vld [vmem:[%s2125 + $0x14] sm:$0xf]
        %v2132 = vld [vmem:[%s2125 + $0x18] sm:$0xf]
        %v2133 = vld [vmem:[%s2125 + $0x1c] sm:$0xf]
        %v2134 = vld [vmem:[%s2125 + $0x20] sm:$0xf]
        %v2135 = vld [vmem:[%s2125 + $0x24] sm:$0xf]
        %v2136 = vld [vmem:[%s2125 + $0x28] sm:$0xf]
        %v2137 = vld [vmem:[%s2125 + $0x2c] sm:$0xf]
        %v2138 = vld [vmem:[%s2125 + $0x30] sm:$0xf]
        %v2139 = vld [vmem:[%s2125 + $0x34] sm:$0xf]
        %v2140 = vld [vmem:[%s2125 + $0x38] sm:$0xf]
        %v2141 = vld [vmem:[%s2125 + $0x3c] sm:$0xf]
        %v2142 = vunpack.c.l.b16 %v2096
        %v2143 = vunpack.c.l.b16 %v2100
        %v2144 = vunpack.c.l.b16 %v2104
        %v2145 = vunpack.c.l.b16 %v2108
        %v2146 = vunpack.c.l.b16 %v2112
        %v2147 = vunpack.c.l.b16 %v2116
        %v2148 = vunpack.c.l.b16 %v2120
        %v2149 = vunpack.c.l.b16 %v2124
        %v2150 = vpack.c.b16 %v2143, %v2142
        %v2151 = vpack.c.b16 %v2145, %v2144
        %v2152 = vpack.c.b16 %v2147, %v2146
        %v2153 = vpack.c.b16 %v2149, %v2148
        %v2174 = vunpack.c.l.b16 %v2126
        %v2175 = vunpack.c.l.b16 %v2127
        %v2176 = vunpack.c.l.b16 %v2128
        %v2177 = vunpack.c.l.b16 %v2129
        %v2178 = vunpack.c.l.b16 %v2130
        %v2179 = vunpack.c.l.b16 %v2131
        %v2180 = vunpack.c.l.b16 %v2132
        %v2181 = vunpack.c.l.b16 %v2133
        %v2182 = vunpack.c.l.b16 %v2134
        %v2183 = vunpack.c.l.b16 %v2135
        %v2184 = vunpack.c.l.b16 %v2136
        %v2185 = vunpack.c.l.b16 %v2137
        %v2186 = vunpack.c.l.b16 %v2138
        %v2187 = vunpack.c.l.b16 %v2139
        %v2188 = vunpack.c.l.b16 %v2140
        %v2189 = vunpack.c.l.b16 %v2141
        %v2190 = vpack.c.b16 %v2175, %v2174
        %v2191 = vpack.c.b16 %v2177, %v2176
        %v2192 = vpack.c.b16 %v2179, %v2178
        %v2193 = vpack.c.b16 %v2181, %v2180
        %v2194 = vpack.c.b16 %v2183, %v2182
        %v2195 = vpack.c.b16 %v2185, %v2184
        %v2196 = vpack.c.b16 %v2187, %v2186
        %v2197 = vpack.c.b16 %v2189, %v2188
        %2206 = vmatprep.subr.bf16.mxu0 0
        %2207 = vmatpush1.bf16.msra.mxu0 %v2190
        %2208 = vmatprep.subr.bf16.mxu0 0
        %2209 = vmatpush1.bf16.msra.mxu0 %v2191
        %2210 = vmatprep.subr.bf16.mxu0 0
        %2211 = vmatpush1.bf16.msra.mxu0 %v2192
        %2212 = vmatprep.subr.bf16.mxu0 0
        %2213 = vmatpush1.bf16.msra.mxu0 %v2193
        %2214 = vmatprep.subr.bf16.mxu0 0
        %2215 = vmatpush1.bf16.msra.mxu0 %v2194
        %2216 = vmatprep.subr.bf16.mxu0 0
        %2217 = vmatpush1.bf16.msra.mxu0 %v2195
        %2218 = vmatprep.subr.bf16.mxu0 0
        %2219 = vmatpush1.bf16.msra.mxu0 %v2196
        %2220 = vmatprep.subr.bf16.mxu0 0
        %2221 = vmatpush1.bf16.msra.mxu0 %v2197
        %2222 = vmatprep.subr.bf16.mxu0 0
        %2223 = vmatpush1.bf16.msra.mxu0 0
        %2224 = vmatprep.subr.bf16.mxu0 0
        %2225 = vmatpush1.bf16.msra.mxu0 0
        %2226 = vmatprep.subr.bf16.mxu0 0
        %2227 = vmatpush1.bf16.msra.mxu0 0
        %2228 = vmatprep.subr.bf16.mxu0 0
        %2229 = vmatpush1.bf16.msra.mxu0 0
        %2230 = vmatprep.subr.bf16.mxu0 0
        %2231 = vmatpush1.bf16.msra.mxu0 0
        %2232 = vmatprep.subr.bf16.mxu0 0
        %2233 = vmatpush1.bf16.msra.mxu0 0
        %2234 = vmatprep.subr.bf16.mxu0 0
        %2235 = vmatpush1.bf16.msra.mxu0 0
        %2236 = vmatprep.subr.bf16.mxu0 0
        %2237 = vmatpush1.bf16.msra.mxu0 0
        %2238 = vmatprep.mubr.bf16.mxu0 0
        %2239 = vmatmul.mubr.bf16.gmra.mrb[0].mxu0 %v2150
        %v2240 = vpop.f32.mrb[0].mxu0
        %v2241 = vadd.f32 0.0, %v2240
        %v2242 = vpop.f32.mrb[0].mxu0
        %v2243 = vpop.f32.mrb[0].mxu0
        %v2244 = vadd.f32 0.0, %v2243
        %v2245 = vpop.f32.mrb[0].mxu0
        %2246 = vmatprep.mubr.bf16.mxu0 0
        %2247 = vmatmul.mubr.bf16.gmra.mrb[0].mxu0 %v2151
        %v2248 = vpop.f32.mrb[0].mxu0
        %v2249 = vadd.f32 0.0, %v2248
        %v2250 = vpop.f32.mrb[0].mxu0
        %v2251 = vpop.f32.mrb[0].mxu0
        %v2252 = vadd.f32 0.0, %v2251
        %v2253 = vpop.f32.mrb[0].mxu0
        %2254 = vmatprep.mubr.bf16.mxu0 0
        %2255 = vmatmul.mubr.bf16.gmra.mrb[0].mxu0 %v2152
        %v2256 = vpop.f32.mrb[0].mxu0
        %v2257 = vadd.f32 0.0, %v2256
        %v2258 = vpop.f32.mrb[0].mxu0
        %v2259 = vpop.f32.mrb[0].mxu0
        %v2260 = vadd.f32 0.0, %v2259
        %v2261 = vpop.f32.mrb[0].mxu0
        %2262 = vmatprep.mubr.bf16.mxu0 0
        %2263 = vmatmul.mubr.bf16.gmra.mrb[0].mxu0 %v2153
        %v2264 = vpop.f32.mrb[0].mxu0
        %v2265 = vadd.f32 0.0, %v2264
        %v2266 = vpop.f32.mrb[0].mxu0
        %v2267 = vpop.f32.mrb[0].mxu0
        %v2268 = vadd.f32 0.0, %v2267
        %v2269 = vpop.f32.mrb[0].mxu0
        %2270 = vdwg.mxu0
        %v2271 = vadd.f32 %v2036, %v2241
        %v2272 = vadd.f32 %v2039, %v2244
        %v2273 = vadd.f32 %v2044, %v2249
        %v2274 = vadd.f32 %v2047, %v2252
        %v2275 = vadd.f32 %v2052, %v2257
        %v2276 = vadd.f32 %v2055, %v2260
        %v2277 = vadd.f32 %v2060, %v2265
        %v2278 = vadd.f32 %v2063, %v2268
        %s2279 = scalar_lea.vmem [#allocation2], 8
        %v2280 = vld [vmem:[%s2279] sm:$0xf]
        %v2281 = vld [vmem:[%s2279 + $0x8] sm:$0xf]
        %v2282 = vld [vmem:[%s2279 + $0x10] sm:$0xf]
        %v2283 = vld [vmem:[%s2279 + $0x18] sm:$0xf]
        %v2284 = vld [vmem:[%s2279 + $0x20] sm:$0xf]
        %v2285 = vld [vmem:[%s2279 + $0x28] sm:$0xf]
        %v2286 = vld [vmem:[%s2279 + $0x30] sm:$0xf]
        %v2287 = vld [vmem:[%s2279 + $0x38] sm:$0xf]
        %s2288 = scalar_lea.vmem [#allocation3], 192
        %v2289 = vld [vmem:[%s2288] sm:$0xf]
        %v2290 = vld [vmem:[%s2288 + $0x4] sm:$0xf]
        %v2291 = vld [vmem:[%s2288 + $0x8] sm:$0xf]
        %v2292 = vld [vmem:[%s2288 + $0xc] sm:$0xf]
        %v2293 = vld [vmem:[%s2288 + $0x10] sm:$0xf]
        %v2294 = vld [vmem:[%s2288 + $0x14] sm:$0xf]
        %v2295 = vld [vmem:[%s2288 + $0x18] sm:$0xf]
        %v2296 = vld [vmem:[%s2288 + $0x1c] sm:$0xf]
        %v2297 = vld [vmem:[%s2288 + $0x20] sm:$0xf]
        %v2298 = vld [vmem:[%s2288 + $0x24] sm:$0xf]
        %v2299 = vld [vmem:[%s2288 + $0x28] sm:$0xf]
        %v2300 = vld [vmem:[%s2288 + $0x2c] sm:$0xf]
        %v2301 = vld [vmem:[%s2288 + $0x30] sm:$0xf]
        %v2302 = vld [vmem:[%s2288 + $0x34] sm:$0xf]
        %v2303 = vld [vmem:[%s2288 + $0x38] sm:$0xf]
        %v2304 = vld [vmem:[%s2288 + $0x3c] sm:$0xf]
        %v2313 = vunpack.c.l.b16 %v2280
        %v2314 = vunpack.c.l.b16 %v2281
        %v2315 = vunpack.c.l.b16 %v2282
        %v2316 = vunpack.c.l.b16 %v2283
        %v2317 = vunpack.c.l.b16 %v2284
        %v2318 = vunpack.c.l.b16 %v2285
        %v2319 = vunpack.c.l.b16 %v2286
        %v2320 = vunpack.c.l.b16 %v2287
        %v2321 = vpack.c.b16 %v2314, %v2313
        %v2322 = vpack.c.b16 %v2316, %v2315
        %v2323 = vpack.c.b16 %v2318, %v2317
        %v2324 = vpack.c.b16 %v2320, %v2319
        %v2345 = vunpack.c.l.b16 %v2289
        %v2346 = vunpack.c.l.b16 %v2290
        %v2347 = vunpack.c.l.b16 %v2291
        %v2348 = vunpack.c.l.b16 %v2292
        %v2349 = vunpack.c.l.b16 %v2293
        %v2350 = vunpack.c.l.b16 %v2294
        %v2351 = vunpack.c.l.b16 %v2295
        %v2352 = vunpack.c.l.b16 %v2296
        %v2353 = vunpack.c.l.b16 %v2297
        %v2354 = vunpack.c.l.b16 %v2298
        %v2355 = vunpack.c.l.b16 %v2299
        %v2356 = vunpack.c.l.b16 %v2300
        %v2357 = vunpack.c.l.b16 %v2301
        %v2358 = vunpack.c.l.b16 %v2302
        %v2359 = vunpack.c.l.b16 %v2303
        %v2360 = vunpack.c.l.b16 %v2304
        %v2361 = vpack.c.b16 %v2346, %v2345
        %v2362 = vpack.c.b16 %v2348, %v2347
        %v2363 = vpack.c.b16 %v2350, %v2349
        %v2364 = vpack.c.b16 %v2352, %v2351
        %v2365 = vpack.c.b16 %v2354, %v2353
        %v2366 = vpack.c.b16 %v2356, %v2355
        %v2367 = vpack.c.b16 %v2358, %v2357
        %v2368 = vpack.c.b16 %v2360, %v2359
        %2377 = vmatprep.subr.bf16.mxu0 0
        %2378 = vmatpush1.bf16.msra.mxu0 %v2361
        %2379 = vmatprep.subr.bf16.mxu0 0
        %2380 = vmatpush1.bf16.msra.mxu0 %v2362
        %2381 = vmatprep.subr.bf16.mxu0 0
        %2382 = vmatpush1.bf16.msra.mxu0 %v2363
        %2383 = vmatprep.subr.bf16.mxu0 0
        %2384 = vmatpush1.bf16.msra.mxu0 %v2364
        %2385 = vmatprep.subr.bf16.mxu0 0
        %2386 = vmatpush1.bf16.msra.mxu0 %v2365
        %2387 = vmatprep.subr.bf16.mxu0 0
        %2388 = vmatpush1.bf16.msra.mxu0 %v2366
        %2389 = vmatprep.subr.bf16.mxu0 0
        %2390 = vmatpush1.bf16.msra.mxu0 %v2367
        %2391 = vmatprep.subr.bf16.mxu0 0
        %2392 = vmatpush1.bf16.msra.mxu0 %v2368
        %2393 = vmatprep.subr.bf16.mxu0 0
        %2394 = vmatpush1.bf16.msra.mxu0 0
        %2395 = vmatprep.subr.bf16.mxu0 0
        %2396 = vmatpush1.bf16.msra.mxu0 0
        %2397 = vmatprep.subr.bf16.mxu0 0
        %2398 = vmatpush1.bf16.msra.mxu0 0
        %2399 = vmatprep.subr.bf16.mxu0 0
        %2400 = vmatpush1.bf16.msra.mxu0 0
        %2401 = vmatprep.subr.bf16.mxu0 0
        %2402 = vmatpush1.bf16.msra.mxu0 0
        %2403 = vmatprep.subr.bf16.mxu0 0
        %2404 = vmatpush1.bf16.msra.mxu0 0
        %2405 = vmatprep.subr.bf16.mxu0 0
        %2406 = vmatpush1.bf16.msra.mxu0 0
        %2407 = vmatprep.subr.bf16.mxu0 0
        %2408 = vmatpush1.bf16.msra.mxu0 0
        %2409 = vmatprep.mubr.bf16.mxu0 0
        %2410 = vmatmul.mubr.bf16.gmra.mrb[0].mxu0 %v2321
        %v2411 = vpop.f32.mrb[0].mxu0
        %v2412 = vadd.f32 0.0, %v2411
        %v2413 = vpop.f32.mrb[0].mxu0
        %v2414 = vpop.f32.mrb[0].mxu0
        %v2415 = vadd.f32 0.0, %v2414
        %v2416 = vpop.f32.mrb[0].mxu0
        %2417 = vmatprep.mubr.bf16.mxu0 0
        %2418 = vmatmul.mubr.bf16.gmra.mrb[0].mxu0 %v2322
        %v2419 = vpop.f32.mrb[0].mxu0
        %v2420 = vadd.f32 0.0, %v2419
        %v2421 = vpop.f32.mrb[0].mxu0
        %v2422 = vpop.f32.mrb[0].mxu0
        %v2423 = vadd.f32 0.0, %v2422
        %v2424 = vpop.f32.mrb[0].mxu0
        %2425 = vmatprep.mubr.bf16.mxu0 0
        %2426 = vmatmul.mubr.bf16.gmra.mrb[0].mxu0 %v2323
        %v2427 = vpop.f32.mrb[0].mxu0
        %v2428 = vadd.f32 0.0, %v2427
        %v2429 = vpop.f32.mrb[0].mxu0
        %v2430 = vpop.f32.mrb[0].mxu0
        %v2431 = vadd.f32 0.0, %v2430
        %v2432 = vpop.f32.mrb[0].mxu0
        %2433 = vmatprep.mubr.bf16.mxu0 0
        %2434 = vmatmul.mubr.bf16.gmra.mrb[0].mxu0 %v2324
        %v2435 = vpop.f32.mrb[0].mxu0
        %v2436 = vadd.f32 0.0, %v2435
        %v2437 = vpop.f32.mrb[0].mxu0
        %v2438 = vpop.f32.mrb[0].mxu0
        %v2439 = vadd.f32 0.0, %v2438
        %v2440 = vpop.f32.mrb[0].mxu0
        %2441 = vdwg.mxu0
        %v2442 = vadd.f32 %v2271, %v2412
        %v2443 = vadd.f32 %v2272, %v2415
        %v2444 = vadd.f32 %v2273, %v2420
        %v2445 = vadd.f32 %v2274, %v2423
        %v2446 = vadd.f32 %v2275, %v2428
        %v2447 = vadd.f32 %v2276, %v2431
        %v2448 = vadd.f32 %v2277, %v2436
        %v2449 = vadd.f32 %v2278, %v2439
        %v2450 = vld [vmem:[%s2279] sm:$0xf]
        %v2451 = vld [vmem:[%s2279 + $0x4] sm:$0x1]
        %v2452 = vld [vmem:[%s2279 + $0x8] sm:$0xf]
        %v2453 = vld [vmem:[%s2279 + $0xc] sm:$0x1]
        %v2454 = vld [vmem:[%s2279 + $0x10] sm:$0xf]
        %v2455 = vld [vmem:[%s2279 + $0x14] sm:$0x1]
        %v2456 = vld [vmem:[%s2279 + $0x18] sm:$0xf]
        %v2457 = vld [vmem:[%s2279 + $0x1c] sm:$0x1]
        %v2458 = vld [vmem:[%s2279 + $0x20] sm:$0xf]
        %v2459 = vld [vmem:[%s2279 + $0x24] sm:$0x1]
        %v2460 = vld [vmem:[%s2279 + $0x28] sm:$0xf]
        %v2461 = vld [vmem:[%s2279 + $0x2c] sm:$0x1]
        %v2462 = vld [vmem:[%s2279 + $0x30] sm:$0xf]
        %v2463 = vld [vmem:[%s2279 + $0x34] sm:$0x1]
        %v2464 = vld [vmem:[%s2279 + $0x38] sm:$0xf]
        %v2465 = vld [vmem:[%s2279 + $0x3c] sm:$0x1]
        %v2467 = vshrl.u32 %v2450, 16
        %v2469 = vrot.slane %v2467, 4
        %v2470 = vshll.u32 %v2450, 16
        %v2472 = vrot.slane %v2470, 5
        %v2473 = vor.u32 %v2469, %v2472
        %v2474 = vrot.slane %v2473, 4
        %v2476 = vshll.u32 %v2451, 16
        %v2478 = vrot.slane %v2476, 5
        %v2479 = vsel %vm311, %v2474, %v2478
        %v2481 = vshrl.u32 %v2452, 16
        %v2483 = vrot.slane %v2481, 4
        %v2484 = vshll.u32 %v2452, 16
        %v2486 = vrot.slane %v2484, 5
        %v2487 = vor.u32 %v2483, %v2486
        %v2488 = vrot.slane %v2487, 4
        %v2490 = vshll.u32 %v2453, 16
        %v2492 = vrot.slane %v2490, 5
        %v2493 = vsel %vm311, %v2488, %v2492
        %v2495 = vshrl.u32 %v2454, 16
        %v2497 = vrot.slane %v2495, 4
        %v2498 = vshll.u32 %v2454, 16
        %v2500 = vrot.slane %v2498, 5
        %v2501 = vor.u32 %v2497, %v2500
        %v2502 = vrot.slane %v2501, 4
        %v2504 = vshll.u32 %v2455, 16
        %v2506 = vrot.slane %v2504, 5
        %v2507 = vsel %vm311, %v2502, %v2506
        %v2509 = vshrl.u32 %v2456, 16
        %v2511 = vrot.slane %v2509, 4
        %v2512 = vshll.u32 %v2456, 16
        %v2514 = vrot.slane %v2512, 5
        %v2515 = vor.u32 %v2511, %v2514
        %v2516 = vrot.slane %v2515, 4
        %v2518 = vshll.u32 %v2457, 16
        %v2520 = vrot.slane %v2518, 5
        %v2521 = vsel %vm311, %v2516, %v2520
        %v2523 = vshrl.u32 %v2458, 16
        %v2525 = vrot.slane %v2523, 4
        %v2526 = vshll.u32 %v2458, 16
        %v2528 = vrot.slane %v2526, 5
        %v2529 = vor.u32 %v2525, %v2528
        %v2530 = vrot.slane %v2529, 4
        %v2532 = vshll.u32 %v2459, 16
        %v2534 = vrot.slane %v2532, 5
        %v2535 = vsel %vm311, %v2530, %v2534
        %v2537 = vshrl.u32 %v2460, 16
        %v2539 = vrot.slane %v2537, 4
        %v2540 = vshll.u32 %v2460, 16
        %v2542 = vrot.slane %v2540, 5
        %v2543 = vor.u32 %v2539, %v2542
        %v2544 = vrot.slane %v2543, 4
        %v2546 = vshll.u32 %v2461, 16
        %v2548 = vrot.slane %v2546, 5
        %v2549 = vsel %vm311, %v2544, %v2548
        %v2551 = vshrl.u32 %v2462, 16
        %v2553 = vrot.slane %v2551, 4
        %v2554 = vshll.u32 %v2462, 16
        %v2556 = vrot.slane %v2554, 5
        %v2557 = vor.u32 %v2553, %v2556
        %v2558 = vrot.slane %v2557, 4
        %v2560 = vshll.u32 %v2463, 16
        %v2562 = vrot.slane %v2560, 5
        %v2563 = vsel %vm311, %v2558, %v2562
        %v2565 = vshrl.u32 %v2464, 16
        %v2567 = vrot.slane %v2565, 4
        %v2568 = vshll.u32 %v2464, 16
        %v2570 = vrot.slane %v2568, 5
        %v2571 = vor.u32 %v2567, %v2570
        %v2572 = vrot.slane %v2571, 4
        %v2574 = vshll.u32 %v2465, 16
        %v2576 = vrot.slane %v2574, 5
        %v2577 = vsel %vm311, %v2572, %v2576
        %s2578 = scalar_lea.vmem [#allocation3], 256
        %v2579 = vld [vmem:[%s2578] sm:$0xf]
        %v2580 = vld [vmem:[%s2578 + $0x4] sm:$0xf]
        %v2581 = vld [vmem:[%s2578 + $0x8] sm:$0xf]
        %v2582 = vld [vmem:[%s2578 + $0xc] sm:$0xf]
        %v2583 = vld [vmem:[%s2578 + $0x10] sm:$0xf]
        %v2584 = vld [vmem:[%s2578 + $0x14] sm:$0xf]
        %v2585 = vld [vmem:[%s2578 + $0x18] sm:$0xf]
        %v2586 = vld [vmem:[%s2578 + $0x1c] sm:$0xf]
        %v2587 = vld [vmem:[%s2578 + $0x20] sm:$0xf]
        %v2588 = vld [vmem:[%s2578 + $0x24] sm:$0xf]
        %v2589 = vld [vmem:[%s2578 + $0x28] sm:$0xf]
        %v2590 = vld [vmem:[%s2578 + $0x2c] sm:$0xf]
        %v2591 = vld [vmem:[%s2578 + $0x30] sm:$0xf]
        %v2592 = vld [vmem:[%s2578 + $0x34] sm:$0xf]
        %v2593 = vld [vmem:[%s2578 + $0x38] sm:$0xf]
        %v2594 = vld [vmem:[%s2578 + $0x3c] sm:$0xf]
        %v2595 = vunpack.c.l.b16 %v2479
        %v2596 = vunpack.c.l.b16 %v2493
        %v2597 = vunpack.c.l.b16 %v2507
        %v2598 = vunpack.c.l.b16 %v2521
        %v2599 = vunpack.c.l.b16 %v2535
        %v2600 = vunpack.c.l.b16 %v2549
        %v2601 = vunpack.c.l.b16 %v2563
        %v2602 = vunpack.c.l.b16 %v2577
        %v2603 = vpack.c.b16 %v2596, %v2595
        %v2604 = vpack.c.b16 %v2598, %v2597
        %v2605 = vpack.c.b16 %v2600, %v2599
        %v2606 = vpack.c.b16 %v2602, %v2601
        %v2627 = vunpack.c.l.b16 %v2579
        %v2628 = vunpack.c.l.b16 %v2580
        %v2629 = vunpack.c.l.b16 %v2581
        %v2630 = vunpack.c.l.b16 %v2582
        %v2631 = vunpack.c.l.b16 %v2583
        %v2632 = vunpack.c.l.b16 %v2584
        %v2633 = vunpack.c.l.b16 %v2585
        %v2634 = vunpack.c.l.b16 %v2586
        %v2635 = vunpack.c.l.b16 %v2587
        %v2636 = vunpack.c.l.b16 %v2588
        %v2637 = vunpack.c.l.b16 %v2589
        %v2638 = vunpack.c.l.b16 %v2590
        %v2639 = vunpack.c.l.b16 %v2591
        %v2640 = vunpack.c.l.b16 %v2592
        %v2641 = vunpack.c.l.b16 %v2593
        %v2642 = vunpack.c.l.b16 %v2594
        %v2643 = vpack.c.b16 %v2628, %v2627
        %v2644 = vpack.c.b16 %v2630, %v2629
        %v2645 = vpack.c.b16 %v2632, %v2631
        %v2646 = vpack.c.b16 %v2634, %v2633
        %v2647 = vpack.c.b16 %v2636, %v2635
        %v2648 = vpack.c.b16 %v2638, %v2637
        %v2649 = vpack.c.b16 %v2640, %v2639
        %v2650 = vpack.c.b16 %v2642, %v2641
        %2659 = vmatprep.subr.bf16.mxu0 0
        %2660 = vmatpush1.bf16.msra.mxu0 %v2643
        %2661 = vmatprep.subr.bf16.mxu0 0
        %2662 = vmatpush1.bf16.msra.mxu0 %v2644
        %2663 = vmatprep.subr.bf16.mxu0 0
        %2664 = vmatpush1.bf16.msra.mxu0 %v2645
        %2665 = vmatprep.subr.bf16.mxu0 0
        %2666 = vmatpush1.bf16.msra.mxu0 %v2646
        %2667 = vmatprep.subr.bf16.mxu0 0
        %2668 = vmatpush1.bf16.msra.mxu0 %v2647
        %2669 = vmatprep.subr.bf16.mxu0 0
        %2670 = vmatpush1.bf16.msra.mxu0 %v2648
        %2671 = vmatprep.subr.bf16.mxu0 0
        %2672 = vmatpush1.bf16.msra.mxu0 %v2649
        %2673 = vmatprep.subr.bf16.mxu0 0
        %2674 = vmatpush1.bf16.msra.mxu0 %v2650
        %2675 = vmatprep.subr.bf16.mxu0 0
        %2676 = vmatpush1.bf16.msra.mxu0 0
        %2677 = vmatprep.subr.bf16.mxu0 0
        %2678 = vmatpush1.bf16.msra.mxu0 0
        %2679 = vmatprep.subr.bf16.mxu0 0
        %2680 = vmatpush1.bf16.msra.mxu0 0
        %2681 = vmatprep.subr.bf16.mxu0 0
        %2682 = vmatpush1.bf16.msra.mxu0 0
        %2683 = vmatprep.subr.bf16.mxu0 0
        %2684 = vmatpush1.bf16.msra.mxu0 0
        %2685 = vmatprep.subr.bf16.mxu0 0
        %2686 = vmatpush1.bf16.msra.mxu0 0
        %2687 = vmatprep.subr.bf16.mxu0 0
        %2688 = vmatpush1.bf16.msra.mxu0 0
        %2689 = vmatprep.subr.bf16.mxu0 0
        %2690 = vmatpush1.bf16.msra.mxu0 0
        %2691 = vmatprep.mubr.bf16.mxu0 0
        %2692 = vmatmul.mubr.bf16.gmra.mrb[0].mxu0 %v2603
        %v2693 = vpop.f32.mrb[0].mxu0
        %v2694 = vadd.f32 0.0, %v2693
        %v2695 = vpop.f32.mrb[0].mxu0
        %v2696 = vpop.f32.mrb[0].mxu0
        %v2697 = vadd.f32 0.0, %v2696
        %v2698 = vpop.f32.mrb[0].mxu0
        %2699 = vmatprep.mubr.bf16.mxu0 0
        %2700 = vmatmul.mubr.bf16.gmra.mrb[0].mxu0 %v2604
        %v2701 = vpop.f32.mrb[0].mxu0
        %v2702 = vadd.f32 0.0, %v2701
        %v2703 = vpop.f32.mrb[0].mxu0
        %v2704 = vpop.f32.mrb[0].mxu0
        %v2705 = vadd.f32 0.0, %v2704
        %v2706 = vpop.f32.mrb[0].mxu0
        %2707 = vmatprep.mubr.bf16.mxu0 0
        %2708 = vmatmul.mubr.bf16.gmra.mrb[0].mxu0 %v2605
        %v2709 = vpop.f32.mrb[0].mxu0
        %v2710 = vadd.f32 0.0, %v2709
        %v2711 = vpop.f32.mrb[0].mxu0
        %v2712 = vpop.f32.mrb[0].mxu0
        %v2713 = vadd.f32 0.0, %v2712
        %v2714 = vpop.f32.mrb[0].mxu0
        %2715 = vmatprep.mubr.bf16.mxu0 0
        %2716 = vmatmul.mubr.bf16.gmra.mrb[0].mxu0 %v2606
        %v2717 = vpop.f32.mrb[0].mxu0
        %v2718 = vadd.f32 0.0, %v2717
        %v2719 = vpop.f32.mrb[0].mxu0
        %v2720 = vpop.f32.mrb[0].mxu0
        %v2721 = vadd.f32 0.0, %v2720
        %v2722 = vpop.f32.mrb[0].mxu0
        %2723 = vdwg.mxu0
        %v2724 = vadd.f32 %v2442, %v2694
        %v2725 = vadd.f32 %v2443, %v2697
        %v2726 = vadd.f32 %v2444, %v2702
        %v2727 = vadd.f32 %v2445, %v2705
        %v2728 = vadd.f32 %v2446, %v2710
        %v2729 = vadd.f32 %v2447, %v2713
        %v2730 = vadd.f32 %v2448, %v2718
        %v2731 = vadd.f32 %v2449, %v2721
        %v2732 = vld [vmem:[%s2279] sm:$0xe]
        %v2733 = vld [vmem:[%s2279 + $0x8] sm:$0xe]
        %v2734 = vld [vmem:[%s2279 + $0x10] sm:$0xe]
        %v2735 = vld [vmem:[%s2279 + $0x18] sm:$0xe]
        %v2736 = vld [vmem:[%s2279 + $0x20] sm:$0xe]
        %v2737 = vld [vmem:[%s2279 + $0x28] sm:$0xe]
        %v2738 = vld [vmem:[%s2279 + $0x30] sm:$0xe]
        %v2739 = vld [vmem:[%s2279 + $0x38] sm:$0xe]
        %v2756 = vrot.slane %v2732, 5
        %v2757 = vrot.slane %v2756, 4
        %v2758 = vrot.slane %v2451, 5
        %v2759 = vsel %vm2092, %v2757, %v2758
        %v2760 = vrot.slane %v2733, 5
        %v2761 = vrot.slane %v2760, 4
        %v2762 = vrot.slane %v2453, 5
        %v2763 = vsel %vm2092, %v2761, %v2762
        %v2764 = vrot.slane %v2734, 5
        %v2765 = vrot.slane %v2764, 4
        %v2766 = vrot.slane %v2455, 5
        %v2767 = vsel %vm2092, %v2765, %v2766
        %v2768 = vrot.slane %v2735, 5
        %v2769 = vrot.slane %v2768, 4
        %v2770 = vrot.slane %v2457, 5
        %v2771 = vsel %vm2092, %v2769, %v2770
        %v2772 = vrot.slane %v2736, 5
        %v2773 = vrot.slane %v2772, 4
        %v2774 = vrot.slane %v2459, 5
        %v2775 = vsel %vm2092, %v2773, %v2774
        %v2776 = vrot.slane %v2737, 5
        %v2777 = vrot.slane %v2776, 4
        %v2778 = vrot.slane %v2461, 5
        %v2779 = vsel %vm2092, %v2777, %v2778
        %v2780 = vrot.slane %v2738, 5
        %v2781 = vrot.slane %v2780, 4
        %v2782 = vrot.slane %v2463, 5
        %v2783 = vsel %vm2092, %v2781, %v2782
        %v2784 = vrot.slane %v2739, 5
        %v2785 = vrot.slane %v2784, 4
        %v2786 = vrot.slane %v2465, 5
        %v2787 = vsel %vm2092, %v2785, %v2786
        %s2788 = scalar_lea.vmem [#allocation3], 320
        %v2789 = vld [vmem:[%s2788] sm:$0xf]
        %v2790 = vld [vmem:[%s2788 + $0x4] sm:$0xf]
        %v2791 = vld [vmem:[%s2788 + $0x8] sm:$0xf]
        %v2792 = vld [vmem:[%s2788 + $0xc] sm:$0xf]
        %v2793 = vld [vmem:[%s2788 + $0x10] sm:$0xf]
        %v2794 = vld [vmem:[%s2788 + $0x14] sm:$0xf]
        %v2795 = vld [vmem:[%s2788 + $0x18] sm:$0xf]
        %v2796 = vld [vmem:[%s2788 + $0x1c] sm:$0xf]
        %v2797 = vld [vmem:[%s2788 + $0x20] sm:$0xf]
        %v2798 = vld [vmem:[%s2788 + $0x24] sm:$0xf]
        %v2799 = vld [vmem:[%s2788 + $0x28] sm:$0xf]
        %v2800 = vld [vmem:[%s2788 + $0x2c] sm:$0xf]
        %v2801 = vld [vmem:[%s2788 + $0x30] sm:$0xf]
        %v2802 = vld [vmem:[%s2788 + $0x34] sm:$0xf]
        %v2803 = vld [vmem:[%s2788 + $0x38] sm:$0xf]
        %v2804 = vld [vmem:[%s2788 + $0x3c] sm:$0xf]
        %v2805 = vunpack.c.l.b16 %v2759
        %v2806 = vunpack.c.l.b16 %v2763
        %v2807 = vunpack.c.l.b16 %v2767
        %v2808 = vunpack.c.l.b16 %v2771
        %v2809 = vunpack.c.l.b16 %v2775
        %v2810 = vunpack.c.l.b16 %v2779
        %v2811 = vunpack.c.l.b16 %v2783
        %v2812 = vunpack.c.l.b16 %v2787
        %v2813 = vpack.c.b16 %v2806, %v2805
        %v2814 = vpack.c.b16 %v2808, %v2807
        %v2815 = vpack.c.b16 %v2810, %v2809
        %v2816 = vpack.c.b16 %v2812, %v2811
        %v2837 = vunpack.c.l.b16 %v2789
        %v2838 = vunpack.c.l.b16 %v2790
        %v2839 = vunpack.c.l.b16 %v2791
        %v2840 = vunpack.c.l.b16 %v2792
        %v2841 = vunpack.c.l.b16 %v2793
        %v2842 = vunpack.c.l.b16 %v2794
        %v2843 = vunpack.c.l.b16 %v2795
        %v2844 = vunpack.c.l.b16 %v2796
        %v2845 = vunpack.c.l.b16 %v2797
        %v2846 = vunpack.c.l.b16 %v2798
        %v2847 = vunpack.c.l.b16 %v2799
        %v2848 = vunpack.c.l.b16 %v2800
        %v2849 = vunpack.c.l.b16 %v2801
        %v2850 = vunpack.c.l.b16 %v2802
        %v2851 = vunpack.c.l.b16 %v2803
        %v2852 = vunpack.c.l.b16 %v2804
        %v2853 = vpack.c.b16 %v2838, %v2837
        %v2854 = vpack.c.b16 %v2840, %v2839
        %v2855 = vpack.c.b16 %v2842, %v2841
        %v2856 = vpack.c.b16 %v2844, %v2843
        %v2857 = vpack.c.b16 %v2846, %v2845
        %v2858 = vpack.c.b16 %v2848, %v2847
        %v2859 = vpack.c.b16 %v2850, %v2849
        %v2860 = vpack.c.b16 %v2852, %v2851
        %2869 = vmatprep.subr.bf16.mxu0 0
        %2870 = vmatpush1.bf16.msra.mxu0 %v2853
        %2871 = vmatprep.subr.bf16.mxu0 0
        %2872 = vmatpush1.bf16.msra.mxu0 %v2854
        %2873 = vmatprep.subr.bf16.mxu0 0
        %2874 = vmatpush1.bf16.msra.mxu0 %v2855
        %2875 = vmatprep.subr.bf16.mxu0 0
        %2876 = vmatpush1.bf16.msra.mxu0 %v2856
        %2877 = vmatprep.subr.bf16.mxu0 0
        %2878 = vmatpush1.bf16.msra.mxu0 %v2857
        %2879 = vmatprep.subr.bf16.mxu0 0
        %2880 = vmatpush1.bf16.msra.mxu0 %v2858
        %2881 = vmatprep.subr.bf16.mxu0 0
        %2882 = vmatpush1.bf16.msra.mxu0 %v2859
        %2883 = vmatprep.subr.bf16.mxu0 0
        %2884 = vmatpush1.bf16.msra.mxu0 %v2860
        %2885 = vmatprep.subr.bf16.mxu0 0
        %2886 = vmatpush1.bf16.msra.mxu0 0
        %2887 = vmatprep.subr.bf16.mxu0 0
        %2888 = vmatpush1.bf16.msra.mxu0 0
        %2889 = vmatprep.subr.bf16.mxu0 0
        %2890 = vmatpush1.bf16.msra.mxu0 0
        %2891 = vmatprep.subr.bf16.mxu0 0
        %2892 = vmatpush1.bf16.msra.mxu0 0
        %2893 = vmatprep.subr.bf16.mxu0 0
        %2894 = vmatpush1.bf16.msra.mxu0 0
        %2895 = vmatprep.subr.bf16.mxu0 0
        %2896 = vmatpush1.bf16.msra.mxu0 0
        %2897 = vmatprep.subr.bf16.mxu0 0
        %2898 = vmatpush1.bf16.msra.mxu0 0
        %2899 = vmatprep.subr.bf16.mxu0 0
        %2900 = vmatpush1.bf16.msra.mxu0 0
        %2901 = vmatprep.mubr.bf16.mxu0 0
        %2902 = vmatmul.mubr.bf16.gmra.mrb[0].mxu0 %v2813
        %v2903 = vpop.f32.mrb[0].mxu0
        %v2904 = vadd.f32 0.0, %v2903
        %v2905 = vpop.f32.mrb[0].mxu0
        %v2906 = vpop.f32.mrb[0].mxu0
        %v2907 = vadd.f32 0.0, %v2906
        %v2908 = vpop.f32.mrb[0].mxu0
        %2909 = vmatprep.mubr.bf16.mxu0 0
        %2910 = vmatmul.mubr.bf16.gmra.mrb[0].mxu0 %v2814
        %v2911 = vpop.f32.mrb[0].mxu0
        %v2912 = vadd.f32 0.0, %v2911
        %v2913 = vpop.f32.mrb[0].mxu0
        %v2914 = vpop.f32.mrb[0].mxu0
        %v2915 = vadd.f32 0.0, %v2914
        %v2916 = vpop.f32.mrb[0].mxu0
        %2917 = vmatprep.mubr.bf16.mxu0 0
        %2918 = vmatmul.mubr.bf16.gmra.mrb[0].mxu0 %v2815
        %v2919 = vpop.f32.mrb[0].mxu0
        %v2920 = vadd.f32 0.0, %v2919
        %v2921 = vpop.f32.mrb[0].mxu0
        %v2922 = vpop.f32.mrb[0].mxu0
        %v2923 = vadd.f32 0.0, %v2922
        %v2924 = vpop.f32.mrb[0].mxu0
        %2925 = vmatprep.mubr.bf16.mxu0 0
        %2926 = vmatmul.mubr.bf16.gmra.mrb[0].mxu0 %v2816
        %v2927 = vpop.f32.mrb[0].mxu0
        %v2928 = vadd.f32 0.0, %v2927
        %v2929 = vpop.f32.mrb[0].mxu0
        %v2930 = vpop.f32.mrb[0].mxu0
        %v2931 = vadd.f32 0.0, %v2930
        %v2932 = vpop.f32.mrb[0].mxu0
        %2933 = vdwg.mxu0
        %v2934 = vadd.f32 %v2724, %v2904
        %v2935 = vadd.f32 %v2725, %v2907
        %v2936 = vadd.f32 %v2726, %v2912
        %v2937 = vadd.f32 %v2727, %v2915
        %v2938 = vadd.f32 %v2728, %v2920
        %v2939 = vadd.f32 %v2729, %v2923
        %v2940 = vadd.f32 %v2730, %v2928
        %v2941 = vadd.f32 %v2731, %v2931
        %s2942 = scalar_lea.vmem [#allocation2], 16
        %v2943 = vld [vmem:[%s2942] sm:$0xf]
        %v2944 = vld [vmem:[%s2942 + $0x8] sm:$0xf]
        %v2945 = vld [vmem:[%s2942 + $0x10] sm:$0xf]
        %v2946 = vld [vmem:[%s2942 + $0x18] sm:$0xf]
        %v2947 = vld [vmem:[%s2942 + $0x20] sm:$0xf]
        %v2948 = vld [vmem:[%s2942 + $0x28] sm:$0xf]
        %v2949 = vld [vmem:[%s2942 + $0x30] sm:$0xf]
        %v2950 = vld [vmem:[%s2942 + $0x38] sm:$0xf]
        %s2951 = scalar_lea.vmem [#allocation3], 384
        %v2952 = vld [vmem:[%s2951] sm:$0xf]
        %v2953 = vld [vmem:[%s2951 + $0x4] sm:$0xf]
        %v2954 = vld [vmem:[%s2951 + $0x8] sm:$0xf]
        %v2955 = vld [vmem:[%s2951 + $0xc] sm:$0xf]
        %v2956 = vld [vmem:[%s2951 + $0x10] sm:$0xf]
        %v2957 = vld [vmem:[%s2951 + $0x14] sm:$0xf]
        %v2958 = vld [vmem:[%s2951 + $0x18] sm:$0xf]
        %v2959 = vld [vmem:[%s2951 + $0x1c] sm:$0xf]
        %v2960 = vld [vmem:[%s2951 + $0x20] sm:$0xf]
        %v2961 = vld [vmem:[%s2951 + $0x24] sm:$0xf]
        %v2962 = vld [vmem:[%s2951 + $0x28] sm:$0xf]
        %v2963 = vld [vmem:[%s2951 + $0x2c] sm:$0xf]
        %v2964 = vld [vmem:[%s2951 + $0x30] sm:$0xf]
        %v2965 = vld [vmem:[%s2951 + $0x34] sm:$0xf]
        %v2966 = vld [vmem:[%s2951 + $0x38] sm:$0xf]
        %v2967 = vld [vmem:[%s2951 + $0x3c] sm:$0xf]
        %v2976 = vunpack.c.l.b16 %v2943
        %v2977 = vunpack.c.l.b16 %v2944
        %v2978 = vunpack.c.l.b16 %v2945
        %v2979 = vunpack.c.l.b16 %v2946
        %v2980 = vunpack.c.l.b16 %v2947
        %v2981 = vunpack.c.l.b16 %v2948
        %v2982 = vunpack.c.l.b16 %v2949
        %v2983 = vunpack.c.l.b16 %v2950
        %v2984 = vpack.c.b16 %v2977, %v2976
        %v2985 = vpack.c.b16 %v2979, %v2978
        %v2986 = vpack.c.b16 %v2981, %v2980
        %v2987 = vpack.c.b16 %v2983, %v2982
        %v3008 = vunpack.c.l.b16 %v2952
        %v3009 = vunpack.c.l.b16 %v2953
        %v3010 = vunpack.c.l.b16 %v2954
        %v3011 = vunpack.c.l.b16 %v2955
        %v3012 = vunpack.c.l.b16 %v2956
        %v3013 = vunpack.c.l.b16 %v2957
        %v3014 = vunpack.c.l.b16 %v2958
        %v3015 = vunpack.c.l.b16 %v2959
        %v3016 = vunpack.c.l.b16 %v2960
        %v3017 = vunpack.c.l.b16 %v2961
        %v3018 = vunpack.c.l.b16 %v2962
        %v3019 = vunpack.c.l.b16 %v2963
        %v3020 = vunpack.c.l.b16 %v2964
        %v3021 = vunpack.c.l.b16 %v2965
        %v3022 = vunpack.c.l.b16 %v2966
        %v3023 = vunpack.c.l.b16 %v2967
        %v3024 = vpack.c.b16 %v3009, %v3008
        %v3025 = vpack.c.b16 %v3011, %v3010
        %v3026 = vpack.c.b16 %v3013, %v3012
        %v3027 = vpack.c.b16 %v3015, %v3014
        %v3028 = vpack.c.b16 %v3017, %v3016
        %v3029 = vpack.c.b16 %v3019, %v3018
        %v3030 = vpack.c.b16 %v3021, %v3020
        %v3031 = vpack.c.b16 %v3023, %v3022
        %3040 = vmatprep.subr.bf16.mxu0 0
        %3041 = vmatpush1.bf16.msra.mxu0 %v3024
        %3042 = vmatprep.subr.bf16.mxu0 0
        %3043 = vmatpush1.bf16.msra.mxu0 %v3025
        %3044 = vmatprep.subr.bf16.mxu0 0
        %3045 = vmatpush1.bf16.msra.mxu0 %v3026
        %3046 = vmatprep.subr.bf16.mxu0 0
        %3047 = vmatpush1.bf16.msra.mxu0 %v3027
        %3048 = vmatprep.subr.bf16.mxu0 0
        %3049 = vmatpush1.bf16.msra.mxu0 %v3028
        %3050 = vmatprep.subr.bf16.mxu0 0
        %3051 = vmatpush1.bf16.msra.mxu0 %v3029
        %3052 = vmatprep.subr.bf16.mxu0 0
        %3053 = vmatpush1.bf16.msra.mxu0 %v3030
        %3054 = vmatprep.subr.bf16.mxu0 0
        %3055 = vmatpush1.bf16.msra.mxu0 %v3031
        %3056 = vmatprep.subr.bf16.mxu0 0
        %3057 = vmatpush1.bf16.msra.mxu0 0
        %3058 = vmatprep.subr.bf16.mxu0 0
        %3059 = vmatpush1.bf16.msra.mxu0 0
        %3060 = vmatprep.subr.bf16.mxu0 0
        %3061 = vmatpush1.bf16.msra.mxu0 0
        %3062 = vmatprep.subr.bf16.mxu0 0
        %3063 = vmatpush1.bf16.msra.mxu0 0
        %3064 = vmatprep.subr.bf16.mxu0 0
        %3065 = vmatpush1.bf16.msra.mxu0 0
        %3066 = vmatprep.subr.bf16.mxu0 0
        %3067 = vmatpush1.bf16.msra.mxu0 0
        %3068 = vmatprep.subr.bf16.mxu0 0
        %3069 = vmatpush1.bf16.msra.mxu0 0
        %3070 = vmatprep.subr.bf16.mxu0 0
        %3071 = vmatpush1.bf16.msra.mxu0 0
        %3072 = vmatprep.mubr.bf16.mxu0 0
        %3073 = vmatmul.mubr.bf16.gmra.mrb[0].mxu0 %v2984
        %v3074 = vpop.f32.mrb[0].mxu0
        %v3075 = vadd.f32 0.0, %v3074
        %v3076 = vpop.f32.mrb[0].mxu0
        %v3077 = vpop.f32.mrb[0].mxu0
        %v3078 = vadd.f32 0.0, %v3077
        %v3079 = vpop.f32.mrb[0].mxu0
        %3080 = vmatprep.mubr.bf16.mxu0 0
        %3081 = vmatmul.mubr.bf16.gmra.mrb[0].mxu0 %v2985
        %v3082 = vpop.f32.mrb[0].mxu0
        %v3083 = vadd.f32 0.0, %v3082
        %v3084 = vpop.f32.mrb[0].mxu0
        %v3085 = vpop.f32.mrb[0].mxu0
        %v3086 = vadd.f32 0.0, %v3085
        %v3087 = vpop.f32.mrb[0].mxu0
        %3088 = vmatprep.mubr.bf16.mxu0 0
        %3089 = vmatmul.mubr.bf16.gmra.mrb[0].mxu0 %v2986
        %v3090 = vpop.f32.mrb[0].mxu0
        %v3091 = vadd.f32 0.0, %v3090
        %v3092 = vpop.f32.mrb[0].mxu0
        %v3093 = vpop.f32.mrb[0].mxu0
        %v3094 = vadd.f32 0.0, %v3093
        %v3095 = vpop.f32.mrb[0].mxu0
        %3096 = vmatprep.mubr.bf16.mxu0 0
        %3097 = vmatmul.mubr.bf16.gmra.mrb[0].mxu0 %v2987
        %v3098 = vpop.f32.mrb[0].mxu0
        %v3099 = vadd.f32 0.0, %v3098
        %v3100 = vpop.f32.mrb[0].mxu0
        %v3101 = vpop.f32.mrb[0].mxu0
        %v3102 = vadd.f32 0.0, %v3101
        %v3103 = vpop.f32.mrb[0].mxu0
        %3104 = vdwg.mxu0
        %v3105 = vadd.f32 %v2934, %v3075
        %v3106 = vadd.f32 %v2935, %v3078
        %v3107 = vadd.f32 %v2936, %v3083
        %v3108 = vadd.f32 %v2937, %v3086
        %v3109 = vadd.f32 %v2938, %v3091
        %v3110 = vadd.f32 %v2939, %v3094
        %v3111 = vadd.f32 %v2940, %v3099
        %v3112 = vadd.f32 %v2941, %v3102
        %v3113 = vld [vmem:[%s2942] sm:$0xf]
        %v3114 = vld [vmem:[%s2942 + $0x4] sm:$0x1]
        %v3115 = vld [vmem:[%s2942 + $0x8] sm:$0xf]
        %v3116 = vld [vmem:[%s2942 + $0xc] sm:$0x1]
        %v3117 = vld [vmem:[%s2942 + $0x10] sm:$0xf]
        %v3118 = vld [vmem:[%s2942 + $0x14] sm:$0x1]
        %v3119 = vld [vmem:[%s2942 + $0x18] sm:$0xf]
        %v3120 = vld [vmem:[%s2942 + $0x1c] sm:$0x1]
        %v3121 = vld [vmem:[%s2942 + $0x20] sm:$0xf]
        %v3122 = vld [vmem:[%s2942 + $0x24] sm:$0x1]
        %v3123 = vld [vmem:[%s2942 + $0x28] sm:$0xf]
        %v3124 = vld [vmem:[%s2942 + $0x2c] sm:$0x1]
        %v3125 = vld [vmem:[%s2942 + $0x30] sm:$0xf]
        %v3126 = vld [vmem:[%s2942 + $0x34] sm:$0x1]
        %v3127 = vld [vmem:[%s2942 + $0x38] sm:$0xf]
        %v3128 = vld [vmem:[%s2942 + $0x3c] sm:$0x1]
        %v3130 = vshrl.u32 %v3113, 16
        %v3132 = vrot.slane %v3130, 4
        %v3133 = vshll.u32 %v3113, 16
        %v3135 = vrot.slane %v3133, 5
        %v3136 = vor.u32 %v3132, %v3135
        %v3137 = vrot.slane %v3136, 4
        %v3139 = vshll.u32 %v3114, 16
        %v3141 = vrot.slane %v3139, 5
        %v3142 = vsel %vm311, %v3137, %v3141
        %v3144 = vshrl.u32 %v3115, 16
        %v3146 = vrot.slane %v3144, 4
        %v3147 = vshll.u32 %v3115, 16
        %v3149 = vrot.slane %v3147, 5
        %v3150 = vor.u32 %v3146, %v3149
        %v3151 = vrot.slane %v3150, 4
        %v3153 = vshll.u32 %v3116, 16
        %v3155 = vrot.slane %v3153, 5
        %v3156 = vsel %vm311, %v3151, %v3155
        %v3158 = vshrl.u32 %v3117, 16
        %v3160 = vrot.slane %v3158, 4
        %v3161 = vshll.u32 %v3117, 16
        %v3163 = vrot.slane %v3161, 5
        %v3164 = vor.u32 %v3160, %v3163
        %v3165 = vrot.slane %v3164, 4
        %v3167 = vshll.u32 %v3118, 16
        %v3169 = vrot.slane %v3167, 5
        %v3170 = vsel %vm311, %v3165, %v3169
        %v3172 = vshrl.u32 %v3119, 16
        %v3174 = vrot.slane %v3172, 4
        %v3175 = vshll.u32 %v3119, 16
        %v3177 = vrot.slane %v3175, 5
        %v3178 = vor.u32 %v3174, %v3177
        %v3179 = vrot.slane %v3178, 4
        %v3181 = vshll.u32 %v3120, 16
        %v3183 = vrot.slane %v3181, 5
        %v3184 = vsel %vm311, %v3179, %v3183
        %v3186 = vshrl.u32 %v3121, 16
        %v3188 = vrot.slane %v3186, 4
        %v3189 = vshll.u32 %v3121, 16
        %v3191 = vrot.slane %v3189, 5
        %v3192 = vor.u32 %v3188, %v3191
        %v3193 = vrot.slane %v3192, 4
        %v3195 = vshll.u32 %v3122, 16
        %v3197 = vrot.slane %v3195, 5
        %v3198 = vsel %vm311, %v3193, %v3197
        %v3200 = vshrl.u32 %v3123, 16
        %v3202 = vrot.slane %v3200, 4
        %v3203 = vshll.u32 %v3123, 16
        %v3205 = vrot.slane %v3203, 5
        %v3206 = vor.u32 %v3202, %v3205
        %v3207 = vrot.slane %v3206, 4
        %v3209 = vshll.u32 %v3124, 16
        %v3211 = vrot.slane %v3209, 5
        %v3212 = vsel %vm311, %v3207, %v3211
        %v3214 = vshrl.u32 %v3125, 16
        %v3216 = vrot.slane %v3214, 4
        %v3217 = vshll.u32 %v3125, 16
        %v3219 = vrot.slane %v3217, 5
        %v3220 = vor.u32 %v3216, %v3219
        %v3221 = vrot.slane %v3220, 4
        %v3223 = vshll.u32 %v3126, 16
        %v3225 = vrot.slane %v3223, 5
        %v3226 = vsel %vm311, %v3221, %v3225
        %v3228 = vshrl.u32 %v3127, 16
        %v3230 = vrot.slane %v3228, 4
        %v3231 = vshll.u32 %v3127, 16
        %v3233 = vrot.slane %v3231, 5
        %v3234 = vor.u32 %v3230, %v3233
        %v3235 = vrot.slane %v3234, 4
        %v3237 = vshll.u32 %v3128, 16
        %v3239 = vrot.slane %v3237, 5
        %v3240 = vsel %vm311, %v3235, %v3239
        %s3241 = scalar_lea.vmem [#allocation3], 448
        %v3242 = vld [vmem:[%s3241] sm:$0xf]
        %v3243 = vld [vmem:[%s3241 + $0x4] sm:$0xf]
        %v3244 = vld [vmem:[%s3241 + $0x8] sm:$0xf]
        %v3245 = vld [vmem:[%s3241 + $0xc] sm:$0xf]
        %v3246 = vld [vmem:[%s3241 + $0x10] sm:$0xf]
        %v3247 = vld [vmem:[%s3241 + $0x14] sm:$0xf]
        %v3248 = vld [vmem:[%s3241 + $0x18] sm:$0xf]
        %v3249 = vld [vmem:[%s3241 + $0x1c] sm:$0xf]
        %v3250 = vld [vmem:[%s3241 + $0x20] sm:$0xf]
        %v3251 = vld [vmem:[%s3241 + $0x24] sm:$0xf]
        %v3252 = vld [vmem:[%s3241 + $0x28] sm:$0xf]
        %v3253 = vld [vmem:[%s3241 + $0x2c] sm:$0xf]
        %v3254 = vld [vmem:[%s3241 + $0x30] sm:$0xf]
        %v3255 = vld [vmem:[%s3241 + $0x34] sm:$0xf]
        %v3256 = vld [vmem:[%s3241 + $0x38] sm:$0xf]
        %v3257 = vld [vmem:[%s3241 + $0x3c] sm:$0xf]
        %v3258 = vunpack.c.l.b16 %v3142
        %v3259 = vunpack.c.l.b16 %v3156
        %v3260 = vunpack.c.l.b16 %v3170
        %v3261 = vunpack.c.l.b16 %v3184
        %v3262 = vunpack.c.l.b16 %v3198
        %v3263 = vunpack.c.l.b16 %v3212
        %v3264 = vunpack.c.l.b16 %v3226
        %v3265 = vunpack.c.l.b16 %v3240
        %v3266 = vpack.c.b16 %v3259, %v3258
        %v3267 = vpack.c.b16 %v3261, %v3260
        %v3268 = vpack.c.b16 %v3263, %v3262
        %v3269 = vpack.c.b16 %v3265, %v3264
        %v3290 = vunpack.c.l.b16 %v3242
        %v3291 = vunpack.c.l.b16 %v3243
        %v3292 = vunpack.c.l.b16 %v3244
        %v3293 = vunpack.c.l.b16 %v3245
        %v3294 = vunpack.c.l.b16 %v3246
        %v3295 = vunpack.c.l.b16 %v3247
        %v3296 = vunpack.c.l.b16 %v3248
        %v3297 = vunpack.c.l.b16 %v3249
        %v3298 = vunpack.c.l.b16 %v3250
        %v3299 = vunpack.c.l.b16 %v3251
        %v3300 = vunpack.c.l.b16 %v3252
        %v3301 = vunpack.c.l.b16 %v3253
        %v3302 = vunpack.c.l.b16 %v3254
        %v3303 = vunpack.c.l.b16 %v3255
        %v3304 = vunpack.c.l.b16 %v3256
        %v3305 = vunpack.c.l.b16 %v3257
        %v3306 = vpack.c.b16 %v3291, %v3290
        %v3307 = vpack.c.b16 %v3293, %v3292
        %v3308 = vpack.c.b16 %v3295, %v3294
        %v3309 = vpack.c.b16 %v3297, %v3296
        %v3310 = vpack.c.b16 %v3299, %v3298
        %v3311 = vpack.c.b16 %v3301, %v3300
        %v3312 = vpack.c.b16 %v3303, %v3302
        %v3313 = vpack.c.b16 %v3305, %v3304
        %3322 = vmatprep.subr.bf16.mxu0 0
        %3323 = vmatpush1.bf16.msra.mxu0 %v3306
        %3324 = vmatprep.subr.bf16.mxu0 0
        %3325 = vmatpush1.bf16.msra.mxu0 %v3307
        %3326 = vmatprep.subr.bf16.mxu0 0
        %3327 = vmatpush1.bf16.msra.mxu0 %v3308
        %3328 = vmatprep.subr.bf16.mxu0 0
        %3329 = vmatpush1.bf16.msra.mxu0 %v3309
        %3330 = vmatprep.subr.bf16.mxu0 0
        %3331 = vmatpush1.bf16.msra.mxu0 %v3310
        %3332 = vmatprep.subr.bf16.mxu0 0
        %3333 = vmatpush1.bf16.msra.mxu0 %v3311
        %3334 = vmatprep.subr.bf16.mxu0 0
        %3335 = vmatpush1.bf16.msra.mxu0 %v3312
        %3336 = vmatprep.subr.bf16.mxu0 0
        %3337 = vmatpush1.bf16.msra.mxu0 %v3313
        %3338 = vmatprep.subr.bf16.mxu0 0
        %3339 = vmatpush1.bf16.msra.mxu0 0
        %3340 = vmatprep.subr.bf16.mxu0 0
        %3341 = vmatpush1.bf16.msra.mxu0 0
        %3342 = vmatprep.subr.bf16.mxu0 0
        %3343 = vmatpush1.bf16.msra.mxu0 0
        %3344 = vmatprep.subr.bf16.mxu0 0
        %3345 = vmatpush1.bf16.msra.mxu0 0
        %3346 = vmatprep.subr.bf16.mxu0 0
        %3347 = vmatpush1.bf16.msra.mxu0 0
        %3348 = vmatprep.subr.bf16.mxu0 0
        %3349 = vmatpush1.bf16.msra.mxu0 0
        %3350 = vmatprep.subr.bf16.mxu0 0
        %3351 = vmatpush1.bf16.msra.mxu0 0
        %3352 = vmatprep.subr.bf16.mxu0 0
        %3353 = vmatpush1.bf16.msra.mxu0 0
        %3354 = vmatprep.mubr.bf16.mxu0 0
        %3355 = vmatmul.mubr.bf16.gmra.mrb[0].mxu0 %v3266
        %v3356 = vpop.f32.mrb[0].mxu0
        %v3357 = vadd.f32 0.0, %v3356
        %v3358 = vpop.f32.mrb[0].mxu0
        %v3359 = vpop.f32.mrb[0].mxu0
        %v3360 = vadd.f32 0.0, %v3359
        %v3361 = vpop.f32.mrb[0].mxu0
        %3362 = vmatprep.mubr.bf16.mxu0 0
        %3363 = vmatmul.mubr.bf16.gmra.mrb[0].mxu0 %v3267
        %v3364 = vpop.f32.mrb[0].mxu0
        %v3365 = vadd.f32 0.0, %v3364
        %v3366 = vpop.f32.mrb[0].mxu0
        %v3367 = vpop.f32.mrb[0].mxu0
        %v3368 = vadd.f32 0.0, %v3367
        %v3369 = vpop.f32.mrb[0].mxu0
        %3370 = vmatprep.mubr.bf16.mxu0 0
        %3371 = vmatmul.mubr.bf16.gmra.mrb[0].mxu0 %v3268
        %v3372 = vpop.f32.mrb[0].mxu0
        %v3373 = vadd.f32 0.0, %v3372
        %v3374 = vpop.f32.mrb[0].mxu0
        %v3375 = vpop.f32.mrb[0].mxu0
        %v3376 = vadd.f32 0.0, %v3375
        %v3377 = vpop.f32.mrb[0].mxu0
        %3378 = vmatprep.mubr.bf16.mxu0 0
        %3379 = vmatmul.mubr.bf16.gmra.mrb[0].mxu0 %v3269
        %v3380 = vpop.f32.mrb[0].mxu0
        %v3381 = vadd.f32 0.0, %v3380
        %v3382 = vpop.f32.mrb[0].mxu0
        %v3383 = vpop.f32.mrb[0].mxu0
        %v3384 = vadd.f32 0.0, %v3383
        %v3385 = vpop.f32.mrb[0].mxu0
        %3386 = vdwg.mxu0
        %v3387 = vadd.f32 %v3105, %v3357
        %v3388 = vadd.f32 %v3106, %v3360
        %v3389 = vadd.f32 %v3107, %v3365
        %v3390 = vadd.f32 %v3108, %v3368
        %v3391 = vadd.f32 %v3109, %v3373
        %v3392 = vadd.f32 %v3110, %v3376
        %v3393 = vadd.f32 %v3111, %v3381
        %v3394 = vadd.f32 %v3112, %v3384
        %v3395 = vld [vmem:[%s2942] sm:$0xe]
        %v3396 = vld [vmem:[%s2942 + $0x8] sm:$0xe]
        %v3397 = vld [vmem:[%s2942 + $0x10] sm:$0xe]
        %v3398 = vld [vmem:[%s2942 + $0x18] sm:$0xe]
        %v3399 = vld [vmem:[%s2942 + $0x20] sm:$0xe]
        %v3400 = vld [vmem:[%s2942 + $0x28] sm:$0xe]
        %v3401 = vld [vmem:[%s2942 + $0x30] sm:$0xe]
        %v3402 = vld [vmem:[%s2942 + $0x38] sm:$0xe]
        %v3419 = vrot.slane %v3395, 5
        %v3420 = vrot.slane %v3419, 4
        %v3421 = vrot.slane %v3114, 5
        %v3422 = vsel %vm2092, %v3420, %v3421
        %v3423 = vrot.slane %v3396, 5
        %v3424 = vrot.slane %v3423, 4
        %v3425 = vrot.slane %v3116, 5
        %v3426 = vsel %vm2092, %v3424, %v3425
        %v3427 = vrot.slane %v3397, 5
        %v3428 = vrot.slane %v3427, 4
        %v3429 = vrot.slane %v3118, 5
        %v3430 = vsel %vm2092, %v3428, %v3429
        %v3431 = vrot.slane %v3398, 5
        %v3432 = vrot.slane %v3431, 4
        %v3433 = vrot.slane %v3120, 5
        %v3434 = vsel %vm2092, %v3432, %v3433
        %v3435 = vrot.slane %v3399, 5
        %v3436 = vrot.slane %v3435, 4
        %v3437 = vrot.slane %v3122, 5
        %v3438 = vsel %vm2092, %v3436, %v3437
        %v3439 = vrot.slane %v3400, 5
        %v3440 = vrot.slane %v3439, 4
        %v3441 = vrot.slane %v3124, 5
        %v3442 = vsel %vm2092, %v3440, %v3441
        %v3443 = vrot.slane %v3401, 5
        %v3444 = vrot.slane %v3443, 4
        %v3445 = vrot.slane %v3126, 5
        %v3446 = vsel %vm2092, %v3444, %v3445
        %v3447 = vrot.slane %v3402, 5
        %v3448 = vrot.slane %v3447, 4
        %v3449 = vrot.slane %v3128, 5
        %v3450 = vsel %vm2092, %v3448, %v3449
        %s3451 = scalar_lea.vmem [#allocation3], 512
        %v3452 = vld [vmem:[%s3451] sm:$0xf]
        %v3453 = vld [vmem:[%s3451 + $0x4] sm:$0xf]
        %v3454 = vld [vmem:[%s3451 + $0x8] sm:$0xf]
        %v3455 = vld [vmem:[%s3451 + $0xc] sm:$0xf]
        %v3456 = vld [vmem:[%s3451 + $0x10] sm:$0xf]
        %v3457 = vld [vmem:[%s3451 + $0x14] sm:$0xf]
        %v3458 = vld [vmem:[%s3451 + $0x18] sm:$0xf]
        %v3459 = vld [vmem:[%s3451 + $0x1c] sm:$0xf]
        %v3460 = vld [vmem:[%s3451 + $0x20] sm:$0xf]
        %v3461 = vld [vmem:[%s3451 + $0x24] sm:$0xf]
        %v3462 = vld [vmem:[%s3451 + $0x28] sm:$0xf]
        %v3463 = vld [vmem:[%s3451 + $0x2c] sm:$0xf]
        %v3464 = vld [vmem:[%s3451 + $0x30] sm:$0xf]
        %v3465 = vld [vmem:[%s3451 + $0x34] sm:$0xf]
        %v3466 = vld [vmem:[%s3451 + $0x38] sm:$0xf]
        %v3467 = vld [vmem:[%s3451 + $0x3c] sm:$0xf]
        %v3468 = vunpack.c.l.b16 %v3422
        %v3469 = vunpack.c.l.b16 %v3426
        %v3470 = vunpack.c.l.b16 %v3430
        %v3471 = vunpack.c.l.b16 %v3434
        %v3472 = vunpack.c.l.b16 %v3438
        %v3473 = vunpack.c.l.b16 %v3442
        %v3474 = vunpack.c.l.b16 %v3446
        %v3475 = vunpack.c.l.b16 %v3450
        %v3476 = vpack.c.b16 %v3469, %v3468
        %v3477 = vpack.c.b16 %v3471, %v3470
        %v3478 = vpack.c.b16 %v3473, %v3472
        %v3479 = vpack.c.b16 %v3475, %v3474
        %v3500 = vunpack.c.l.b16 %v3452
        %v3501 = vunpack.c.l.b16 %v3453
        %v3502 = vunpack.c.l.b16 %v3454
        %v3503 = vunpack.c.l.b16 %v3455
        %v3504 = vunpack.c.l.b16 %v3456
        %v3505 = vunpack.c.l.b16 %v3457
        %v3506 = vunpack.c.l.b16 %v3458
        %v3507 = vunpack.c.l.b16 %v3459
        %v3508 = vunpack.c.l.b16 %v3460
        %v3509 = vunpack.c.l.b16 %v3461
        %v3510 = vunpack.c.l.b16 %v3462
        %v3511 = vunpack.c.l.b16 %v3463
        %v3512 = vunpack.c.l.b16 %v3464
        %v3513 = vunpack.c.l.b16 %v3465
        %v3514 = vunpack.c.l.b16 %v3466
        %v3515 = vunpack.c.l.b16 %v3467
        %v3516 = vpack.c.b16 %v3501, %v3500
        %v3517 = vpack.c.b16 %v3503, %v3502
        %v3518 = vpack.c.b16 %v3505, %v3504
        %v3519 = vpack.c.b16 %v3507, %v3506
        %v3520 = vpack.c.b16 %v3509, %v3508
        %v3521 = vpack.c.b16 %v3511, %v3510
        %v3522 = vpack.c.b16 %v3513, %v3512
        %v3523 = vpack.c.b16 %v3515, %v3514
        %3532 = vmatprep.subr.bf16.mxu0 0
        %3533 = vmatpush1.bf16.msra.mxu0 %v3516
        %3534 = vmatprep.subr.bf16.mxu0 0
        %3535 = vmatpush1.bf16.msra.mxu0 %v3517
        %3536 = vmatprep.subr.bf16.mxu0 0
        %3537 = vmatpush1.bf16.msra.mxu0 %v3518
        %3538 = vmatprep.subr.bf16.mxu0 0
        %3539 = vmatpush1.bf16.msra.mxu0 %v3519
        %3540 = vmatprep.subr.bf16.mxu0 0
        %3541 = vmatpush1.bf16.msra.mxu0 %v3520
        %3542 = vmatprep.subr.bf16.mxu0 0
        %3543 = vmatpush1.bf16.msra.mxu0 %v3521
        %3544 = vmatprep.subr.bf16.mxu0 0
        %3545 = vmatpush1.bf16.msra.mxu0 %v3522
        %3546 = vmatprep.subr.bf16.mxu0 0
        %3547 = vmatpush1.bf16.msra.mxu0 %v3523
        %3548 = vmatprep.subr.bf16.mxu0 0
        %3549 = vmatpush1.bf16.msra.mxu0 0
        %3550 = vmatprep.subr.bf16.mxu0 0
        %3551 = vmatpush1.bf16.msra.mxu0 0
        %3552 = vmatprep.subr.bf16.mxu0 0
        %3553 = vmatpush1.bf16.msra.mxu0 0
        %3554 = vmatprep.subr.bf16.mxu0 0
        %3555 = vmatpush1.bf16.msra.mxu0 0
        %3556 = vmatprep.subr.bf16.mxu0 0
        %3557 = vmatpush1.bf16.msra.mxu0 0
        %3558 = vmatprep.subr.bf16.mxu0 0
        %3559 = vmatpush1.bf16.msra.mxu0 0
        %3560 = vmatprep.subr.bf16.mxu0 0
        %3561 = vmatpush1.bf16.msra.mxu0 0
        %3562 = vmatprep.subr.bf16.mxu0 0
        %3563 = vmatpush1.bf16.msra.mxu0 0
        %3564 = vmatprep.mubr.bf16.mxu0 0
        %3565 = vmatmul.mubr.bf16.gmra.mrb[0].mxu0 %v3476
        %v3566 = vpop.f32.mrb[0].mxu0
        %v3567 = vadd.f32 0.0, %v3566
        %v3568 = vpop.f32.mrb[0].mxu0
        %v3569 = vpop.f32.mrb[0].mxu0
        %v3570 = vadd.f32 0.0, %v3569
        %v3571 = vpop.f32.mrb[0].mxu0
        %3572 = vmatprep.mubr.bf16.mxu0 0
        %3573 = vmatmul.mubr.bf16.gmra.mrb[0].mxu0 %v3477
        %v3574 = vpop.f32.mrb[0].mxu0
        %v3575 = vadd.f32 0.0, %v3574
        %v3576 = vpop.f32.mrb[0].mxu0
        %v3577 = vpop.f32.mrb[0].mxu0
        %v3578 = vadd.f32 0.0, %v3577
        %v3579 = vpop.f32.mrb[0].mxu0
        %3580 = vmatprep.mubr.bf16.mxu0 0
        %3581 = vmatmul.mubr.bf16.gmra.mrb[0].mxu0 %v3478
        %v3582 = vpop.f32.mrb[0].mxu0
        %v3583 = vadd.f32 0.0, %v3582
        %v3584 = vpop.f32.mrb[0].mxu0
        %v3585 = vpop.f32.mrb[0].mxu0
        %v3586 = vadd.f32 0.0, %v3585
        %v3587 = vpop.f32.mrb[0].mxu0
        %3588 = vmatprep.mubr.bf16.mxu0 0
        %3589 = vmatmul.mubr.bf16.gmra.mrb[0].mxu0 %v3479
        %v3590 = vpop.f32.mrb[0].mxu0
        %v3591 = vadd.f32 0.0, %v3590
        %v3592 = vpop.f32.mrb[0].mxu0
        %v3593 = vpop.f32.mrb[0].mxu0
        %v3594 = vadd.f32 0.0, %v3593
        %v3595 = vpop.f32.mrb[0].mxu0
        %3596 = vdwg.mxu0
        %v3597 = vadd.f32 %v3387, %v3567
        %v3598 = vadd.f32 %v3388, %v3570
        %v3599 = vadd.f32 %v3389, %v3575
        %v3600 = vadd.f32 %v3390, %v3578
        %v3601 = vadd.f32 %v3391, %v3583
        %v3602 = vadd.f32 %v3392, %v3586
        %v3603 = vadd.f32 %v3393, %v3591
        %v3604 = vadd.f32 %v3394, %v3594
        %v3605 = vld [vmem:[%s4 + $0x2] sm:$0x1]
        %v3606 = vlaneseq
        %v3607 = vshrl.u32 %v3606, 7
        %v3608 = vsub.s32 0, %v3607
        %v3609 = vrot.slane %v3605, %v3608
        %v3610 = vmul.f32 %v3597, %v3609
        %v3611 = vmul.f32 %v3598, %v3609
        %v3612 = vmul.f32 %v3599, %v3609
        %v3613 = vmul.f32 %v3600, %v3609
        %v3614 = vmul.f32 %v3601, %v3609
        %v3615 = vmul.f32 %v3602, %v3609
        %v3616 = vmul.f32 %v3603, %v3609
        %v3617 = vmul.f32 %v3604, %v3609
        %v3618 = vld [vmem:[%s4 + $0x3] sm:$0x1]
        %v3619 = vlaneseq
        %v3620 = vshrl.u32 %v3619, 7
        %v3621 = vsub.s32 0, %v3620
        %v3622 = vrot.slane %v3618, %v3621
        %v3623 = vadd.f32 %v3610, %v3622
        %v3624 = vadd.f32 %v3611, %v3622
        %v3625 = vadd.f32 %v3612, %v3622
        %v3626 = vadd.f32 %v3613, %v3622
        %v3627 = vadd.f32 %v3614, %v3622
        %v3628 = vadd.f32 %v3615, %v3622
        %v3629 = vadd.f32 %v3616, %v3622
        %v3630 = vadd.f32 %v3617, %v3622
        %s3631 = sadd.s32 %s269, 2
        %s3632 = smul.u32 %s3631, 2
        %s3633 = smul.addr %s3632, 4
        %s3634 = scalar_lea.vmem %s266, %s3633
        %v3635 = vld [vmem:[%s3634] sm:$0xf]
        %v3636 = vld [vmem:[%s3634 + $0x4] sm:$0x1]
        %v3637 = vld [vmem:[%s3634 + $0x8] sm:$0xf]
        %v3638 = vld [vmem:[%s3634 + $0xc] sm:$0x1]
        %v3639 = vld [vmem:[%s3634 + $0x10] sm:$0xf]
        %v3640 = vld [vmem:[%s3634 + $0x14] sm:$0x1]
        %v3641 = vld [vmem:[%s3634 + $0x18] sm:$0xf]
        %v3642 = vld [vmem:[%s3634 + $0x1c] sm:$0x1]
        %v3643 = vld [vmem:[%s3634 + $0x20] sm:$0xf]
        %v3644 = vld [vmem:[%s3634 + $0x24] sm:$0x1]
        %v3645 = vld [vmem:[%s3634 + $0x28] sm:$0xf]
        %v3646 = vld [vmem:[%s3634 + $0x2c] sm:$0x1]
        %v3647 = vld [vmem:[%s3634 + $0x30] sm:$0xf]
        %v3648 = vld [vmem:[%s3634 + $0x34] sm:$0x1]
        %v3649 = vld [vmem:[%s3634 + $0x38] sm:$0xf]
        %v3650 = vld [vmem:[%s3634 + $0x3c] sm:$0x1]
        %v3652 = vshrl.u32 %v3635, 16
        %v3654 = vrot.slane %v3652, 4
        %v3655 = vshll.u32 %v3635, 16
        %v3657 = vrot.slane %v3655, 5
        %v3658 = vor.u32 %v3654, %v3657
        %v3659 = vrot.slane %v3658, 4
        %v3661 = vshll.u32 %v3636, 16
        %v3663 = vrot.slane %v3661, 5
        %v3664 = vsel %vm311, %v3659, %v3663
        %v3666 = vshrl.u32 %v3637, 16
        %v3668 = vrot.slane %v3666, 4
        %v3669 = vshll.u32 %v3637, 16
        %v3671 = vrot.slane %v3669, 5
        %v3672 = vor.u32 %v3668, %v3671
        %v3673 = vrot.slane %v3672, 4
        %v3675 = vshll.u32 %v3638, 16
        %v3677 = vrot.slane %v3675, 5
        %v3678 = vsel %vm311, %v3673, %v3677
        %v3680 = vshrl.u32 %v3639, 16
        %v3682 = vrot.slane %v3680, 4
        %v3683 = vshll.u32 %v3639, 16
        %v3685 = vrot.slane %v3683, 5
        %v3686 = vor.u32 %v3682, %v3685
        %v3687 = vrot.slane %v3686, 4
        %v3689 = vshll.u32 %v3640, 16
        %v3691 = vrot.slane %v3689, 5
        %v3692 = vsel %vm311, %v3687, %v3691
        %v3694 = vshrl.u32 %v3641, 16
        %v3696 = vrot.slane %v3694, 4
        %v3697 = vshll.u32 %v3641, 16
        %v3699 = vrot.slane %v3697, 5
        %v3700 = vor.u32 %v3696, %v3699
        %v3701 = vrot.slane %v3700, 4
        %v3703 = vshll.u32 %v3642, 16
        %v3705 = vrot.slane %v3703, 5
        %v3706 = vsel %vm311, %v3701, %v3705
        %v3708 = vshrl.u32 %v3643, 16
        %v3710 = vrot.slane %v3708, 4
        %v3711 = vshll.u32 %v3643, 16
        %v3713 = vrot.slane %v3711, 5
        %v3714 = vor.u32 %v3710, %v3713
        %v3715 = vrot.slane %v3714, 4
        %v3717 = vshll.u32 %v3644, 16
        %v3719 = vrot.slane %v3717, 5
        %v3720 = vsel %vm311, %v3715, %v3719
        %v3722 = vshrl.u32 %v3645, 16
        %v3724 = vrot.slane %v3722, 4
        %v3725 = vshll.u32 %v3645, 16
        %v3727 = vrot.slane %v3725, 5
        %v3728 = vor.u32 %v3724, %v3727
        %v3729 = vrot.slane %v3728, 4
        %v3731 = vshll.u32 %v3646, 16
        %v3733 = vrot.slane %v3731, 5
        %v3734 = vsel %vm311, %v3729, %v3733
        %v3736 = vshrl.u32 %v3647, 16
        %v3738 = vrot.slane %v3736, 4
        %v3739 = vshll.u32 %v3647, 16
        %v3741 = vrot.slane %v3739, 5
        %v3742 = vor.u32 %v3738, %v3741
        %v3743 = vrot.slane %v3742, 4
        %v3745 = vshll.u32 %v3648, 16
        %v3747 = vrot.slane %v3745, 5
        %v3748 = vsel %vm311, %v3743, %v3747
        %v3750 = vshrl.u32 %v3649, 16
        %v3752 = vrot.slane %v3750, 4
        %v3753 = vshll.u32 %v3649, 16
        %v3755 = vrot.slane %v3753, 5
        %v3756 = vor.u32 %v3752, %v3755
        %v3757 = vrot.slane %v3756, 4
        %v3759 = vshll.u32 %v3650, 16
        %v3761 = vrot.slane %v3759, 5
        %v3762 = vsel %vm311, %v3757, %v3761
        %v3763 = vld [vmem:[#allocation6] sm:$0xf]
        %v3764 = vld [vmem:[#allocation6 + $0x4] sm:$0xf]
        %v3765 = vld [vmem:[#allocation6 + $0x8] sm:$0xf]
        %v3766 = vld [vmem:[#allocation6 + $0xc] sm:$0xf]
        %v3767 = vld [vmem:[#allocation6 + $0x10] sm:$0xf]
        %v3768 = vld [vmem:[#allocation6 + $0x14] sm:$0xf]
        %v3769 = vld [vmem:[#allocation6 + $0x18] sm:$0xf]
        %v3770 = vld [vmem:[#allocation6 + $0x1c] sm:$0xf]
        %v3771 = vld [vmem:[#allocation6 + $0x20] sm:$0xf]
        %v3772 = vld [vmem:[#allocation6 + $0x24] sm:$0xf]
        %v3773 = vld [vmem:[#allocation6 + $0x28] sm:$0xf]
        %v3774 = vld [vmem:[#allocation6 + $0x2c] sm:$0xf]
        %v3775 = vld [vmem:[#allocation6 + $0x30] sm:$0xf]
        %v3776 = vld [vmem:[#allocation6 + $0x34] sm:$0xf]
        %v3777 = vld [vmem:[#allocation6 + $0x38] sm:$0xf]
        %v3778 = vld [vmem:[#allocation6 + $0x3c] sm:$0xf]
        %v3779 = vunpack.c.l.b16 %v3664
        %v3780 = vunpack.c.l.b16 %v3678
        %v3781 = vunpack.c.l.b16 %v3692
        %v3782 = vunpack.c.l.b16 %v3706
        %v3783 = vunpack.c.l.b16 %v3720
        %v3784 = vunpack.c.l.b16 %v3734
        %v3785 = vunpack.c.l.b16 %v3748
        %v3786 = vunpack.c.l.b16 %v3762
        %v3787 = vpack.c.b16 %v3780, %v3779
        %v3788 = vpack.c.b16 %v3782, %v3781
        %v3789 = vpack.c.b16 %v3784, %v3783
        %v3790 = vpack.c.b16 %v3786, %v3785
        %v3811 = vunpack.c.l.b16 %v3763
        %v3812 = vunpack.c.l.b16 %v3764
        %v3813 = vunpack.c.l.b16 %v3765
        %v3814 = vunpack.c.l.b16 %v3766
        %v3815 = vunpack.c.l.b16 %v3767
        %v3816 = vunpack.c.l.b16 %v3768
        %v3817 = vunpack.c.l.b16 %v3769
        %v3818 = vunpack.c.l.b16 %v3770
        %v3819 = vunpack.c.l.b16 %v3771
        %v3820 = vunpack.c.l.b16 %v3772
        %v3821 = vunpack.c.l.b16 %v3773
        %v3822 = vunpack.c.l.b16 %v3774
        %v3823 = vunpack.c.l.b16 %v3775
        %v3824 = vunpack.c.l.b16 %v3776
        %v3825 = vunpack.c.l.b16 %v3777
        %v3826 = vunpack.c.l.b16 %v3778
        %v3827 = vpack.c.b16 %v3812, %v3811
        %v3828 = vpack.c.b16 %v3814, %v3813
        %v3829 = vpack.c.b16 %v3816, %v3815
        %v3830 = vpack.c.b16 %v3818, %v3817
        %v3831 = vpack.c.b16 %v3820, %v3819
        %v3832 = vpack.c.b16 %v3822, %v3821
        %v3833 = vpack.c.b16 %v3824, %v3823
        %v3834 = vpack.c.b16 %v3826, %v3825
        %3843 = vmatprep.subr.bf16.mxu0 0
        %3844 = vmatpush1.bf16.msra.mxu0 %v3827
        %3845 = vmatprep.subr.bf16.mxu0 0
        %3846 = vmatpush1.bf16.msra.mxu0 %v3828
        %3847 = vmatprep.subr.bf16.mxu0 0
        %3848 = vmatpush1.bf16.msra.mxu0 %v3829
        %3849 = vmatprep.subr.bf16.mxu0 0
        %3850 = vmatpush1.bf16.msra.mxu0 %v3830
        %3851 = vmatprep.subr.bf16.mxu0 0
        %3852 = vmatpush1.bf16.msra.mxu0 %v3831
        %3853 = vmatprep.subr.bf16.mxu0 0
        %3854 = vmatpush1.bf16.msra.mxu0 %v3832
        %3855 = vmatprep.subr.bf16.mxu0 0
        %3856 = vmatpush1.bf16.msra.mxu0 %v3833
        %3857 = vmatprep.subr.bf16.mxu0 0
        %3858 = vmatpush1.bf16.msra.mxu0 %v3834
        %3859 = vmatprep.subr.bf16.mxu0 0
        %3860 = vmatpush1.bf16.msra.mxu0 0
        %3861 = vmatprep.subr.bf16.mxu0 0
        %3862 = vmatpush1.bf16.msra.mxu0 0
        %3863 = vmatprep.subr.bf16.mxu0 0
        %3864 = vmatpush1.bf16.msra.mxu0 0
        %3865 = vmatprep.subr.bf16.mxu0 0
        %3866 = vmatpush1.bf16.msra.mxu0 0
        %3867 = vmatprep.subr.bf16.mxu0 0
        %3868 = vmatpush1.bf16.msra.mxu0 0
        %3869 = vmatprep.subr.bf16.mxu0 0
        %3870 = vmatpush1.bf16.msra.mxu0 0
        %3871 = vmatprep.subr.bf16.mxu0 0
        %3872 = vmatpush1.bf16.msra.mxu0 0
        %3873 = vmatprep.subr.bf16.mxu0 0
        %3874 = vmatpush1.bf16.msra.mxu0 0
        %3875 = vmatprep.mubr.bf16.mxu0 0
        %3876 = vmatmul.mubr.bf16.gmra.mrb[0].mxu0 %v3787
        %v3877 = vpop.f32.mrb[0].mxu0
        %v3878 = vadd.f32 0.0, %v3877
        %v3879 = vpop.f32.mrb[0].mxu0
        %v3880 = vpop.f32.mrb[0].mxu0
        %v3881 = vadd.f32 0.0, %v3880
        %v3882 = vpop.f32.mrb[0].mxu0
        %3883 = vmatprep.mubr.bf16.mxu0 0
        %3884 = vmatmul.mubr.bf16.gmra.mrb[0].mxu0 %v3788
        %v3885 = vpop.f32.mrb[0].mxu0
        %v3886 = vadd.f32 0.0, %v3885
        %v3887 = vpop.f32.mrb[0].mxu0
        %v3888 = vpop.f32.mrb[0].mxu0
        %v3889 = vadd.f32 0.0, %v3888
        %v3890 = vpop.f32.mrb[0].mxu0
        %3891 = vmatprep.mubr.bf16.mxu0 0
        %3892 = vmatmul.mubr.bf16.gmra.mrb[0].mxu0 %v3789
        %v3893 = vpop.f32.mrb[0].mxu0
        %v3894 = vadd.f32 0.0, %v3893
        %v3895 = vpop.f32.mrb[0].mxu0
        %v3896 = vpop.f32.mrb[0].mxu0
        %v3897 = vadd.f32 0.0, %v3896
        %v3898 = vpop.f32.mrb[0].mxu0
        %3899 = vmatprep.mubr.bf16.mxu0 0
        %3900 = vmatmul.mubr.bf16.gmra.mrb[0].mxu0 %v3790
        %v3901 = vpop.f32.mrb[0].mxu0
        %v3902 = vadd.f32 0.0, %v3901
        %v3903 = vpop.f32.mrb[0].mxu0
        %v3904 = vpop.f32.mrb[0].mxu0
        %v3905 = vadd.f32 0.0, %v3904
        %v3906 = vpop.f32.mrb[0].mxu0
        %3907 = vdwg.mxu0
        %v3908 = vld [vmem:[%s4 + $0x4] sm:$0x1]
        %v3909 = vlaneseq
        %v3910 = vshrl.u32 %v3909, 7
        %v3911 = vsub.s32 0, %v3910
        %v3912 = vrot.slane %v3908, %v3911
        %v3913 = vmul.f32 %v3878, %v3912
        %v3914 = vmul.f32 %v3881, %v3912
        %v3915 = vmul.f32 %v3886, %v3912
        %v3916 = vmul.f32 %v3889, %v3912
        %v3917 = vmul.f32 %v3894, %v3912
        %v3918 = vmul.f32 %v3897, %v3912
        %v3919 = vmul.f32 %v3902, %v3912
        %v3920 = vmul.f32 %v3905, %v3912
        %v3921 = vld [vmem:[%s4 + $0x5] sm:$0x1]
        %v3922 = vlaneseq
        %v3923 = vshrl.u32 %v3922, 7
        %v3924 = vsub.s32 0, %v3923
        %v3925 = vrot.slane %v3921, %v3924
        %v3926 = vadd.f32 %v3913, %v3925
        %v3927 = vadd.f32 %v3914, %v3925
        %v3928 = vadd.f32 %v3915, %v3925
        %v3929 = vadd.f32 %v3916, %v3925
        %v3930 = vadd.f32 %v3917, %v3925
        %v3931 = vadd.f32 %v3918, %v3925
        %v3932 = vadd.f32 %v3919, %v3925
        %v3933 = vadd.f32 %v3920, %v3925
        %v3934 = vadd.f32 %v3623, %v3926
        %v3935 = vadd.f32 %v3624, %v3927
        %v3936 = vadd.f32 %v3625, %v3928
        %v3937 = vadd.f32 %v3626, %v3929
        %v3938 = vadd.f32 %v3627, %v3930
        %v3939 = vadd.f32 %v3628, %v3931
        %v3940 = vadd.f32 %v3629, %v3932
        %v3941 = vadd.f32 %v3630, %v3933
        %v3942 = vmax.f32 %v3934, 0.0
        %v3943 = vmax.f32 %v3935, 0.0
        %v3944 = vmax.f32 %v3936, 0.0
        %v3945 = vmax.f32 %v3937, 0.0
        %v3946 = vmax.f32 %v3938, 0.0
        %v3947 = vmax.f32 %v3939, 0.0
        %v3948 = vmax.f32 %v3940, 0.0
        %v3949 = vmax.f32 %v3941, 0.0
        %3950 = vst [vmem:[%s261] sm:$0xff] %v3942
        %3951 = vst [vmem:[%s261 + $0x8] sm:$0xff] %v3943
        %3952 = vst [vmem:[%s261 + $0x10] sm:$0xff] %v3944
        %3953 = vst [vmem:[%s261 + $0x18] sm:$0xff] %v3945
        %3954 = vst [vmem:[%s261 + $0x20] sm:$0xff] %v3946
        %3955 = vst [vmem:[%s261 + $0x28] sm:$0xff] %v3947
        %3956 = vst [vmem:[%s261 + $0x30] sm:$0xff] %v3948
        %3957 = vst [vmem:[%s261 + $0x38] sm:$0xff] %v3949
        %s3958 = sand.u32 %s153, 1
        %s3959 = scalar_lea.sflag [#allocation5], %s3958
        %s3960 = sand.u32 %s153, 1
        %s3961 = smul.addr %s3960, 64
        %s3962 = scalar_lea.vmem [#allocation8], %s3961
        // Predicated region
        $region49: #{tpu_custom_call.1} parent=39 // pred_check
          %p3963 = pneg %p163
        $region50: #{tpu_custom_call.1} parent=39 // pred_check_branch
          %3965 = sbr.rel (%p3963) target = $region52
        $region51: #{tpu_custom_call.1} parent=39 // pred_region
          %s3966 = smul.u32 8, %s26
          %s3968 = ssub.s32 1024, 1024
          %3969 = vsyncadd %s3959, %s3968
          %s3970 = smul.addr %s25, 8
          %s3971 = sadd.s32 %s3966, %s3970
          %s3972 = smul.addr %s3971, 128
          %s3973 = scalar_lea.hbm %s5, %s3972
          %s3974 = sshll.u32 %s3962, 4
          %s3975 = int_to_ptr.vmem [resolvable:$true] %s3974
          %3980 = dma.vmem_to_hbm [thread:$0]  %s3975, 1024, %s3973, %s3959, 128, 128, 8
        $region52: #{tpu_custom_call.1} parent=39 // pred_fallthru
          _
      $region40: #{tpu_custom_call.1} parent=5 // pred_fallthru
        _
      %p3981 = scmp.le.s32.totalorder 2, %s16
      // Predicated region
      $region53: #{tpu_custom_call.1} parent=5 // pred_check
        %p3982 = pneg %p3981
      $region54: #{tpu_custom_call.1} parent=5 // pred_check_branch
        %3984 = sbr.rel (%p3982) target = $region56
      $region55: #{tpu_custom_call.1} parent=5 // pred_region
        %s3985 = ssub.s32 %s16, 2
        // Predicated region
        $region57: #{tpu_custom_call.1} parent=55 // pred_check
          %p3986 = pneg %p169
        $region58: #{tpu_custom_call.1} parent=55 // pred_check_branch
          %3988 = sbr.rel (%p3986) target = $region60
        $region59: #{tpu_custom_call.1} parent=55 // pred_region
          %s3989 = sand.u32 %s154, 1
          %s3990 = scalar_lea.sflag [#allocation5], %s3989
          %s3991 = sand.u32 %s154, 1
          %s3992 = smul.addr %s3991, 64
          %s3993 = scalar_lea.vmem [#allocation8], %s3992
          %3994 = dma.done %s3990, 1024
        $region60: #{tpu_custom_call.1} parent=55 // pred_fallthru
          _
      $region56: #{tpu_custom_call.1} parent=5 // pred_fallthru
        _
    $region6: #{tpu_custom_call.1} parent=1 // loop_footer
      %s20 = sadd.s32 1, %s16
    $region7: #{tpu_custom_call.1} parent=1 // loop_footer_branch
      %15 = sbr.rel target = $region3
    $region8: #{tpu_custom_call.1} parent=1 // loop_exit
      _
    %3995 = vsyncpa [#allocation4], 1
    %s3996 = scalar_lea.sflag [#allocation4], 1
    %3997 = vsyncpa %s3996, 1
    %3998 = vsyncpa [#allocation7], 1
    %3999 = vsyncpa [#allocation5], 1
    %s4000 = scalar_lea.sflag [#allocation5], 1
    %4001 = vsyncpa %s4000, 1

</llo_original>
